<compile_context>
chip_gen: v6e
topology: v6e:2x2x1
jax: 0.10.0
libtpu: 0.0.40
codegen_flags: <defaults>
</compile_context>

<pallas_src>
import jax
import jax.numpy as jnp
from jax import lax
from jax.experimental import pallas as pl
from jax.experimental.pallas import tpu as pltpu


def lstm_fc_kernel(len_ref, emb_ref, wih0_ref, b0_ref, whh0_ref, w1_ref, b1_ref,
                   wfc0_ref, wfc1_ref, bfc_ref, out_ref,
                   xg_ref, h0, c0, h1, c1):
    Bt, Hp = h0.shape
    Ts = xg_ref.shape[0] // Bt
    s = pl.program_id(1)

    @pl.when(s == 0)
    def _init():
        h0[...] = jnp.zeros_like(h0)
        c0[...] = jnp.zeros_like(c0)
        h1[...] = jnp.zeros_like(h1)
        c1[...] = jnp.zeros_like(c1)

    # Hoisted layer-0 input projection for the whole time tile: one big MXU matmul.
    xg_ref[...] = (jnp.dot(emb_ref[...], wih0_ref[...],
                           preferred_element_type=jnp.float32) + b0_ref[...])

    whh0 = whh0_ref[...]
    w1 = w1_ref[...]
    b1 = b1_ref[...]
    # Hoist the length broadcast out of the loop (one vreg, reused every step).
    tl_b = jnp.broadcast_to(len_ref[...], (Bt, Hp))     # (Bt, Hp) int32
    t_base = s * Ts

    def gates_to_hc(gates, c):
        # PyTorch gate order: i, f, g, o ; gate blocks are lane-tile aligned (Hp % 128 == 0).
        i = jax.nn.sigmoid(gates[:, 0 * Hp:1 * Hp])
        f = jax.nn.sigmoid(gates[:, 1 * Hp:2 * Hp])
        g = jnp.tanh(gates[:, 2 * Hp:3 * Hp])
        o = jax.nn.sigmoid(gates[:, 3 * Hp:4 * Hp])
        c_new = f * c + i * g
        return o * jnp.tanh(c_new), c_new

    def step(t, carry):
        m = (t_base + t) < tl_b                          # packed-seq freeze mask (bool)

        # layer 0: only the recurrent matmul is on the serial critical path
        h0v = h0[...]
        c0v = c0[...]
        row = pl.multiple_of(t * Bt, Bt)
        g0 = xg_ref[pl.ds(row, Bt), :] + jnp.dot(
            h0v.astype(jnp.bfloat16), whh0, preferred_element_type=jnp.float32)
        hn0, cn0 = gates_to_hc(g0, c0v)
        hn0 = jnp.where(m, hn0, h0v)
        h0[...] = hn0
        c0[...] = jnp.where(m, cn0, c0v)

        # layer 1: fused input+recurrent matmul (stacked weights)
        h1v = h1[...]
        c1v = c1[...]
        x1 = jnp.concatenate(
            [hn0.astype(jnp.bfloat16), h1v.astype(jnp.bfloat16)], axis=-1)
        g1 = jnp.dot(x1, w1, preferred_element_type=jnp.float32) + b1
        hn1, cn1 = gates_to_hc(g1, c1v)
        h1[...] = jnp.where(m, hn1, h1v)
        c1[...] = jnp.where(m, cn1, c1v)
        return carry

    lax.fori_loop(0, Ts, step, 0, unroll=True)

    @pl.when(s == pl.num_programs(1) - 1)
    def _final():
        # TODO(synk): nn.Dropout(h_n) is identity in eval mode; training-mode dropout not implemented.
        out_ref[...] = (
            jnp.dot(h0[...].astype(jnp.bfloat16), wfc0_ref[...],
                    preferred_element_type=jnp.float32)
            + jnp.dot(h1[...].astype(jnp.bfloat16), wfc1_ref[...],
                      preferred_element_type=jnp.float32)
            + bfc_ref[...])


# ---------------------------------------------------------------------------
# Wrapper-side glue: padding/layout plumbing + weight prep (no compute hoisting).
# ---------------------------------------------------------------------------
def _round_up(x, m):
    return (x + m - 1) // m * m


def _pad_gate_cols(w, h, hp):
    """(in, 4h) -> (in, 4hp): each PyTorch gate block (i,f,g,o) placed at column k*hp."""
    return jnp.concatenate(
        [jnp.pad(w[:, k * h:(k + 1) * h], ((0, 0), (0, hp - h))) for k in range(4)],
        axis=1)


def _pad_gate_bias(b, h, hp):
    return jnp.concatenate(
        [jnp.pad(b[k * h:(k + 1) * h], (0, hp - h)) for k in range(4)])[None, :]


def classifier_forward(text, text_len, params, *, t_tile=16, b_tile=8):
    S, B = text.shape
    E = params["embedding"].shape[1]
    H = params["whh0"].shape[1]
    OUT = params["wfc"].shape[0]

    Hp = _round_up(H, 128)
    Ep = _round_up(E, 128)
    OUTp = _round_up(OUT, 128)
    Bt = _round_up(b_tile, 8)
    Bp = _round_up(max(B, Bt), Bt)
    Ts = min(t_tile, S)
    Sp = _round_up(S, Ts)
    nB, nS = Bp // Bt, Sp // Ts

    # Embedding gather (data-dependent HBM gather) + zero padding; zero-padded rows/cols/steps
    # contribute exactly nothing (frozen states / zero weights), so semantics are preserved.
    emb = params["embedding"][text]                                     # (S, B, E) f32
    emb = jnp.pad(emb, ((0, Sp - S), (0, Bp - B), (0, Ep - E))).astype(jnp.bfloat16)
    # Lay out as (batch_tile, time*batch_rows, E) so the kernel gets a 2-D lane-dense tile.
    emb = emb.reshape(Sp, nB, Bt, Ep).transpose(1, 0, 2, 3).reshape(nB, Sp * Bt, Ep)

    tl = jnp.pad(text_len.astype(jnp.int32), (0, Bp - B)).reshape(Bp, 1)

    # Pre-transpose weights (x @ W^T -> x @ wT), gate-block pad to Hp, fold biases.
    wih0T = _pad_gate_cols(jnp.pad(params["wih0"].T, ((0, Ep - E), (0, 0))), H, Hp)
    whh0T = _pad_gate_cols(jnp.pad(params["whh0"].T, ((0, Hp - H), (0, 0))), H, Hp)
    wih1T = _pad_gate_cols(jnp.pad(params["wih1"].T, ((0, Hp - H), (0, 0))), H, Hp)
    whh1T = _pad_gate_cols(jnp.pad(params["whh1"].T, ((0, Hp - H), (0, 0))), H, Hp)
    w1 = jnp.concatenate([wih1T, whh1T], axis=0)                        # (2Hp, 4Hp)

    b0 = _pad_gate_bias(params["bih0"] + params["bhh0"], H, Hp)         # (1, 4Hp) f32
    b1 = _pad_gate_bias(params["bih1"] + params["bhh1"], H, Hp)

    wfc = params["wfc"]                                                 # (OUT, 2H)
    wfc0T = jnp.pad(wfc[:, :H].T, ((0, Hp - H), (0, OUTp - OUT)))       # (Hp, OUTp)
    wfc1T = jnp.pad(wfc[:, H:].T, ((0, Hp - H), (0, OUTp - OUT)))
    bfc = jnp.pad(params["bfc"], (0, OUTp - OUT))[None, :]              # (1, OUTp)

    bf16 = jnp.bfloat16
    wih0T, whh0T, w1 = wih0T.astype(bf16), whh0T.astype(bf16), w1.astype(bf16)
    wfc0T, wfc1T = wfc0T.astype(bf16), wfc1T.astype(bf16)

    def const(a):
        return pl.BlockSpec(a.shape, lambda b, s: (0,) * len(a.shape))

    out_p = pl.pallas_call(
        lstm_fc_kernel,
        out_shape=jax.ShapeDtypeStruct((Bp, OUTp), jnp.float32),
        grid=(nB, nS),
        in_specs=[
            pl.BlockSpec((Bt, 1), lambda b, s: (b, 0)),                  # text_len
            pl.BlockSpec((None, Ts * Bt, Ep), lambda b, s: (b, s, 0)),   # streamed emb tiles
            const(wih0T), const(b0), const(whh0T),
            const(w1), const(b1),
            const(wfc0T), const(wfc1T), const(bfc),
        ],
        out_specs=pl.BlockSpec((Bt, OUTp), lambda b, s: (b, 0)),
        scratch_shapes=[
            pltpu.VMEM((Ts * Bt, 4 * Hp), jnp.float32),   # hoisted layer-0 gate pre-activations
            pltpu.VMEM((Bt, Hp), jnp.float32),            # h0
            pltpu.VMEM((Bt, Hp), jnp.float32),            # c0
            pltpu.VMEM((Bt, Hp), jnp.float32),            # h1
            pltpu.VMEM((Bt, Hp), jnp.float32),            # c1
        ],
        compiler_params=pltpu.CompilerParams(
            dimension_semantics=("parallel", "arbitrary")),
    )(tl, emb, wih0T, b0, whh0T, w1, b1, wfc0T, wfc1T, bfc)

    return out_p[:B, :OUT]


def init_params(key, vocabsize, out_dim, embedding_dim, hidden_dim):
    ks = jax.random.split(key, 11)
    E, H = embedding_dim, hidden_dim

    def u(k, shape, scale=0.1):
        return jax.random.uniform(k, shape, jnp.float32, -scale, scale)

    return dict(
        embedding=u(ks[0], (vocabsize, E)),
        wih0=u(ks[1], (4 * H, E)), whh0=u(ks[2], (4 * H, H)),
        bih0=u(ks[3], (4 * H,)),   bhh0=u(ks[4], (4 * H,)),
        wih1=u(ks[5], (4 * H, H)), whh1=u(ks[6], (4 * H, H)),
        bih1=u(ks[7], (4 * H,)),   bhh1=u(ks[8], (4 * H,)),
        wfc=u(ks[9], (out_dim, 2 * H)), bfc=u(ks[10], (out_dim,)),
    )


def _reference_forward(text, text_len, params):
    """Pure-JAX f32 reference with PyTorch eval semantics (packed seq -> h_n -> FC)."""
    S, B = text.shape
    H = params["whh0"].shape[1]
    emb = params["embedding"][text]

    def cell(x, h, c, wih, whh, bih, bhh):
        g = x @ wih.T + h @ whh.T + bih + bhh
        i = jax.nn.sigmoid(g[:, 0 * H:1 * H])
        f = jax.nn.sigmoid(g[:, 1 * H:2 * H])
        gg = jnp.tanh(g[:, 2 * H:3 * H])
        o = jax.nn.sigmoid(g[:, 3 * H:4 * H])
        c = f * c + i * gg
        return o * jnp.tanh(c), c

    h0 = c0 = h1 = c1 = jnp.zeros((B, H), jnp.float32)
    for t in range(S):
        m = (t < text_len)[:, None]
        hn, cn = cell(emb[t], h0, c0, params["wih0"], params["whh0"],
                      params["bih0"], params["bhh0"])
        h0, c0 = jnp.where(m, hn, h0), jnp.where(m, cn, c0)
        hn, cn = cell(h0, h1, c1, params["wih1"], params["whh1"],
                      params["bih1"], params["bhh1"])
        h1, c1 = jnp.where(m, hn, h1), jnp.where(m, cn, c1)
    h_cat = jnp.concatenate([h0, h1], axis=-1)
    return h_cat @ params["wfc"].T + params["bfc"]


if __name__ == "__main__":
    key = jax.random.PRNGKey(0)
    S, B = 8, 2
    VOCAB, E, H, OUT = 50, 64, 32, 8

    kp, kt = jax.random.split(key)
    params = init_params(kp, VOCAB, OUT, E, H)

    text = jax.random.randint(kt, (S, B), 0, VOCAB, dtype=jnp.int32)    # (seq, batch)
    text_len = jnp.array([8, 5], dtype=jnp.int32)   # sorted descending (enforce_sorted=True)

    logits = classifier_forward(text, text_len, params)
    jax.block_until_ready(logits)

    ref = _reference_forward(text, text_len, params)
    assert logits.shape == (B, OUT) and logits.dtype == jnp.float32
    assert bool(jnp.allclose(logits, ref, atol=1e-2, rtol=1e-2)), (
        "max abs err %s" % jnp.max(jnp.abs(logits - ref)))
    print("KERNEL_OK")
</pallas_src>

<mosaic_0001>
module attributes {stable_mosaic.version = 11 : i64} {
  func.func @lstm_fc_kernel(%arg0: i32, %arg1: i32, %arg2: memref<8x1xi32, #tpu.memory_space<vmem>>, %arg3: memref<1x64x128xbf16, #tpu.memory_space<vmem>>, %arg4: memref<128x512xbf16, #tpu.memory_space<vmem>>, %arg5: memref<1x512xf32, #tpu.memory_space<vmem>>, %arg6: memref<128x512xbf16, #tpu.memory_space<vmem>>, %arg7: memref<256x512xbf16, #tpu.memory_space<vmem>>, %arg8: memref<1x512xf32, #tpu.memory_space<vmem>>, %arg9: memref<128x128xbf16, #tpu.memory_space<vmem>>, %arg10: memref<128x128xbf16, #tpu.memory_space<vmem>>, %arg11: memref<1x128xf32, #tpu.memory_space<vmem>>, %arg12: memref<8x128xf32, #tpu.memory_space<vmem>>, %arg13: memref<64x512xf32, #tpu.memory_space<vmem>>, %arg14: memref<8x128xf32, #tpu.memory_space<vmem>>, %arg15: memref<8x128xf32, #tpu.memory_space<vmem>>, %arg16: memref<8x128xf32, #tpu.memory_space<vmem>>, %arg17: memref<8x128xf32, #tpu.memory_space<vmem>>) attributes {dimension_semantics = [#tpu.dimension_semantics<parallel>, #tpu.dimension_semantics<arbitrary>], iteration_bounds = array<i64: 1, 1>, scalar_prefetch = 0 : i64, scratch_operands = 5 : i64, tpu.core_type = #tpu.core_type<tc>, window_params = [{transform_indices = @transform_0, window_bounds = array<i64: 8, 1>}, {transform_indices = @transform_1, window_bounds = array<i64: 1, 64, 128>}, {pipeline_mode = #tpu.pipeline_mode<synchronous>, transform_indices = @transform_2, window_bounds = array<i64: 128, 512>}, {pipeline_mode = #tpu.pipeline_mode<synchronous>, transform_indices = @transform_3, window_bounds = array<i64: 1, 512>}, {pipeline_mode = #tpu.pipeline_mode<synchronous>, transform_indices = @transform_4, window_bounds = array<i64: 128, 512>}, {pipeline_mode = #tpu.pipeline_mode<synchronous>, transform_indices = @transform_5, window_bounds = array<i64: 256, 512>}, {pipeline_mode = #tpu.pipeline_mode<synchronous>, transform_indices = @transform_6, window_bounds = array<i64: 1, 512>}, {pipeline_mode = #tpu.pipeline_mode<synchronous>, transform_indices = @transform_7, window_bounds = array<i64: 128, 128>}, {pipeline_mode = #tpu.pipeline_mode<synchronous>, transform_indices = @transform_8, window_bounds = array<i64: 128, 128>}, {pipeline_mode = #tpu.pipeline_mode<synchronous>, transform_indices = @transform_9, window_bounds = array<i64: 1, 128>}, {transform_indices = @transform_10, window_bounds = array<i64: 8, 128>}]} {
    %c0_i32 = arith.constant 0 : i32
    %0 = arith.cmpi eq, %arg1, %c0_i32 : i32
    %1 = arith.extui %0 : i1 to i32
    %c0_i32_0 = arith.constant 0 : i32
    %2 = arith.cmpi ne, %1, %c0_i32_0 : i32
    scf.if %2 {
      %cst_229 = arith.constant 0.000000e+00 : f32
      %645 = vector.broadcast %cst_229 : f32 to vector<8x128xf32>
      %c0_230 = arith.constant 0 : index
      %c0_231 = arith.constant 0 : index
      %646 = vector.load %arg14[%c0_230, %c0_231] : memref<8x128xf32, #tpu.memory_space<vmem>>, vector<8x128xf32>
      tpu.vector_store %arg14[%c0_230, %c0_231], %645 {strides = array<i32>} : memref<8x128xf32, #tpu.memory_space<vmem>>, vector<8x128xf32>,
      %cst_232 = arith.constant 0.000000e+00 : f32
      %647 = vector.broadcast %cst_232 : f32 to vector<8x128xf32>
      %c0_233 = arith.constant 0 : index
      %c0_234 = arith.constant 0 : index
      %648 = vector.load %arg15[%c0_233, %c0_234] : memref<8x128xf32, #tpu.memory_space<vmem>>, vector<8x128xf32>
      tpu.vector_store %arg15[%c0_233, %c0_234], %647 {strides = array<i32>} : memref<8x128xf32, #tpu.memory_space<vmem>>, vector<8x128xf32>,
      %cst_235 = arith.constant 0.000000e+00 : f32
      %649 = vector.broadcast %cst_235 : f32 to vector<8x128xf32>
      %c0_236 = arith.constant 0 : index
      %c0_237 = arith.constant 0 : index
      %650 = vector.load %arg16[%c0_236, %c0_237] : memref<8x128xf32, #tpu.memory_space<vmem>>, vector<8x128xf32>
      tpu.vector_store %arg16[%c0_236, %c0_237], %649 {strides = array<i32>} : memref<8x128xf32, #tpu.memory_space<vmem>>, vector<8x128xf32>,
      %cst_238 = arith.constant 0.000000e+00 : f32
      %651 = vector.broadcast %cst_238 : f32 to vector<8x128xf32>
      %c0_239 = arith.constant 0 : index
      %c0_240 = arith.constant 0 : index
      %652 = vector.load %arg17[%c0_239, %c0_240] : memref<8x128xf32, #tpu.memory_space<vmem>>, vector<8x128xf32>
      tpu.vector_store %arg17[%c0_239, %c0_240], %651 {strides = array<i32>} : memref<8x128xf32, #tpu.memory_space<vmem>>, vector<8x128xf32>,
    } else {
    }
    %c0 = arith.constant 0 : index
    %c0_1 = arith.constant 0 : index
    %c0_2 = arith.constant 0 : index
    %3 = vector.load %arg3[%c0, %c0_1, %c0_2] : memref<1x64x128xbf16, #tpu.memory_space<vmem>>, vector<1x64x128xbf16>
    %4 = vector.shape_cast %3 : vector<1x64x128xbf16> to vector<64x128xbf16>
    %c0_3 = arith.constant 0 : index
    %c0_4 = arith.constant 0 : index
    %5 = vector.load %arg4[%c0_3, %c0_4] : memref<128x512xbf16, #tpu.memory_space<vmem>>, vector<128x512xbf16>
    %cst = arith.constant dense<0.000000e+00> : vector<64x512xf32>
    %6 = tpu.matmul %4, %5, %cst {dimension_numbers = #tpu.dot_dimension_numbers<[1], [0], [0], [1], [0, 0, 1, 1], [], []>} : vector<64x128xbf16>, vector<128x512xbf16>, vector<64x512xf32> -> vector<64x512xf32>
    %c0_5 = arith.constant 0 : index
    %c0_6 = arith.constant 0 : index
    %7 = vector.load %arg5[%c0_5, %c0_6] : memref<1x512xf32, #tpu.memory_space<vmem>>, vector<1x512xf32>
    %8 = vector.broadcast %7 : vector<1x512xf32> to vector<64x512xf32>
    %9 = arith.addf %6, %8 : vector<64x512xf32>
    %c0_7 = arith.constant 0 : index
    %c0_8 = arith.constant 0 : index
    %10 = vector.load %arg13[%c0_7, %c0_8] : memref<64x512xf32, #tpu.memory_space<vmem>>, vector<64x512xf32>
    tpu.vector_store %arg13[%c0_7, %c0_8], %9 {strides = array<i32>} : memref<64x512xf32, #tpu.memory_space<vmem>>, vector<64x512xf32>,
    %c0_9 = arith.constant 0 : index
    %c0_10 = arith.constant 0 : index
    %11 = vector.load %arg6[%c0_9, %c0_10] : memref<128x512xbf16, #tpu.memory_space<vmem>>, vector<128x512xbf16>
    %c0_11 = arith.constant 0 : index
    %c0_12 = arith.constant 0 : index
    %12 = vector.load %arg7[%c0_11, %c0_12] : memref<256x512xbf16, #tpu.memory_space<vmem>>, vector<256x512xbf16>
    %c0_13 = arith.constant 0 : index
    %c0_14 = arith.constant 0 : index
    %13 = vector.load %arg8[%c0_13, %c0_14] : memref<1x512xf32, #tpu.memory_space<vmem>>, vector<1x512xf32>
    %c0_15 = arith.constant 0 : index
    %c0_16 = arith.constant 0 : index
    %14 = vector.load %arg2[%c0_15, %c0_16] : memref<8x1xi32, #tpu.memory_space<vmem>>, vector<8x1xi32>
    %15 = vector.shape_cast %14 : vector<8x1xi32> to vector<8x1xi32>
    %16 = vector.broadcast %15 : vector<8x1xi32> to vector<8x128xi32>
    %c8_i32 = arith.constant 8 : i32
    %17 = arith.muli %arg1, %c8_i32 : i32
    %c0_i32_17 = arith.constant 0 : i32
    %18 = arith.addi %17, %c0_i32_17 : i32
    %19 = vector.broadcast %18 : i32 to vector<8x128xi32>
    %20 = arith.cmpi slt, %19, %16 : vector<8x128xi32>
    %c0_18 = arith.constant 0 : index
    %c0_19 = arith.constant 0 : index
    %21 = vector.load %arg14[%c0_18, %c0_19] : memref<8x128xf32, #tpu.memory_space<vmem>>, vector<8x128xf32>
    %c0_20 = arith.constant 0 : index
    %c0_21 = arith.constant 0 : index
    %22 = vector.load %arg15[%c0_20, %c0_21] : memref<8x128xf32, #tpu.memory_space<vmem>>, vector<8x128xf32>
    %c8_i32_22 = arith.constant 8 : i32
    %23 = arith.muli %c0_i32_17, %c8_i32_22 : i32
    %24 = tpu.assume_multiple %23, 8 : i32
    %25 = arith.index_cast %24 : i32 to index
    %c0_23 = arith.constant 0 : index
    %26 = vector.load %arg13[%25, %c0_23] : memref<64x512xf32, #tpu.memory_space<vmem>>, vector<8x512xf32>
    %27 = arith.truncf %21 : vector<8x128xf32> to vector<8x128xbf16>
    %cst_24 = arith.constant dense<0.000000e+00> : vector<8x512xf32>
    %28 = tpu.matmul %27, %11, %cst_24 {dimension_numbers = #tpu.dot_dimension_numbers<[1], [0], [0], [1], [0, 0, 1, 1], [], []>} : vector<8x128xbf16>, vector<128x512xbf16>, vector<8x512xf32> -> vector<8x512xf32>
    %29 = arith.addf %26, %28 : vector<8x512xf32>
    %30 = vector.extract_strided_slice %29 {offsets = [0, 0], sizes = [8, 128], strides = [1, 1]} : vector<8x512xf32> to vector<8x128xf32>
    %31 = arith.negf %30 : vector<8x128xf32>
    %32 = math.exp %31 : vector<8x128xf32>
    %cst_25 = arith.constant 1.000000e+00 : f32
    %33 = vector.broadcast %cst_25 : f32 to vector<8x128xf32>
    %34 = arith.addf %33, %32 : vector<8x128xf32>
    %35 = arith.divf %33, %34 : vector<8x128xf32>
    %36 = vector.extract_strided_slice %29 {offsets = [0, 128], sizes = [8, 128], strides = [1, 1]} : vector<8x512xf32> to vector<8x128xf32>
    %37 = arith.negf %36 : vector<8x128xf32>
    %38 = math.exp %37 : vector<8x128xf32>
    %cst_26 = arith.constant 1.000000e+00 : f32
    %39 = vector.broadcast %cst_26 : f32 to vector<8x128xf32>
    %40 = arith.addf %39, %38 : vector<8x128xf32>
    %41 = arith.divf %39, %40 : vector<8x128xf32>
    %42 = vector.extract_strided_slice %29 {offsets = [0, 256], sizes = [8, 128], strides = [1, 1]} : vector<8x512xf32> to vector<8x128xf32>
    %43 = math.tanh %42 : vector<8x128xf32>
    %44 = vector.extract_strided_slice %29 {offsets = [0, 384], sizes = [8, 128], strides = [1, 1]} : vector<8x512xf32> to vector<8x128xf32>
    %45 = arith.negf %44 : vector<8x128xf32>
    %46 = math.exp %45 : vector<8x128xf32>
    %cst_27 = arith.constant 1.000000e+00 : f32
    %47 = vector.broadcast %cst_27 : f32 to vector<8x128xf32>
    %48 = arith.addf %47, %46 : vector<8x128xf32>
    %49 = arith.divf %47, %48 : vector<8x128xf32>
    %50 = arith.mulf %41, %22 : vector<8x128xf32>
    %51 = arith.mulf %35, %43 : vector<8x128xf32>
    %52 = arith.addf %50, %51 : vector<8x128xf32>
    %53 = math.tanh %52 : vector<8x128xf32>
    %54 = arith.mulf %49, %53 : vector<8x128xf32>
    %55 = arith.select %20, %54, %21 : vector<8x128xi1>, vector<8x128xf32>
    %c0_28 = arith.constant 0 : index
    %c0_29 = arith.constant 0 : index
    %56 = vector.load %arg14[%c0_28, %c0_29] : memref<8x128xf32, #tpu.memory_space<vmem>>, vector<8x128xf32>
    tpu.vector_store %arg14[%c0_28, %c0_29], %55 {strides = array<i32>} : memref<8x128xf32, #tpu.memory_space<vmem>>, vector<8x128xf32>,
    %57 = arith.select %20, %52, %22 : vector<8x128xi1>, vector<8x128xf32>
    %c0_30 = arith.constant 0 : index
    %c0_31 = arith.constant 0 : index
    %58 = vector.load %arg15[%c0_30, %c0_31] : memref<8x128xf32, #tpu.memory_space<vmem>>, vector<8x128xf32>
    tpu.vector_store %arg15[%c0_30, %c0_31], %57 {strides = array<i32>} : memref<8x128xf32, #tpu.memory_space<vmem>>, vector<8x128xf32>,
    %c0_32 = arith.constant 0 : index
    %c0_33 = arith.constant 0 : index
    %59 = vector.load %arg16[%c0_32, %c0_33] : memref<8x128xf32, #tpu.memory_space<vmem>>, vector<8x128xf32>
    %c0_34 = arith.constant 0 : index
    %c0_35 = arith.constant 0 : index
    %60 = vector.load %arg17[%c0_34, %c0_35] : memref<8x128xf32, #tpu.memory_space<vmem>>, vector<8x128xf32>
    %61 = arith.truncf %55 : vector<8x128xf32> to vector<8x128xbf16>
    %62 = arith.truncf %59 : vector<8x128xf32> to vector<8x128xbf16>
    %63 = tpu.concatenate %61, %62 in 1 : vector<8x128xbf16>, vector<8x128xbf16> -> vector<8x256xbf16>
    %cst_36 = arith.constant dense<0.000000e+00> : vector<8x512xf32>
    %64 = tpu.matmul %63, %12, %cst_36 {dimension_numbers = #tpu.dot_dimension_numbers<[1], [0], [0], [1], [0, 0, 1, 1], [], []>} : vector<8x256xbf16>, vector<256x512xbf16>, vector<8x512xf32> -> vector<8x512xf32>
    %65 = vector.broadcast %13 : vector<1x512xf32> to vector<8x512xf32>
    %66 = arith.addf %64, %65 : vector<8x512xf32>
    %67 = vector.extract_strided_slice %66 {offsets = [0, 0], sizes = [8, 128], strides = [1, 1]} : vector<8x512xf32> to vector<8x128xf32>
    %68 = arith.negf %67 : vector<8x128xf32>
    %69 = math.exp %68 : vector<8x128xf32>
    %cst_37 = arith.constant 1.000000e+00 : f32
    %70 = vector.broadcast %cst_37 : f32 to vector<8x128xf32>
    %71 = arith.addf %70, %69 : vector<8x128xf32>
    %72 = arith.divf %70, %71 : vector<8x128xf32>
    %73 = vector.extract_strided_slice %66 {offsets = [0, 128], sizes = [8, 128], strides = [1, 1]} : vector<8x512xf32> to vector<8x128xf32>
    %74 = arith.negf %73 : vector<8x128xf32>
    %75 = math.exp %74 : vector<8x128xf32>
    %cst_38 = arith.constant 1.000000e+00 : f32
    %76 = vector.broadcast %cst_38 : f32 to vector<8x128xf32>
    %77 = arith.addf %76, %75 : vector<8x128xf32>
    %78 = arith.divf %76, %77 : vector<8x128xf32>
    %79 = vector.extract_strided_slice %66 {offsets = [0, 256], sizes = [8, 128], strides = [1, 1]} : vector<8x512xf32> to vector<8x128xf32>
    %80 = math.tanh %79 : vector<8x128xf32>
    %81 = vector.extract_strided_slice %66 {offsets = [0, 384], sizes = [8, 128], strides = [1, 1]} : vector<8x512xf32> to vector<8x128xf32>
    %82 = arith.negf %81 : vector<8x128xf32>
    %83 = math.exp %82 : vector<8x128xf32>
    %cst_39 = arith.constant 1.000000e+00 : f32
    %84 = vector.broadcast %cst_39 : f32 to vector<8x128xf32>
    %85 = arith.addf %84, %83 : vector<8x128xf32>
    %86 = arith.divf %84, %85 : vector<8x128xf32>
    %87 = arith.mulf %78, %60 : vector<8x128xf32>
    %88 = arith.mulf %72, %80 : vector<8x128xf32>
    %89 = arith.addf %87, %88 : vector<8x128xf32>
    %90 = math.tanh %89 : vector<8x128xf32>
    %91 = arith.mulf %86, %90 : vector<8x128xf32>
    %92 = arith.select %20, %91, %59 : vector<8x128xi1>, vector<8x128xf32>
    %c0_40 = arith.constant 0 : index
    %c0_41 = arith.constant 0 : index
    %93 = vector.load %arg16[%c0_40, %c0_41] : memref<8x128xf32, #tpu.memory_space<vmem>>, vector<8x128xf32>
    tpu.vector_store %arg16[%c0_40, %c0_41], %92 {strides = array<i32>} : memref<8x128xf32, #tpu.memory_space<vmem>>, vector<8x128xf32>,
    %94 = arith.select %20, %89, %60 : vector<8x128xi1>, vector<8x128xf32>
    %c0_42 = arith.constant 0 : index
    %c0_43 = arith.constant 0 : index
    %95 = vector.load %arg17[%c0_42, %c0_43] : memref<8x128xf32, #tpu.memory_space<vmem>>, vector<8x128xf32>
    tpu.vector_store %arg17[%c0_42, %c0_43], %94 {strides = array<i32>} : memref<8x128xf32, #tpu.memory_space<vmem>>, vector<8x128xf32>,
    %c1_i32 = arith.constant 1 : i32
    %96 = arith.addi %17, %c1_i32 : i32
    %97 = vector.broadcast %96 : i32 to vector<8x128xi32>
    %98 = arith.cmpi slt, %97, %16 : vector<8x128xi32>
    %c0_44 = arith.constant 0 : index
    %c0_45 = arith.constant 0 : index
    %99 = vector.load %arg14[%c0_44, %c0_45] : memref<8x128xf32, #tpu.memory_space<vmem>>, vector<8x128xf32>
    %c0_46 = arith.constant 0 : index
    %c0_47 = arith.constant 0 : index
    %100 = vector.load %arg15[%c0_46, %c0_47] : memref<8x128xf32, #tpu.memory_space<vmem>>, vector<8x128xf32>
    %c8_i32_48 = arith.constant 8 : i32
    %101 = arith.muli %c1_i32, %c8_i32_48 : i32
    %102 = tpu.assume_multiple %101, 8 : i32
    %103 = arith.index_cast %102 : i32 to index
    %c0_49 = arith.constant 0 : index
    %104 = vector.load %arg13[%103, %c0_49] : memref<64x512xf32, #tpu.memory_space<vmem>>, vector<8x512xf32>
    %105 = arith.truncf %99 : vector<8x128xf32> to vector<8x128xbf16>
    %cst_50 = arith.constant dense<0.000000e+00> : vector<8x512xf32>
    %106 = tpu.matmul %105, %11, %cst_50 {dimension_numbers = #tpu.dot_dimension_numbers<[1], [0], [0], [1], [0, 0, 1, 1], [], []>} : vector<8x128xbf16>, vector<128x512xbf16>, vector<8x512xf32> -> vector<8x512xf32>
    %107 = arith.addf %104, %106 : vector<8x512xf32>
    %108 = vector.extract_strided_slice %107 {offsets = [0, 0], sizes = [8, 128], strides = [1, 1]} : vector<8x512xf32> to vector<8x128xf32>
    %109 = arith.negf %108 : vector<8x128xf32>
    %110 = math.exp %109 : vector<8x128xf32>
    %cst_51 = arith.constant 1.000000e+00 : f32
    %111 = vector.broadcast %cst_51 : f32 to vector<8x128xf32>
    %112 = arith.addf %111, %110 : vector<8x128xf32>
    %113 = arith.divf %111, %112 : vector<8x128xf32>
    %114 = vector.extract_strided_slice %107 {offsets = [0, 128], sizes = [8, 128], strides = [1, 1]} : vector<8x512xf32> to vector<8x128xf32>
    %115 = arith.negf %114 : vector<8x128xf32>
    %116 = math.exp %115 : vector<8x128xf32>
    %cst_52 = arith.constant 1.000000e+00 : f32
    %117 = vector.broadcast %cst_52 : f32 to vector<8x128xf32>
    %118 = arith.addf %117, %116 : vector<8x128xf32>
    %119 = arith.divf %117, %118 : vector<8x128xf32>
    %120 = vector.extract_strided_slice %107 {offsets = [0, 256], sizes = [8, 128], strides = [1, 1]} : vector<8x512xf32> to vector<8x128xf32>
    %121 = math.tanh %120 : vector<8x128xf32>
    %122 = vector.extract_strided_slice %107 {offsets = [0, 384], sizes = [8, 128], strides = [1, 1]} : vector<8x512xf32> to vector<8x128xf32>
    %123 = arith.negf %122 : vector<8x128xf32>
    %124 = math.exp %123 : vector<8x128xf32>
    %cst_53 = arith.constant 1.000000e+00 : f32
    %125 = vector.broadcast %cst_53 : f32 to vector<8x128xf32>
    %126 = arith.addf %125, %124 : vector<8x128xf32>
    %127 = arith.divf %125, %126 : vector<8x128xf32>
    %128 = arith.mulf %119, %100 : vector<8x128xf32>
    %129 = arith.mulf %113, %121 : vector<8x128xf32>
    %130 = arith.addf %128, %129 : vector<8x128xf32>
    %131 = math.tanh %130 : vector<8x128xf32>
    %132 = arith.mulf %127, %131 : vector<8x128xf32>
    %133 = arith.select %98, %132, %99 : vector<8x128xi1>, vector<8x128xf32>
    %c0_54 = arith.constant 0 : index
    %c0_55 = arith.constant 0 : index
    %134 = vector.load %arg14[%c0_54, %c0_55] : memref<8x128xf32, #tpu.memory_space<vmem>>, vector<8x128xf32>
    tpu.vector_store %arg14[%c0_54, %c0_55], %133 {strides = array<i32>} : memref<8x128xf32, #tpu.memory_space<vmem>>, vector<8x128xf32>,
    %135 = arith.select %98, %130, %100 : vector<8x128xi1>, vector<8x128xf32>
    %c0_56 = arith.constant 0 : index
    %c0_57 = arith.constant 0 : index
    %136 = vector.load %arg15[%c0_56, %c0_57] : memref<8x128xf32, #tpu.memory_space<vmem>>, vector<8x128xf32>
    tpu.vector_store %arg15[%c0_56, %c0_57], %135 {strides = array<i32>} : memref<8x128xf32, #tpu.memory_space<vmem>>, vector<8x128xf32>,
    %c0_58 = arith.constant 0 : index
    %c0_59 = arith.constant 0 : index
    %137 = vector.load %arg16[%c0_58, %c0_59] : memref<8x128xf32, #tpu.memory_space<vmem>>, vector<8x128xf32>
    %c0_60 = arith.constant 0 : index
    %c0_61 = arith.constant 0 : index
    %138 = vector.load %arg17[%c0_60, %c0_61] : memref<8x128xf32, #tpu.memory_space<vmem>>, vector<8x128xf32>
    %139 = arith.truncf %133 : vector<8x128xf32> to vector<8x128xbf16>
    %140 = arith.truncf %137 : vector<8x128xf32> to vector<8x128xbf16>
    %141 = tpu.concatenate %139, %140 in 1 : vector<8x128xbf16>, vector<8x128xbf16> -> vector<8x256xbf16>
    %cst_62 = arith.constant dense<0.000000e+00> : vector<8x512xf32>
    %142 = tpu.matmul %141, %12, %cst_62 {dimension_numbers = #tpu.dot_dimension_numbers<[1], [0], [0], [1], [0, 0, 1, 1], [], []>} : vector<8x256xbf16>, vector<256x512xbf16>, vector<8x512xf32> -> vector<8x512xf32>
    %143 = vector.broadcast %13 : vector<1x512xf32> to vector<8x512xf32>
    %144 = arith.addf %142, %143 : vector<8x512xf32>
    %145 = vector.extract_strided_slice %144 {offsets = [0, 0], sizes = [8, 128], strides = [1, 1]} : vector<8x512xf32> to vector<8x128xf32>
    %146 = arith.negf %145 : vector<8x128xf32>
    %147 = math.exp %146 : vector<8x128xf32>
    %cst_63 = arith.constant 1.000000e+00 : f32
    %148 = vector.broadcast %cst_63 : f32 to vector<8x128xf32>
    %149 = arith.addf %148, %147 : vector<8x128xf32>
    %150 = arith.divf %148, %149 : vector<8x128xf32>
    %151 = vector.extract_strided_slice %144 {offsets = [0, 128], sizes = [8, 128], strides = [1, 1]} : vector<8x512xf32> to vector<8x128xf32>
    %152 = arith.negf %151 : vector<8x128xf32>
    %153 = math.exp %152 : vector<8x128xf32>
    %cst_64 = arith.constant 1.000000e+00 : f32
    %154 = vector.broadcast %cst_64 : f32 to vector<8x128xf32>
    %155 = arith.addf %154, %153 : vector<8x128xf32>
    %156 = arith.divf %154, %155 : vector<8x128xf32>
    %157 = vector.extract_strided_slice %144 {offsets = [0, 256], sizes = [8, 128], strides = [1, 1]} : vector<8x512xf32> to vector<8x128xf32>
    %158 = math.tanh %157 : vector<8x128xf32>
    %159 = vector.extract_strided_slice %144 {offsets = [0, 384], sizes = [8, 128], strides = [1, 1]} : vector<8x512xf32> to vector<8x128xf32>
    %160 = arith.negf %159 : vector<8x128xf32>
    %161 = math.exp %160 : vector<8x128xf32>
    %cst_65 = arith.constant 1.000000e+00 : f32
    %162 = vector.broadcast %cst_65 : f32 to vector<8x128xf32>
    %163 = arith.addf %162, %161 : vector<8x128xf32>
    %164 = arith.divf %162, %163 : vector<8x128xf32>
    %165 = arith.mulf %156, %138 : vector<8x128xf32>
    %166 = arith.mulf %150, %158 : vector<8x128xf32>
    %167 = arith.addf %165, %166 : vector<8x128xf32>
    %168 = math.tanh %167 : vector<8x128xf32>
    %169 = arith.mulf %164, %168 : vector<8x128xf32>
    %170 = arith.select %98, %169, %137 : vector<8x128xi1>, vector<8x128xf32>
    %c0_66 = arith.constant 0 : index
    %c0_67 = arith.constant 0 : index
    %171 = vector.load %arg16[%c0_66, %c0_67] : memref<8x128xf32, #tpu.memory_space<vmem>>, vector<8x128xf32>
    tpu.vector_store %arg16[%c0_66, %c0_67], %170 {strides = array<i32>} : memref<8x128xf32, #tpu.memory_space<vmem>>, vector<8x128xf32>,
    %172 = arith.select %98, %167, %138 : vector<8x128xi1>, vector<8x128xf32>
    %c0_68 = arith.constant 0 : index
    %c0_69 = arith.constant 0 : index
    %173 = vector.load %arg17[%c0_68, %c0_69] : memref<8x128xf32, #tpu.memory_space<vmem>>, vector<8x128xf32>
    tpu.vector_store %arg17[%c0_68, %c0_69], %172 {strides = array<i32>} : memref<8x128xf32, #tpu.memory_space<vmem>>, vector<8x128xf32>,
    %c2_i32 = arith.constant 2 : i32
    %174 = arith.addi %17, %c2_i32 : i32
    %175 = vector.broadcast %174 : i32 to vector<8x128xi32>
    %176 = arith.cmpi slt, %175, %16 : vector<8x128xi32>
    %c0_70 = arith.constant 0 : index
    %c0_71 = arith.constant 0 : index
    %177 = vector.load %arg14[%c0_70, %c0_71] : memref<8x128xf32, #tpu.memory_space<vmem>>, vector<8x128xf32>
    %c0_72 = arith.constant 0 : index
    %c0_73 = arith.constant 0 : index
    %178 = vector.load %arg15[%c0_72, %c0_73] : memref<8x128xf32, #tpu.memory_space<vmem>>, vector<8x128xf32>
    %c8_i32_74 = arith.constant 8 : i32
    %179 = arith.muli %c2_i32, %c8_i32_74 : i32
    %180 = tpu.assume_multiple %179, 8 : i32
    %181 = arith.index_cast %180 : i32 to index
    %c0_75 = arith.constant 0 : index
    %182 = vector.load %arg13[%181, %c0_75] : memref<64x512xf32, #tpu.memory_space<vmem>>, vector<8x512xf32>
    %183 = arith.truncf %177 : vector<8x128xf32> to vector<8x128xbf16>
    %cst_76 = arith.constant dense<0.000000e+00> : vector<8x512xf32>
    %184 = tpu.matmul %183, %11, %cst_76 {dimension_numbers = #tpu.dot_dimension_numbers<[1], [0], [0], [1], [0, 0, 1, 1], [], []>} : vector<8x128xbf16>, vector<128x512xbf16>, vector<8x512xf32> -> vector<8x512xf32>
    %185 = arith.addf %182, %184 : vector<8x512xf32>
    %186 = vector.extract_strided_slice %185 {offsets = [0, 0], sizes = [8, 128], strides = [1, 1]} : vector<8x512xf32> to vector<8x128xf32>
    %187 = arith.negf %186 : vector<8x128xf32>
    %188 = math.exp %187 : vector<8x128xf32>
    %cst_77 = arith.constant 1.000000e+00 : f32
    %189 = vector.broadcast %cst_77 : f32 to vector<8x128xf32>
    %190 = arith.addf %189, %188 : vector<8x128xf32>
    %191 = arith.divf %189, %190 : vector<8x128xf32>
    %192 = vector.extract_strided_slice %185 {offsets = [0, 128], sizes = [8, 128], strides = [1, 1]} : vector<8x512xf32> to vector<8x128xf32>
    %193 = arith.negf %192 : vector<8x128xf32>
    %194 = math.exp %193 : vector<8x128xf32>
    %cst_78 = arith.constant 1.000000e+00 : f32
    %195 = vector.broadcast %cst_78 : f32 to vector<8x128xf32>
    %196 = arith.addf %195, %194 : vector<8x128xf32>
    %197 = arith.divf %195, %196 : vector<8x128xf32>
    %198 = vector.extract_strided_slice %185 {offsets = [0, 256], sizes = [8, 128], strides = [1, 1]} : vector<8x512xf32> to vector<8x128xf32>
    %199 = math.tanh %198 : vector<8x128xf32>
    %200 = vector.extract_strided_slice %185 {offsets = [0, 384], sizes = [8, 128], strides = [1, 1]} : vector<8x512xf32> to vector<8x128xf32>
    %201 = arith.negf %200 : vector<8x128xf32>
    %202 = math.exp %201 : vector<8x128xf32>
    %cst_79 = arith.constant 1.000000e+00 : f32
    %203 = vector.broadcast %cst_79 : f32 to vector<8x128xf32>
    %204 = arith.addf %203, %202 : vector<8x128xf32>
    %205 = arith.divf %203, %204 : vector<8x128xf32>
    %206 = arith.mulf %197, %178 : vector<8x128xf32>
    %207 = arith.mulf %191, %199 : vector<8x128xf32>
    %208 = arith.addf %206, %207 : vector<8x128xf32>
    %209 = math.tanh %208 : vector<8x128xf32>
    %210 = arith.mulf %205, %209 : vector<8x128xf32>
    %211 = arith.select %176, %210, %177 : vector<8x128xi1>, vector<8x128xf32>
    %c0_80 = arith.constant 0 : index
    %c0_81 = arith.constant 0 : index
    %212 = vector.load %arg14[%c0_80, %c0_81] : memref<8x128xf32, #tpu.memory_space<vmem>>, vector<8x128xf32>
    tpu.vector_store %arg14[%c0_80, %c0_81], %211 {strides = array<i32>} : memref<8x128xf32, #tpu.memory_space<vmem>>, vector<8x128xf32>,
    %213 = arith.select %176, %208, %178 : vector<8x128xi1>, vector<8x128xf32>
    %c0_82 = arith.constant 0 : index
    %c0_83 = arith.constant 0 : index
    %214 = vector.load %arg15[%c0_82, %c0_83] : memref<8x128xf32, #tpu.memory_space<vmem>>, vector<8x128xf32>
    tpu.vector_store %arg15[%c0_82, %c0_83], %213 {strides = array<i32>} : memref<8x128xf32, #tpu.memory_space<vmem>>, vector<8x128xf32>,
    %c0_84 = arith.constant 0 : index
    %c0_85 = arith.constant 0 : index
    %215 = vector.load %arg16[%c0_84, %c0_85] : memref<8x128xf32, #tpu.memory_space<vmem>>, vector<8x128xf32>
    %c0_86 = arith.constant 0 : index
    %c0_87 = arith.constant 0 : index
    %216 = vector.load %arg17[%c0_86, %c0_87] : memref<8x128xf32, #tpu.memory_space<vmem>>, vector<8x128xf32>
    %217 = arith.truncf %211 : vector<8x128xf32> to vector<8x128xbf16>
    %218 = arith.truncf %215 : vector<8x128xf32> to vector<8x128xbf16>
    %219 = tpu.concatenate %217, %218 in 1 : vector<8x128xbf16>, vector<8x128xbf16> -> vector<8x256xbf16>
    %cst_88 = arith.constant dense<0.000000e+00> : vector<8x512xf32>
    %220 = tpu.matmul %219, %12, %cst_88 {dimension_numbers = #tpu.dot_dimension_numbers<[1], [0], [0], [1], [0, 0, 1, 1], [], []>} : vector<8x256xbf16>, vector<256x512xbf16>, vector<8x512xf32> -> vector<8x512xf32>
    %221 = vector.broadcast %13 : vector<1x512xf32> to vector<8x512xf32>
    %222 = arith.addf %220, %221 : vector<8x512xf32>
    %223 = vector.extract_strided_slice %222 {offsets = [0, 0], sizes = [8, 128], strides = [1, 1]} : vector<8x512xf32> to vector<8x128xf32>
    %224 = arith.negf %223 : vector<8x128xf32>
    %225 = math.exp %224 : vector<8x128xf32>
    %cst_89 = arith.constant 1.000000e+00 : f32
    %226 = vector.broadcast %cst_89 : f32 to vector<8x128xf32>
    %227 = arith.addf %226, %225 : vector<8x128xf32>
    %228 = arith.divf %226, %227 : vector<8x128xf32>
    %229 = vector.extract_strided_slice %222 {offsets = [0, 128], sizes = [8, 128], strides = [1, 1]} : vector<8x512xf32> to vector<8x128xf32>
    %230 = arith.negf %229 : vector<8x128xf32>
    %231 = math.exp %230 : vector<8x128xf32>
    %cst_90 = arith.constant 1.000000e+00 : f32
    %232 = vector.broadcast %cst_90 : f32 to vector<8x128xf32>
    %233 = arith.addf %232, %231 : vector<8x128xf32>
    %234 = arith.divf %232, %233 : vector<8x128xf32>
    %235 = vector.extract_strided_slice %222 {offsets = [0, 256], sizes = [8, 128], strides = [1, 1]} : vector<8x512xf32> to vector<8x128xf32>
    %236 = math.tanh %235 : vector<8x128xf32>
    %237 = vector.extract_strided_slice %222 {offsets = [0, 384], sizes = [8, 128], strides = [1, 1]} : vector<8x512xf32> to vector<8x128xf32>
    %238 = arith.negf %237 : vector<8x128xf32>
    %239 = math.exp %238 : vector<8x128xf32>
    %cst_91 = arith.constant 1.000000e+00 : f32
    %240 = vector.broadcast %cst_91 : f32 to vector<8x128xf32>
    %241 = arith.addf %240, %239 : vector<8x128xf32>
    %242 = arith.divf %240, %241 : vector<8x128xf32>
    %243 = arith.mulf %234, %216 : vector<8x128xf32>
    %244 = arith.mulf %228, %236 : vector<8x128xf32>
    %245 = arith.addf %243, %244 : vector<8x128xf32>
    %246 = math.tanh %245 : vector<8x128xf32>
    %247 = arith.mulf %242, %246 : vector<8x128xf32>
    %248 = arith.select %176, %247, %215 : vector<8x128xi1>, vector<8x128xf32>
    %c0_92 = arith.constant 0 : index
    %c0_93 = arith.constant 0 : index
    %249 = vector.load %arg16[%c0_92, %c0_93] : memref<8x128xf32, #tpu.memory_space<vmem>>, vector<8x128xf32>
    tpu.vector_store %arg16[%c0_92, %c0_93], %248 {strides = array<i32>} : memref<8x128xf32, #tpu.memory_space<vmem>>, vector<8x128xf32>,
    %250 = arith.select %176, %245, %216 : vector<8x128xi1>, vector<8x128xf32>
    %c0_94 = arith.constant 0 : index
    %c0_95 = arith.constant 0 : index
    %251 = vector.load %arg17[%c0_94, %c0_95] : memref<8x128xf32, #tpu.memory_space<vmem>>, vector<8x128xf32>
    tpu.vector_store %arg17[%c0_94, %c0_95], %250 {strides = array<i32>} : memref<8x128xf32, #tpu.memory_space<vmem>>, vector<8x128xf32>,
    %c3_i32 = arith.constant 3 : i32
    %252 = arith.addi %17, %c3_i32 : i32
    %253 = vector.broadcast %252 : i32 to vector<8x128xi32>
    %254 = arith.cmpi slt, %253, %16 : vector<8x128xi32>
    %c0_96 = arith.constant 0 : index
    %c0_97 = arith.constant 0 : index
    %255 = vector.load %arg14[%c0_96, %c0_97] : memref<8x128xf32, #tpu.memory_space<vmem>>, vector<8x128xf32>
    %c0_98 = arith.constant 0 : index
    %c0_99 = arith.constant 0 : index
    %256 = vector.load %arg15[%c0_98, %c0_99] : memref<8x128xf32, #tpu.memory_space<vmem>>, vector<8x128xf32>
    %c8_i32_100 = arith.constant 8 : i32
    %257 = arith.muli %c3_i32, %c8_i32_100 : i32
    %258 = tpu.assume_multiple %257, 8 : i32
    %259 = arith.index_cast %258 : i32 to index
    %c0_101 = arith.constant 0 : index
    %260 = vector.load %arg13[%259, %c0_101] : memref<64x512xf32, #tpu.memory_space<vmem>>, vector<8x512xf32>
    %261 = arith.truncf %255 : vector<8x128xf32> to vector<8x128xbf16>
    %cst_102 = arith.constant dense<0.000000e+00> : vector<8x512xf32>
    %262 = tpu.matmul %261, %11, %cst_102 {dimension_numbers = #tpu.dot_dimension_numbers<[1], [0], [0], [1], [0, 0, 1, 1], [], []>} : vector<8x128xbf16>, vector<128x512xbf16>, vector<8x512xf32> -> vector<8x512xf32>
    %263 = arith.addf %260, %262 : vector<8x512xf32>
    %264 = vector.extract_strided_slice %263 {offsets = [0, 0], sizes = [8, 128], strides = [1, 1]} : vector<8x512xf32> to vector<8x128xf32>
    %265 = arith.negf %264 : vector<8x128xf32>
    %266 = math.exp %265 : vector<8x128xf32>
    %cst_103 = arith.constant 1.000000e+00 : f32
    %267 = vector.broadcast %cst_103 : f32 to vector<8x128xf32>
    %268 = arith.addf %267, %266 : vector<8x128xf32>
    %269 = arith.divf %267, %268 : vector<8x128xf32>
    %270 = vector.extract_strided_slice %263 {offsets = [0, 128], sizes = [8, 128], strides = [1, 1]} : vector<8x512xf32> to vector<8x128xf32>
    %271 = arith.negf %270 : vector<8x128xf32>
    %272 = math.exp %271 : vector<8x128xf32>
    %cst_104 = arith.constant 1.000000e+00 : f32
    %273 = vector.broadcast %cst_104 : f32 to vector<8x128xf32>
    %274 = arith.addf %273, %272 : vector<8x128xf32>
    %275 = arith.divf %273, %274 : vector<8x128xf32>
    %276 = vector.extract_strided_slice %263 {offsets = [0, 256], sizes = [8, 128], strides = [1, 1]} : vector<8x512xf32> to vector<8x128xf32>
    %277 = math.tanh %276 : vector<8x128xf32>
    %278 = vector.extract_strided_slice %263 {offsets = [0, 384], sizes = [8, 128], strides = [1, 1]} : vector<8x512xf32> to vector<8x128xf32>
    %279 = arith.negf %278 : vector<8x128xf32>
    %280 = math.exp %279 : vector<8x128xf32>
    %cst_105 = arith.constant 1.000000e+00 : f32
    %281 = vector.broadcast %cst_105 : f32 to vector<8x128xf32>
    %282 = arith.addf %281, %280 : vector<8x128xf32>
    %283 = arith.divf %281, %282 : vector<8x128xf32>
    %284 = arith.mulf %275, %256 : vector<8x128xf32>
    %285 = arith.mulf %269, %277 : vector<8x128xf32>
    %286 = arith.addf %284, %285 : vector<8x128xf32>
    %287 = math.tanh %286 : vector<8x128xf32>
    %288 = arith.mulf %283, %287 : vector<8x128xf32>
    %289 = arith.select %254, %288, %255 : vector<8x128xi1>, vector<8x128xf32>
    %c0_106 = arith.constant 0 : index
    %c0_107 = arith.constant 0 : index
    %290 = vector.load %arg14[%c0_106, %c0_107] : memref<8x128xf32, #tpu.memory_space<vmem>>, vector<8x128xf32>
    tpu.vector_store %arg14[%c0_106, %c0_107], %289 {strides = array<i32>} : memref<8x128xf32, #tpu.memory_space<vmem>>, vector<8x128xf32>,
    %291 = arith.select %254, %286, %256 : vector<8x128xi1>, vector<8x128xf32>
    %c0_108 = arith.constant 0 : index
    %c0_109 = arith.constant 0 : index
    %292 = vector.load %arg15[%c0_108, %c0_109] : memref<8x128xf32, #tpu.memory_space<vmem>>, vector<8x128xf32>
    tpu.vector_store %arg15[%c0_108, %c0_109], %291 {strides = array<i32>} : memref<8x128xf32, #tpu.memory_space<vmem>>, vector<8x128xf32>,
    %c0_110 = arith.constant 0 : index
    %c0_111 = arith.constant 0 : index
    %293 = vector.load %arg16[%c0_110, %c0_111] : memref<8x128xf32, #tpu.memory_space<vmem>>, vector<8x128xf32>
    %c0_112 = arith.constant 0 : index
    %c0_113 = arith.constant 0 : index
    %294 = vector.load %arg17[%c0_112, %c0_113] : memref<8x128xf32, #tpu.memory_space<vmem>>, vector<8x128xf32>
    %295 = arith.truncf %289 : vector<8x128xf32> to vector<8x128xbf16>
    %296 = arith.truncf %293 : vector<8x128xf32> to vector<8x128xbf16>
    %297 = tpu.concatenate %295, %296 in 1 : vector<8x128xbf16>, vector<8x128xbf16> -> vector<8x256xbf16>
    %cst_114 = arith.constant dense<0.000000e+00> : vector<8x512xf32>
    %298 = tpu.matmul %297, %12, %cst_114 {dimension_numbers = #tpu.dot_dimension_numbers<[1], [0], [0], [1], [0, 0, 1, 1], [], []>} : vector<8x256xbf16>, vector<256x512xbf16>, vector<8x512xf32> -> vector<8x512xf32>
    %299 = vector.broadcast %13 : vector<1x512xf32> to vector<8x512xf32>
    %300 = arith.addf %298, %299 : vector<8x512xf32>
    %301 = vector.extract_strided_slice %300 {offsets = [0, 0], sizes = [8, 128], strides = [1, 1]} : vector<8x512xf32> to vector<8x128xf32>
    %302 = arith.negf %301 : vector<8x128xf32>
    %303 = math.exp %302 : vector<8x128xf32>
    %cst_115 = arith.constant 1.000000e+00 : f32
    %304 = vector.broadcast %cst_115 : f32 to vector<8x128xf32>
    %305 = arith.addf %304, %303 : vector<8x128xf32>
    %306 = arith.divf %304, %305 : vector<8x128xf32>
    %307 = vector.extract_strided_slice %300 {offsets = [0, 128], sizes = [8, 128], strides = [1, 1]} : vector<8x512xf32> to vector<8x128xf32>
    %308 = arith.negf %307 : vector<8x128xf32>
    %309 = math.exp %308 : vector<8x128xf32>
    %cst_116 = arith.constant 1.000000e+00 : f32
    %310 = vector.broadcast %cst_116 : f32 to vector<8x128xf32>
    %311 = arith.addf %310, %309 : vector<8x128xf32>
    %312 = arith.divf %310, %311 : vector<8x128xf32>
    %313 = vector.extract_strided_slice %300 {offsets = [0, 256], sizes = [8, 128], strides = [1, 1]} : vector<8x512xf32> to vector<8x128xf32>
    %314 = math.tanh %313 : vector<8x128xf32>
    %315 = vector.extract_strided_slice %300 {offsets = [0, 384], sizes = [8, 128], strides = [1, 1]} : vector<8x512xf32> to vector<8x128xf32>
    %316 = arith.negf %315 : vector<8x128xf32>
    %317 = math.exp %316 : vector<8x128xf32>
    %cst_117 = arith.constant 1.000000e+00 : f32
    %318 = vector.broadcast %cst_117 : f32 to vector<8x128xf32>
    %319 = arith.addf %318, %317 : vector<8x128xf32>
    %320 = arith.divf %318, %319 : vector<8x128xf32>
    %321 = arith.mulf %312, %294 : vector<8x128xf32>
    %322 = arith.mulf %306, %314 : vector<8x128xf32>
    %323 = arith.addf %321, %322 : vector<8x128xf32>
    %324 = math.tanh %323 : vector<8x128xf32>
    %325 = arith.mulf %320, %324 : vector<8x128xf32>
    %326 = arith.select %254, %325, %293 : vector<8x128xi1>, vector<8x128xf32>
    %c0_118 = arith.constant 0 : index
    %c0_119 = arith.constant 0 : index
    %327 = vector.load %arg16[%c0_118, %c0_119] : memref<8x128xf32, #tpu.memory_space<vmem>>, vector<8x128xf32>
    tpu.vector_store %arg16[%c0_118, %c0_119], %326 {strides = array<i32>} : memref<8x128xf32, #tpu.memory_space<vmem>>, vector<8x128xf32>,
    %328 = arith.select %254, %323, %294 : vector<8x128xi1>, vector<8x128xf32>
    %c0_120 = arith.constant 0 : index
    %c0_121 = arith.constant 0 : index
    %329 = vector.load %arg17[%c0_120, %c0_121] : memref<8x128xf32, #tpu.memory_space<vmem>>, vector<8x128xf32>
    tpu.vector_store %arg17[%c0_120, %c0_121], %328 {strides = array<i32>} : memref<8x128xf32, #tpu.memory_space<vmem>>, vector<8x128xf32>,
    %c4_i32 = arith.constant 4 : i32
    %330 = arith.addi %17, %c4_i32 : i32
    %331 = vector.broadcast %330 : i32 to vector<8x128xi32>
    %332 = arith.cmpi slt, %331, %16 : vector<8x128xi32>
    %c0_122 = arith.constant 0 : index
    %c0_123 = arith.constant 0 : index
    %333 = vector.load %arg14[%c0_122, %c0_123] : memref<8x128xf32, #tpu.memory_space<vmem>>, vector<8x128xf32>
    %c0_124 = arith.constant 0 : index
    %c0_125 = arith.constant 0 : index
    %334 = vector.load %arg15[%c0_124, %c0_125] : memref<8x128xf32, #tpu.memory_space<vmem>>, vector<8x128xf32>
    %c8_i32_126 = arith.constant 8 : i32
    %335 = arith.muli %c4_i32, %c8_i32_126 : i32
    %336 = tpu.assume_multiple %335, 8 : i32
    %337 = arith.index_cast %336 : i32 to index
    %c0_127 = arith.constant 0 : index
    %338 = vector.load %arg13[%337, %c0_127] : memref<64x512xf32, #tpu.memory_space<vmem>>, vector<8x512xf32>
    %339 = arith.truncf %333 : vector<8x128xf32> to vector<8x128xbf16>
    %cst_128 = arith.constant dense<0.000000e+00> : vector<8x512xf32>
    %340 = tpu.matmul %339, %11, %cst_128 {dimension_numbers = #tpu.dot_dimension_numbers<[1], [0], [0], [1], [0, 0, 1, 1], [], []>} : vector<8x128xbf16>, vector<128x512xbf16>, vector<8x512xf32> -> vector<8x512xf32>
    %341 = arith.addf %338, %340 : vector<8x512xf32>
    %342 = vector.extract_strided_slice %341 {offsets = [0, 0], sizes = [8, 128], strides = [1, 1]} : vector<8x512xf32> to vector<8x128xf32>
    %343 = arith.negf %342 : vector<8x128xf32>
    %344 = math.exp %343 : vector<8x128xf32>
    %cst_129 = arith.constant 1.000000e+00 : f32
    %345 = vector.broadcast %cst_129 : f32 to vector<8x128xf32>
    %346 = arith.addf %345, %344 : vector<8x128xf32>
    %347 = arith.divf %345, %346 : vector<8x128xf32>
    %348 = vector.extract_strided_slice %341 {offsets = [0, 128], sizes = [8, 128], strides = [1, 1]} : vector<8x512xf32> to vector<8x128xf32>
    %349 = arith.negf %348 : vector<8x128xf32>
    %350 = math.exp %349 : vector<8x128xf32>
    %cst_130 = arith.constant 1.000000e+00 : f32
    %351 = vector.broadcast %cst_130 : f32 to vector<8x128xf32>
    %352 = arith.addf %351, %350 : vector<8x128xf32>
    %353 = arith.divf %351, %352 : vector<8x128xf32>
    %354 = vector.extract_strided_slice %341 {offsets = [0, 256], sizes = [8, 128], strides = [1, 1]} : vector<8x512xf32> to vector<8x128xf32>
    %355 = math.tanh %354 : vector<8x128xf32>
    %356 = vector.extract_strided_slice %341 {offsets = [0, 384], sizes = [8, 128], strides = [1, 1]} : vector<8x512xf32> to vector<8x128xf32>
    %357 = arith.negf %356 : vector<8x128xf32>
    %358 = math.exp %357 : vector<8x128xf32>
    %cst_131 = arith.constant 1.000000e+00 : f32
    %359 = vector.broadcast %cst_131 : f32 to vector<8x128xf32>
    %360 = arith.addf %359, %358 : vector<8x128xf32>
    %361 = arith.divf %359, %360 : vector<8x128xf32>
    %362 = arith.mulf %353, %334 : vector<8x128xf32>
    %363 = arith.mulf %347, %355 : vector<8x128xf32>
    %364 = arith.addf %362, %363 : vector<8x128xf32>
    %365 = math.tanh %364 : vector<8x128xf32>
    %366 = arith.mulf %361, %365 : vector<8x128xf32>
    %367 = arith.select %332, %366, %333 : vector<8x128xi1>, vector<8x128xf32>
    %c0_132 = arith.constant 0 : index
    %c0_133 = arith.constant 0 : index
    %368 = vector.load %arg14[%c0_132, %c0_133] : memref<8x128xf32, #tpu.memory_space<vmem>>, vector<8x128xf32>
    tpu.vector_store %arg14[%c0_132, %c0_133], %367 {strides = array<i32>} : memref<8x128xf32, #tpu.memory_space<vmem>>, vector<8x128xf32>,
    %369 = arith.select %332, %364, %334 : vector<8x128xi1>, vector<8x128xf32>
    %c0_134 = arith.constant 0 : index
    %c0_135 = arith.constant 0 : index
    %370 = vector.load %arg15[%c0_134, %c0_135] : memref<8x128xf32, #tpu.memory_space<vmem>>, vector<8x128xf32>
    tpu.vector_store %arg15[%c0_134, %c0_135], %369 {strides = array<i32>} : memref<8x128xf32, #tpu.memory_space<vmem>>, vector<8x128xf32>,
    %c0_136 = arith.constant 0 : index
    %c0_137 = arith.constant 0 : index
    %371 = vector.load %arg16[%c0_136, %c0_137] : memref<8x128xf32, #tpu.memory_space<vmem>>, vector<8x128xf32>
    %c0_138 = arith.constant 0 : index
    %c0_139 = arith.constant 0 : index
    %372 = vector.load %arg17[%c0_138, %c0_139] : memref<8x128xf32, #tpu.memory_space<vmem>>, vector<8x128xf32>
    %373 = arith.truncf %367 : vector<8x128xf32> to vector<8x128xbf16>
    %374 = arith.truncf %371 : vector<8x128xf32> to vector<8x128xbf16>
    %375 = tpu.concatenate %373, %374 in 1 : vector<8x128xbf16>, vector<8x128xbf16> -> vector<8x256xbf16>
    %cst_140 = arith.constant dense<0.000000e+00> : vector<8x512xf32>
    %376 = tpu.matmul %375, %12, %cst_140 {dimension_numbers = #tpu.dot_dimension_numbers<[1], [0], [0], [1], [0, 0, 1, 1], [], []>} : vector<8x256xbf16>, vector<256x512xbf16>, vector<8x512xf32> -> vector<8x512xf32>
    %377 = vector.broadcast %13 : vector<1x512xf32> to vector<8x512xf32>
    %378 = arith.addf %376, %377 : vector<8x512xf32>
    %379 = vector.extract_strided_slice %378 {offsets = [0, 0], sizes = [8, 128], strides = [1, 1]} : vector<8x512xf32> to vector<8x128xf32>
    %380 = arith.negf %379 : vector<8x128xf32>
    %381 = math.exp %380 : vector<8x128xf32>
    %cst_141 = arith.constant 1.000000e+00 : f32
    %382 = vector.broadcast %cst_141 : f32 to vector<8x128xf32>
    %383 = arith.addf %382, %381 : vector<8x128xf32>
    %384 = arith.divf %382, %383 : vector<8x128xf32>
    %385 = vector.extract_strided_slice %378 {offsets = [0, 128], sizes = [8, 128], strides = [1, 1]} : vector<8x512xf32> to vector<8x128xf32>
    %386 = arith.negf %385 : vector<8x128xf32>
    %387 = math.exp %386 : vector<8x128xf32>
    %cst_142 = arith.constant 1.000000e+00 : f32
    %388 = vector.broadcast %cst_142 : f32 to vector<8x128xf32>
    %389 = arith.addf %388, %387 : vector<8x128xf32>
    %390 = arith.divf %388, %389 : vector<8x128xf32>
    %391 = vector.extract_strided_slice %378 {offsets = [0, 256], sizes = [8, 128], strides = [1, 1]} : vector<8x512xf32> to vector<8x128xf32>
    %392 = math.tanh %391 : vector<8x128xf32>
    %393 = vector.extract_strided_slice %378 {offsets = [0, 384], sizes = [8, 128], strides = [1, 1]} : vector<8x512xf32> to vector<8x128xf32>
    %394 = arith.negf %393 : vector<8x128xf32>
    %395 = math.exp %394 : vector<8x128xf32>
    %cst_143 = arith.constant 1.000000e+00 : f32
    %396 = vector.broadcast %cst_143 : f32 to vector<8x128xf32>
    %397 = arith.addf %396, %395 : vector<8x128xf32>
    %398 = arith.divf %396, %397 : vector<8x128xf32>
    %399 = arith.mulf %390, %372 : vector<8x128xf32>
    %400 = arith.mulf %384, %392 : vector<8x128xf32>
    %401 = arith.addf %399, %400 : vector<8x128xf32>
    %402 = math.tanh %401 : vector<8x128xf32>
    %403 = arith.mulf %398, %402 : vector<8x128xf32>
    %404 = arith.select %332, %403, %371 : vector<8x128xi1>, vector<8x128xf32>
    %c0_144 = arith.constant 0 : index
    %c0_145 = arith.constant 0 : index
    %405 = vector.load %arg16[%c0_144, %c0_145] : memref<8x128xf32, #tpu.memory_space<vmem>>, vector<8x128xf32>
    tpu.vector_store %arg16[%c0_144, %c0_145], %404 {strides = array<i32>} : memref<8x128xf32, #tpu.memory_space<vmem>>, vector<8x128xf32>,
    %406 = arith.select %332, %401, %372 : vector<8x128xi1>, vector<8x128xf32>
    %c0_146 = arith.constant 0 : index
    %c0_147 = arith.constant 0 : index
    %407 = vector.load %arg17[%c0_146, %c0_147] : memref<8x128xf32, #tpu.memory_space<vmem>>, vector<8x128xf32>
    tpu.vector_store %arg17[%c0_146, %c0_147], %406 {strides = array<i32>} : memref<8x128xf32, #tpu.memory_space<vmem>>, vector<8x128xf32>,
    %c5_i32 = arith.constant 5 : i32
    %408 = arith.addi %17, %c5_i32 : i32
    %409 = vector.broadcast %408 : i32 to vector<8x128xi32>
    %410 = arith.cmpi slt, %409, %16 : vector<8x128xi32>
    %c0_148 = arith.constant 0 : index
    %c0_149 = arith.constant 0 : index
    %411 = vector.load %arg14[%c0_148, %c0_149] : memref<8x128xf32, #tpu.memory_space<vmem>>, vector<8x128xf32>
    %c0_150 = arith.constant 0 : index
    %c0_151 = arith.constant 0 : index
    %412 = vector.load %arg15[%c0_150, %c0_151] : memref<8x128xf32, #tpu.memory_space<vmem>>, vector<8x128xf32>
    %c8_i32_152 = arith.constant 8 : i32
    %413 = arith.muli %c5_i32, %c8_i32_152 : i32
    %414 = tpu.assume_multiple %413, 8 : i32
    %415 = arith.index_cast %414 : i32 to index
    %c0_153 = arith.constant 0 : index
    %416 = vector.load %arg13[%415, %c0_153] : memref<64x512xf32, #tpu.memory_space<vmem>>, vector<8x512xf32>
    %417 = arith.truncf %411 : vector<8x128xf32> to vector<8x128xbf16>
    %cst_154 = arith.constant dense<0.000000e+00> : vector<8x512xf32>
    %418 = tpu.matmul %417, %11, %cst_154 {dimension_numbers = #tpu.dot_dimension_numbers<[1], [0], [0], [1], [0, 0, 1, 1], [], []>} : vector<8x128xbf16>, vector<128x512xbf16>, vector<8x512xf32> -> vector<8x512xf32>
    %419 = arith.addf %416, %418 : vector<8x512xf32>
    %420 = vector.extract_strided_slice %419 {offsets = [0, 0], sizes = [8, 128], strides = [1, 1]} : vector<8x512xf32> to vector<8x128xf32>
    %421 = arith.negf %420 : vector<8x128xf32>
    %422 = math.exp %421 : vector<8x128xf32>
    %cst_155 = arith.constant 1.000000e+00 : f32
    %423 = vector.broadcast %cst_155 : f32 to vector<8x128xf32>
    %424 = arith.addf %423, %422 : vector<8x128xf32>
    %425 = arith.divf %423, %424 : vector<8x128xf32>
    %426 = vector.extract_strided_slice %419 {offsets = [0, 128], sizes = [8, 128], strides = [1, 1]} : vector<8x512xf32> to vector<8x128xf32>
    %427 = arith.negf %426 : vector<8x128xf32>
    %428 = math.exp %427 : vector<8x128xf32>
    %cst_156 = arith.constant 1.000000e+00 : f32
    %429 = vector.broadcast %cst_156 : f32 to vector<8x128xf32>
    %430 = arith.addf %429, %428 : vector<8x128xf32>
    %431 = arith.divf %429, %430 : vector<8x128xf32>
    %432 = vector.extract_strided_slice %419 {offsets = [0, 256], sizes = [8, 128], strides = [1, 1]} : vector<8x512xf32> to vector<8x128xf32>
    %433 = math.tanh %432 : vector<8x128xf32>
    %434 = vector.extract_strided_slice %419 {offsets = [0, 384], sizes = [8, 128], strides = [1, 1]} : vector<8x512xf32> to vector<8x128xf32>
    %435 = arith.negf %434 : vector<8x128xf32>
    %436 = math.exp %435 : vector<8x128xf32>
    %cst_157 = arith.constant 1.000000e+00 : f32
    %437 = vector.broadcast %cst_157 : f32 to vector<8x128xf32>
    %438 = arith.addf %437, %436 : vector<8x128xf32>
    %439 = arith.divf %437, %438 : vector<8x128xf32>
    %440 = arith.mulf %431, %412 : vector<8x128xf32>
    %441 = arith.mulf %425, %433 : vector<8x128xf32>
    %442 = arith.addf %440, %441 : vector<8x128xf32>
    %443 = math.tanh %442 : vector<8x128xf32>
    %444 = arith.mulf %439, %443 : vector<8x128xf32>
    %445 = arith.select %410, %444, %411 : vector<8x128xi1>, vector<8x128xf32>
    %c0_158 = arith.constant 0 : index
    %c0_159 = arith.constant 0 : index
    %446 = vector.load %arg14[%c0_158, %c0_159] : memref<8x128xf32, #tpu.memory_space<vmem>>, vector<8x128xf32>
    tpu.vector_store %arg14[%c0_158, %c0_159], %445 {strides = array<i32>} : memref<8x128xf32, #tpu.memory_space<vmem>>, vector<8x128xf32>,
    %447 = arith.select %410, %442, %412 : vector<8x128xi1>, vector<8x128xf32>
    %c0_160 = arith.constant 0 : index
    %c0_161 = arith.constant 0 : index
    %448 = vector.load %arg15[%c0_160, %c0_161] : memref<8x128xf32, #tpu.memory_space<vmem>>, vector<8x128xf32>
    tpu.vector_store %arg15[%c0_160, %c0_161], %447 {strides = array<i32>} : memref<8x128xf32, #tpu.memory_space<vmem>>, vector<8x128xf32>,
    %c0_162 = arith.constant 0 : index
    %c0_163 = arith.constant 0 : index
    %449 = vector.load %arg16[%c0_162, %c0_163] : memref<8x128xf32, #tpu.memory_space<vmem>>, vector<8x128xf32>
    %c0_164 = arith.constant 0 : index
    %c0_165 = arith.constant 0 : index
    %450 = vector.load %arg17[%c0_164, %c0_165] : memref<8x128xf32, #tpu.memory_space<vmem>>, vector<8x128xf32>
    %451 = arith.truncf %445 : vector<8x128xf32> to vector<8x128xbf16>
    %452 = arith.truncf %449 : vector<8x128xf32> to vector<8x128xbf16>
    %453 = tpu.concatenate %451, %452 in 1 : vector<8x128xbf16>, vector<8x128xbf16> -> vector<8x256xbf16>
    %cst_166 = arith.constant dense<0.000000e+00> : vector<8x512xf32>
    %454 = tpu.matmul %453, %12, %cst_166 {dimension_numbers = #tpu.dot_dimension_numbers<[1], [0], [0], [1], [0, 0, 1, 1], [], []>} : vector<8x256xbf16>, vector<256x512xbf16>, vector<8x512xf32> -> vector<8x512xf32>
    %455 = vector.broadcast %13 : vector<1x512xf32> to vector<8x512xf32>
    %456 = arith.addf %454, %455 : vector<8x512xf32>
    %457 = vector.extract_strided_slice %456 {offsets = [0, 0], sizes = [8, 128], strides = [1, 1]} : vector<8x512xf32> to vector<8x128xf32>
    %458 = arith.negf %457 : vector<8x128xf32>
    %459 = math.exp %458 : vector<8x128xf32>
    %cst_167 = arith.constant 1.000000e+00 : f32
    %460 = vector.broadcast %cst_167 : f32 to vector<8x128xf32>
    %461 = arith.addf %460, %459 : vector<8x128xf32>
    %462 = arith.divf %460, %461 : vector<8x128xf32>
    %463 = vector.extract_strided_slice %456 {offsets = [0, 128], sizes = [8, 128], strides = [1, 1]} : vector<8x512xf32> to vector<8x128xf32>
    %464 = arith.negf %463 : vector<8x128xf32>
    %465 = math.exp %464 : vector<8x128xf32>
    %cst_168 = arith.constant 1.000000e+00 : f32
    %466 = vector.broadcast %cst_168 : f32 to vector<8x128xf32>
    %467 = arith.addf %466, %465 : vector<8x128xf32>
    %468 = arith.divf %466, %467 : vector<8x128xf32>
    %469 = vector.extract_strided_slice %456 {offsets = [0, 256], sizes = [8, 128], strides = [1, 1]} : vector<8x512xf32> to vector<8x128xf32>
    %470 = math.tanh %469 : vector<8x128xf32>
    %471 = vector.extract_strided_slice %456 {offsets = [0, 384], sizes = [8, 128], strides = [1, 1]} : vector<8x512xf32> to vector<8x128xf32>
    %472 = arith.negf %471 : vector<8x128xf32>
    %473 = math.exp %472 : vector<8x128xf32>
    %cst_169 = arith.constant 1.000000e+00 : f32
    %474 = vector.broadcast %cst_169 : f32 to vector<8x128xf32>
    %475 = arith.addf %474, %473 : vector<8x128xf32>
    %476 = arith.divf %474, %475 : vector<8x128xf32>
    %477 = arith.mulf %468, %450 : vector<8x128xf32>
    %478 = arith.mulf %462, %470 : vector<8x128xf32>
    %479 = arith.addf %477, %478 : vector<8x128xf32>
    %480 = math.tanh %479 : vector<8x128xf32>
    %481 = arith.mulf %476, %480 : vector<8x128xf32>
    %482 = arith.select %410, %481, %449 : vector<8x128xi1>, vector<8x128xf32>
    %c0_170 = arith.constant 0 : index
    %c0_171 = arith.constant 0 : index
    %483 = vector.load %arg16[%c0_170, %c0_171] : memref<8x128xf32, #tpu.memory_space<vmem>>, vector<8x128xf32>
    tpu.vector_store %arg16[%c0_170, %c0_171], %482 {strides = array<i32>} : memref<8x128xf32, #tpu.memory_space<vmem>>, vector<8x128xf32>,
    %484 = arith.select %410, %479, %450 : vector<8x128xi1>, vector<8x128xf32>
    %c0_172 = arith.constant 0 : index
    %c0_173 = arith.constant 0 : index
    %485 = vector.load %arg17[%c0_172, %c0_173] : memref<8x128xf32, #tpu.memory_space<vmem>>, vector<8x128xf32>
    tpu.vector_store %arg17[%c0_172, %c0_173], %484 {strides = array<i32>} : memref<8x128xf32, #tpu.memory_space<vmem>>, vector<8x128xf32>,
    %c6_i32 = arith.constant 6 : i32
    %486 = arith.addi %17, %c6_i32 : i32
    %487 = vector.broadcast %486 : i32 to vector<8x128xi32>
    %488 = arith.cmpi slt, %487, %16 : vector<8x128xi32>
    %c0_174 = arith.constant 0 : index
    %c0_175 = arith.constant 0 : index
    %489 = vector.load %arg14[%c0_174, %c0_175] : memref<8x128xf32, #tpu.memory_space<vmem>>, vector<8x128xf32>
    %c0_176 = arith.constant 0 : index
    %c0_177 = arith.constant 0 : index
    %490 = vector.load %arg15[%c0_176, %c0_177] : memref<8x128xf32, #tpu.memory_space<vmem>>, vector<8x128xf32>
    %c8_i32_178 = arith.constant 8 : i32
    %491 = arith.muli %c6_i32, %c8_i32_178 : i32
    %492 = tpu.assume_multiple %491, 8 : i32
    %493 = arith.index_cast %492 : i32 to index
    %c0_179 = arith.constant 0 : index
    %494 = vector.load %arg13[%493, %c0_179] : memref<64x512xf32, #tpu.memory_space<vmem>>, vector<8x512xf32>
    %495 = arith.truncf %489 : vector<8x128xf32> to vector<8x128xbf16>
    %cst_180 = arith.constant dense<0.000000e+00> : vector<8x512xf32>
    %496 = tpu.matmul %495, %11, %cst_180 {dimension_numbers = #tpu.dot_dimension_numbers<[1], [0], [0], [1], [0, 0, 1, 1], [], []>} : vector<8x128xbf16>, vector<128x512xbf16>, vector<8x512xf32> -> vector<8x512xf32>
    %497 = arith.addf %494, %496 : vector<8x512xf32>
    %498 = vector.extract_strided_slice %497 {offsets = [0, 0], sizes = [8, 128], strides = [1, 1]} : vector<8x512xf32> to vector<8x128xf32>
    %499 = arith.negf %498 : vector<8x128xf32>
    %500 = math.exp %499 : vector<8x128xf32>
    %cst_181 = arith.constant 1.000000e+00 : f32
    %501 = vector.broadcast %cst_181 : f32 to vector<8x128xf32>
    %502 = arith.addf %501, %500 : vector<8x128xf32>
    %503 = arith.divf %501, %502 : vector<8x128xf32>
    %504 = vector.extract_strided_slice %497 {offsets = [0, 128], sizes = [8, 128], strides = [1, 1]} : vector<8x512xf32> to vector<8x128xf32>
    %505 = arith.negf %504 : vector<8x128xf32>
    %506 = math.exp %505 : vector<8x128xf32>
    %cst_182 = arith.constant 1.000000e+00 : f32
    %507 = vector.broadcast %cst_182 : f32 to vector<8x128xf32>
    %508 = arith.addf %507, %506 : vector<8x128xf32>
    %509 = arith.divf %507, %508 : vector<8x128xf32>
    %510 = vector.extract_strided_slice %497 {offsets = [0, 256], sizes = [8, 128], strides = [1, 1]} : vector<8x512xf32> to vector<8x128xf32>
    %511 = math.tanh %510 : vector<8x128xf32>
    %512 = vector.extract_strided_slice %497 {offsets = [0, 384], sizes = [8, 128], strides = [1, 1]} : vector<8x512xf32> to vector<8x128xf32>
    %513 = arith.negf %512 : vector<8x128xf32>
    %514 = math.exp %513 : vector<8x128xf32>
    %cst_183 = arith.constant 1.000000e+00 : f32
    %515 = vector.broadcast %cst_183 : f32 to vector<8x128xf32>
    %516 = arith.addf %515, %514 : vector<8x128xf32>
    %517 = arith.divf %515, %516 : vector<8x128xf32>
    %518 = arith.mulf %509, %490 : vector<8x128xf32>
    %519 = arith.mulf %503, %511 : vector<8x128xf32>
    %520 = arith.addf %518, %519 : vector<8x128xf32>
    %521 = math.tanh %520 : vector<8x128xf32>
    %522 = arith.mulf %517, %521 : vector<8x128xf32>
    %523 = arith.select %488, %522, %489 : vector<8x128xi1>, vector<8x128xf32>
    %c0_184 = arith.constant 0 : index
    %c0_185 = arith.constant 0 : index
    %524 = vector.load %arg14[%c0_184, %c0_185] : memref<8x128xf32, #tpu.memory_space<vmem>>, vector<8x128xf32>
    tpu.vector_store %arg14[%c0_184, %c0_185], %523 {strides = array<i32>} : memref<8x128xf32, #tpu.memory_space<vmem>>, vector<8x128xf32>,
    %525 = arith.select %488, %520, %490 : vector<8x128xi1>, vector<8x128xf32>
    %c0_186 = arith.constant 0 : index
    %c0_187 = arith.constant 0 : index
    %526 = vector.load %arg15[%c0_186, %c0_187] : memref<8x128xf32, #tpu.memory_space<vmem>>, vector<8x128xf32>
    tpu.vector_store %arg15[%c0_186, %c0_187], %525 {strides = array<i32>} : memref<8x128xf32, #tpu.memory_space<vmem>>, vector<8x128xf32>,
    %c0_188 = arith.constant 0 : index
    %c0_189 = arith.constant 0 : index
    %527 = vector.load %arg16[%c0_188, %c0_189] : memref<8x128xf32, #tpu.memory_space<vmem>>, vector<8x128xf32>
    %c0_190 = arith.constant 0 : index
    %c0_191 = arith.constant 0 : index
    %528 = vector.load %arg17[%c0_190, %c0_191] : memref<8x128xf32, #tpu.memory_space<vmem>>, vector<8x128xf32>
    %529 = arith.truncf %523 : vector<8x128xf32> to vector<8x128xbf16>
    %530 = arith.truncf %527 : vector<8x128xf32> to vector<8x128xbf16>
    %531 = tpu.concatenate %529, %530 in 1 : vector<8x128xbf16>, vector<8x128xbf16> -> vector<8x256xbf16>
    %cst_192 = arith.constant dense<0.000000e+00> : vector<8x512xf32>
    %532 = tpu.matmul %531, %12, %cst_192 {dimension_numbers = #tpu.dot_dimension_numbers<[1], [0], [0], [1], [0, 0, 1, 1], [], []>} : vector<8x256xbf16>, vector<256x512xbf16>, vector<8x512xf32> -> vector<8x512xf32>
    %533 = vector.broadcast %13 : vector<1x512xf32> to vector<8x512xf32>
    %534 = arith.addf %532, %533 : vector<8x512xf32>
    %535 = vector.extract_strided_slice %534 {offsets = [0, 0], sizes = [8, 128], strides = [1, 1]} : vector<8x512xf32> to vector<8x128xf32>
    %536 = arith.negf %535 : vector<8x128xf32>
    %537 = math.exp %536 : vector<8x128xf32>
    %cst_193 = arith.constant 1.000000e+00 : f32
    %538 = vector.broadcast %cst_193 : f32 to vector<8x128xf32>
    %539 = arith.addf %538, %537 : vector<8x128xf32>
    %540 = arith.divf %538, %539 : vector<8x128xf32>
    %541 = vector.extract_strided_slice %534 {offsets = [0, 128], sizes = [8, 128], strides = [1, 1]} : vector<8x512xf32> to vector<8x128xf32>
    %542 = arith.negf %541 : vector<8x128xf32>
    %543 = math.exp %542 : vector<8x128xf32>
    %cst_194 = arith.constant 1.000000e+00 : f32
    %544 = vector.broadcast %cst_194 : f32 to vector<8x128xf32>
    %545 = arith.addf %544, %543 : vector<8x128xf32>
    %546 = arith.divf %544, %545 : vector<8x128xf32>
    %547 = vector.extract_strided_slice %534 {offsets = [0, 256], sizes = [8, 128], strides = [1, 1]} : vector<8x512xf32> to vector<8x128xf32>
    %548 = math.tanh %547 : vector<8x128xf32>
    %549 = vector.extract_strided_slice %534 {offsets = [0, 384], sizes = [8, 128], strides = [1, 1]} : vector<8x512xf32> to vector<8x128xf32>
    %550 = arith.negf %549 : vector<8x128xf32>
    %551 = math.exp %550 : vector<8x128xf32>
    %cst_195 = arith.constant 1.000000e+00 : f32
    %552 = vector.broadcast %cst_195 : f32 to vector<8x128xf32>
    %553 = arith.addf %552, %551 : vector<8x128xf32>
    %554 = arith.divf %552, %553 : vector<8x128xf32>
    %555 = arith.mulf %546, %528 : vector<8x128xf32>
    %556 = arith.mulf %540, %548 : vector<8x128xf32>
    %557 = arith.addf %555, %556 : vector<8x128xf32>
    %558 = math.tanh %557 : vector<8x128xf32>
    %559 = arith.mulf %554, %558 : vector<8x128xf32>
    %560 = arith.select %488, %559, %527 : vector<8x128xi1>, vector<8x128xf32>
    %c0_196 = arith.constant 0 : index
    %c0_197 = arith.constant 0 : index
    %561 = vector.load %arg16[%c0_196, %c0_197] : memref<8x128xf32, #tpu.memory_space<vmem>>, vector<8x128xf32>
    tpu.vector_store %arg16[%c0_196, %c0_197], %560 {strides = array<i32>} : memref<8x128xf32, #tpu.memory_space<vmem>>, vector<8x128xf32>,
    %562 = arith.select %488, %557, %528 : vector<8x128xi1>, vector<8x128xf32>
    %c0_198 = arith.constant 0 : index
    %c0_199 = arith.constant 0 : index
    %563 = vector.load %arg17[%c0_198, %c0_199] : memref<8x128xf32, #tpu.memory_space<vmem>>, vector<8x128xf32>
    tpu.vector_store %arg17[%c0_198, %c0_199], %562 {strides = array<i32>} : memref<8x128xf32, #tpu.memory_space<vmem>>, vector<8x128xf32>,
    %c7_i32 = arith.constant 7 : i32
    %564 = arith.addi %17, %c7_i32 : i32
    %565 = vector.broadcast %564 : i32 to vector<8x128xi32>
    %566 = arith.cmpi slt, %565, %16 : vector<8x128xi32>
    %c0_200 = arith.constant 0 : index
    %c0_201 = arith.constant 0 : index
    %567 = vector.load %arg14[%c0_200, %c0_201] : memref<8x128xf32, #tpu.memory_space<vmem>>, vector<8x128xf32>
    %c0_202 = arith.constant 0 : index
    %c0_203 = arith.constant 0 : index
    %568 = vector.load %arg15[%c0_202, %c0_203] : memref<8x128xf32, #tpu.memory_space<vmem>>, vector<8x128xf32>
    %c8_i32_204 = arith.constant 8 : i32
    %569 = arith.muli %c7_i32, %c8_i32_204 : i32
    %570 = tpu.assume_multiple %569, 8 : i32
    %571 = arith.index_cast %570 : i32 to index
    %c0_205 = arith.constant 0 : index
    %572 = vector.load %arg13[%571, %c0_205] : memref<64x512xf32, #tpu.memory_space<vmem>>, vector<8x512xf32>
    %573 = arith.truncf %567 : vector<8x128xf32> to vector<8x128xbf16>
    %cst_206 = arith.constant dense<0.000000e+00> : vector<8x512xf32>
    %574 = tpu.matmul %573, %11, %cst_206 {dimension_numbers = #tpu.dot_dimension_numbers<[1], [0], [0], [1], [0, 0, 1, 1], [], []>} : vector<8x128xbf16>, vector<128x512xbf16>, vector<8x512xf32> -> vector<8x512xf32>
    %575 = arith.addf %572, %574 : vector<8x512xf32>
    %576 = vector.extract_strided_slice %575 {offsets = [0, 0], sizes = [8, 128], strides = [1, 1]} : vector<8x512xf32> to vector<8x128xf32>
    %577 = arith.negf %576 : vector<8x128xf32>
    %578 = math.exp %577 : vector<8x128xf32>
    %cst_207 = arith.constant 1.000000e+00 : f32
    %579 = vector.broadcast %cst_207 : f32 to vector<8x128xf32>
    %580 = arith.addf %579, %578 : vector<8x128xf32>
    %581 = arith.divf %579, %580 : vector<8x128xf32>
    %582 = vector.extract_strided_slice %575 {offsets = [0, 128], sizes = [8, 128], strides = [1, 1]} : vector<8x512xf32> to vector<8x128xf32>
    %583 = arith.negf %582 : vector<8x128xf32>
    %584 = math.exp %583 : vector<8x128xf32>
    %cst_208 = arith.constant 1.000000e+00 : f32
    %585 = vector.broadcast %cst_208 : f32 to vector<8x128xf32>
    %586 = arith.addf %585, %584 : vector<8x128xf32>
    %587 = arith.divf %585, %586 : vector<8x128xf32>
    %588 = vector.extract_strided_slice %575 {offsets = [0, 256], sizes = [8, 128], strides = [1, 1]} : vector<8x512xf32> to vector<8x128xf32>
    %589 = math.tanh %588 : vector<8x128xf32>
    %590 = vector.extract_strided_slice %575 {offsets = [0, 384], sizes = [8, 128], strides = [1, 1]} : vector<8x512xf32> to vector<8x128xf32>
    %591 = arith.negf %590 : vector<8x128xf32>
    %592 = math.exp %591 : vector<8x128xf32>
    %cst_209 = arith.constant 1.000000e+00 : f32
    %593 = vector.broadcast %cst_209 : f32 to vector<8x128xf32>
    %594 = arith.addf %593, %592 : vector<8x128xf32>
    %595 = arith.divf %593, %594 : vector<8x128xf32>
    %596 = arith.mulf %587, %568 : vector<8x128xf32>
    %597 = arith.mulf %581, %589 : vector<8x128xf32>
    %598 = arith.addf %596, %597 : vector<8x128xf32>
    %599 = math.tanh %598 : vector<8x128xf32>
    %600 = arith.mulf %595, %599 : vector<8x128xf32>
    %601 = arith.select %566, %600, %567 : vector<8x128xi1>, vector<8x128xf32>
    %c0_210 = arith.constant 0 : index
    %c0_211 = arith.constant 0 : index
    %602 = vector.load %arg14[%c0_210, %c0_211] : memref<8x128xf32, #tpu.memory_space<vmem>>, vector<8x128xf32>
    tpu.vector_store %arg14[%c0_210, %c0_211], %601 {strides = array<i32>} : memref<8x128xf32, #tpu.memory_space<vmem>>, vector<8x128xf32>,
    %603 = arith.select %566, %598, %568 : vector<8x128xi1>, vector<8x128xf32>
    %c0_212 = arith.constant 0 : index
    %c0_213 = arith.constant 0 : index
    %604 = vector.load %arg15[%c0_212, %c0_213] : memref<8x128xf32, #tpu.memory_space<vmem>>, vector<8x128xf32>
    tpu.vector_store %arg15[%c0_212, %c0_213], %603 {strides = array<i32>} : memref<8x128xf32, #tpu.memory_space<vmem>>, vector<8x128xf32>,
    %c0_214 = arith.constant 0 : index
    %c0_215 = arith.constant 0 : index
    %605 = vector.load %arg16[%c0_214, %c0_215] : memref<8x128xf32, #tpu.memory_space<vmem>>, vector<8x128xf32>
    %c0_216 = arith.constant 0 : index
    %c0_217 = arith.constant 0 : index
    %606 = vector.load %arg17[%c0_216, %c0_217] : memref<8x128xf32, #tpu.memory_space<vmem>>, vector<8x128xf32>
    %607 = arith.truncf %601 : vector<8x128xf32> to vector<8x128xbf16>
    %608 = arith.truncf %605 : vector<8x128xf32> to vector<8x128xbf16>
    %609 = tpu.concatenate %607, %608 in 1 : vector<8x128xbf16>, vector<8x128xbf16> -> vector<8x256xbf16>
    %cst_218 = arith.constant dense<0.000000e+00> : vector<8x512xf32>
    %610 = tpu.matmul %609, %12, %cst_218 {dimension_numbers = #tpu.dot_dimension_numbers<[1], [0], [0], [1], [0, 0, 1, 1], [], []>} : vector<8x256xbf16>, vector<256x512xbf16>, vector<8x512xf32> -> vector<8x512xf32>
    %611 = vector.broadcast %13 : vector<1x512xf32> to vector<8x512xf32>
    %612 = arith.addf %610, %611 : vector<8x512xf32>
    %613 = vector.extract_strided_slice %612 {offsets = [0, 0], sizes = [8, 128], strides = [1, 1]} : vector<8x512xf32> to vector<8x128xf32>
    %614 = arith.negf %613 : vector<8x128xf32>
    %615 = math.exp %614 : vector<8x128xf32>
    %cst_219 = arith.constant 1.000000e+00 : f32
    %616 = vector.broadcast %cst_219 : f32 to vector<8x128xf32>
    %617 = arith.addf %616, %615 : vector<8x128xf32>
    %618 = arith.divf %616, %617 : vector<8x128xf32>
    %619 = vector.extract_strided_slice %612 {offsets = [0, 128], sizes = [8, 128], strides = [1, 1]} : vector<8x512xf32> to vector<8x128xf32>
    %620 = arith.negf %619 : vector<8x128xf32>
    %621 = math.exp %620 : vector<8x128xf32>
    %cst_220 = arith.constant 1.000000e+00 : f32
    %622 = vector.broadcast %cst_220 : f32 to vector<8x128xf32>
    %623 = arith.addf %622, %621 : vector<8x128xf32>
    %624 = arith.divf %622, %623 : vector<8x128xf32>
    %625 = vector.extract_strided_slice %612 {offsets = [0, 256], sizes = [8, 128], strides = [1, 1]} : vector<8x512xf32> to vector<8x128xf32>
    %626 = math.tanh %625 : vector<8x128xf32>
    %627 = vector.extract_strided_slice %612 {offsets = [0, 384], sizes = [8, 128], strides = [1, 1]} : vector<8x512xf32> to vector<8x128xf32>
    %628 = arith.negf %627 : vector<8x128xf32>
    %629 = math.exp %628 : vector<8x128xf32>
    %cst_221 = arith.constant 1.000000e+00 : f32
    %630 = vector.broadcast %cst_221 : f32 to vector<8x128xf32>
    %631 = arith.addf %630, %629 : vector<8x128xf32>
    %632 = arith.divf %630, %631 : vector<8x128xf32>
    %633 = arith.mulf %624, %606 : vector<8x128xf32>
    %634 = arith.mulf %618, %626 : vector<8x128xf32>
    %635 = arith.addf %633, %634 : vector<8x128xf32>
    %636 = math.tanh %635 : vector<8x128xf32>
    %637 = arith.mulf %632, %636 : vector<8x128xf32>
    %638 = arith.select %566, %637, %605 : vector<8x128xi1>, vector<8x128xf32>
    %c0_222 = arith.constant 0 : index
    %c0_223 = arith.constant 0 : index
    %639 = vector.load %arg16[%c0_222, %c0_223] : memref<8x128xf32, #tpu.memory_space<vmem>>, vector<8x128xf32>
    tpu.vector_store %arg16[%c0_222, %c0_223], %638 {strides = array<i32>} : memref<8x128xf32, #tpu.memory_space<vmem>>, vector<8x128xf32>,
    %640 = arith.select %566, %635, %606 : vector<8x128xi1>, vector<8x128xf32>
    %c0_224 = arith.constant 0 : index
    %c0_225 = arith.constant 0 : index
    %641 = vector.load %arg17[%c0_224, %c0_225] : memref<8x128xf32, #tpu.memory_space<vmem>>, vector<8x128xf32>
    tpu.vector_store %arg17[%c0_224, %c0_225], %640 {strides = array<i32>} : memref<8x128xf32, #tpu.memory_space<vmem>>, vector<8x128xf32>,
    %c8_i32_226 = arith.constant 8 : i32
    %c0_i32_227 = arith.constant 0 : i32
    %642 = arith.cmpi eq, %arg1, %c0_i32_227 : i32
    %643 = arith.extui %642 : i1 to i32
    %c0_i32_228 = arith.constant 0 : i32
    %644 = arith.cmpi ne, %643, %c0_i32_228 : i32
    scf.if %644 {
      %c0_229 = arith.constant 0 : index
      %c0_230 = arith.constant 0 : index
      %645 = vector.load %arg14[%c0_229, %c0_230] : memref<8x128xf32, #tpu.memory_space<vmem>>, vector<8x128xf32>
      %646 = arith.truncf %645 : vector<8x128xf32> to vector<8x128xbf16>
      %c0_231 = arith.constant 0 : index
      %c0_232 = arith.constant 0 : index
      %647 = vector.load %arg9[%c0_231, %c0_232] : memref<128x128xbf16, #tpu.memory_space<vmem>>, vector<128x128xbf16>
      %cst_233 = arith.constant dense<0.000000e+00> : vector<8x128xf32>
      %648 = tpu.matmul %646, %647, %cst_233 {dimension_numbers = #tpu.dot_dimension_numbers<[1], [0], [0], [1], [0, 0, 1, 1], [], []>} : vector<8x128xbf16>, vector<128x128xbf16>, vector<8x128xf32> -> vector<8x128xf32>
      %c0_234 = arith.constant 0 : index
      %c0_235 = arith.constant 0 : index
      %649 = vector.load %arg16[%c0_234, %c0_235] : memref<8x128xf32, #tpu.memory_space<vmem>>, vector<8x128xf32>
      %650 = arith.truncf %649 : vector<8x128xf32> to vector<8x128xbf16>
      %c0_236 = arith.constant 0 : index
      %c0_237 = arith.constant 0 : index
      %651 = vector.load %arg10[%c0_236, %c0_237] : memref<128x128xbf16, #tpu.memory_space<vmem>>, vector<128x128xbf16>
      %cst_238 = arith.constant dense<0.000000e+00> : vector<8x128xf32>
      %652 = tpu.matmul %650, %651, %cst_238 {dimension_numbers = #tpu.dot_dimension_numbers<[1], [0], [0], [1], [0, 0, 1, 1], [], []>} : vector<8x128xbf16>, vector<128x128xbf16>, vector<8x128xf32> -> vector<8x128xf32>
      %653 = arith.addf %648, %652 : vector<8x128xf32>
      %c0_239 = arith.constant 0 : index
      %c0_240 = arith.constant 0 : index
      %654 = vector.load %arg11[%c0_239, %c0_240] : memref<1x128xf32, #tpu.memory_space<vmem>>, vector<1x128xf32>
      %655 = vector.broadcast %654 : vector<1x128xf32> to vector<8x128xf32>
      %656 = arith.addf %653, %655 : vector<8x128xf32>
      %c0_241 = arith.constant 0 : index
      %c0_242 = arith.constant 0 : index
      %657 = vector.load %arg12[%c0_241, %c0_242] : memref<8x128xf32, #tpu.memory_space<vmem>>, vector<8x128xf32>
      tpu.vector_store %arg12[%c0_241, %c0_242], %656 {strides = array<i32>} : memref<8x128xf32, #tpu.memory_space<vmem>>, vector<8x128xf32>,
    } else {
    }
    return
  }
  func.func @transform_0(%arg0: i32, %arg1: i32) -> (i32, i32) {
    %c0_i32 = arith.constant 0 : i32
    %c0_i32_0 = arith.constant 0 : i32
    return %arg0, %c0_i32 : i32, i32
  }
  func.func @transform_1(%arg0: i32, %arg1: i32) -> (i32, i32, i32) {
    %c0_i32 = arith.constant 0 : i32
    %c0_i32_0 = arith.constant 0 : i32
    return %arg0, %arg1, %c0_i32 : i32, i32, i32
  }
  func.func @transform_2(%arg0: i32, %arg1: i32) -> (i32, i32) {
    %c0_i32 = arith.constant 0 : i32
    %c0_i32_0 = arith.constant 0 : i32
    %c0_i32_1 = arith.constant 0 : i32
    return %c0_i32, %c0_i32_0 : i32, i32
  }
  func.func @transform_3(%arg0: i32, %arg1: i32) -> (i32, i32) {
    %c0_i32 = arith.constant 0 : i32
    %c0_i32_0 = arith.constant 0 : i32
    %c0_i32_1 = arith.constant 0 : i32
    return %c0_i32, %c0_i32_0 : i32, i32
  }
  func.func @transform_4(%arg0: i32, %arg1: i32) -> (i32, i32) {
    %c0_i32 = arith.constant 0 : i32
    %c0_i32_0 = arith.constant 0 : i32
    %c0_i32_1 = arith.constant 0 : i32
    return %c0_i32, %c0_i32_0 : i32, i32
  }
  func.func @transform_5(%arg0: i32, %arg1: i32) -> (i32, i32) {
    %c0_i32 = arith.constant 0 : i32
    %c0_i32_0 = arith.constant 0 : i32
    %c0_i32_1 = arith.constant 0 : i32
    return %c0_i32, %c0_i32_0 : i32, i32
  }
  func.func @transform_6(%arg0: i32, %arg1: i32) -> (i32, i32) {
    %c0_i32 = arith.constant 0 : i32
    %c0_i32_0 = arith.constant 0 : i32
    %c0_i32_1 = arith.constant 0 : i32
    return %c0_i32, %c0_i32_0 : i32, i32
  }
  func.func @transform_7(%arg0: i32, %arg1: i32) -> (i32, i32) {
    %c0_i32 = arith.constant 0 : i32
    %c0_i32_0 = arith.constant 0 : i32
    %c0_i32_1 = arith.constant 0 : i32
    return %c0_i32, %c0_i32_0 : i32, i32
  }
  func.func @transform_8(%arg0: i32, %arg1: i32) -> (i32, i32) {
    %c0_i32 = arith.constant 0 : i32
    %c0_i32_0 = arith.constant 0 : i32
    %c0_i32_1 = arith.constant 0 : i32
    return %c0_i32, %c0_i32_0 : i32, i32
  }
  func.func @transform_9(%arg0: i32, %arg1: i32) -> (i32, i32) {
    %c0_i32 = arith.constant 0 : i32
    %c0_i32_0 = arith.constant 0 : i32
    %c0_i32_1 = arith.constant 0 : i32
    return %c0_i32, %c0_i32_0 : i32, i32
  }
  func.func @transform_10(%arg0: i32, %arg1: i32) -> (i32, i32) {
    %c0_i32 = arith.constant 0 : i32
    %c0_i32_0 = arith.constant 0 : i32
    return %arg0, %c0_i32 : i32, i32
  }
}

</mosaic_0001>

<llo_original>
// kernel: tpu_custom_call.1
$region0: #{tpu_custom_call.1}
  #allocation0 [shape = 'u32[]', space=smem, size = 0x4, offset = 0x4, fixed_abs, tag = 'smem constant byte address 0x4 - core index']
  #allocation1 [shape = 'u32[144,128]{1,0:T(1,128)}', space=vmem, size = 0x12000, scoped, tag = 'internal scratch']
  #allocation2 [shape = 'f32[64,512]{1,0:T(8,128)}', space=vmem, size = 0x20000, scoped, tag = 'scratch operand']
  #allocation3 [shape = 'f32[8,128]{1,0:T(8,128)}', space=vmem, size = 0x1000, scoped, tag = 'scratch operand']
  #allocation4 [shape = 'f32[8,128]{1,0:T(8,128)}', space=vmem, size = 0x1000, scoped, tag = 'scratch operand']
  #allocation5 [shape = 'f32[8,128]{1,0:T(8,128)}', space=vmem, size = 0x1000, scoped, tag = 'scratch operand']
  #allocation6 [shape = 'f32[8,128]{1,0:T(8,128)}', space=vmem, size = 0x1000, scoped, tag = 'scratch operand']
  %s0 = inlined_call_operand.vmem [shape: s32[8,1], index: 0, kind: input, shape index: {}]
  %s1 = inlined_call_operand.hbm [shape: bf16[1,64,128], index: 1, kind: input, shape index: {}]
  %s2 = inlined_call_operand.hbm [shape: bf16[128,512], index: 2, kind: input, shape index: {}]
  %s3 = inlined_call_operand.vmem [shape: f32[1,512], index: 3, kind: input, shape index: {}]
  %s4 = inlined_call_operand.hbm [shape: bf16[128,512], index: 4, kind: input, shape index: {}]
  %s5 = inlined_call_operand.hbm [shape: bf16[256,512], index: 5, kind: input, shape index: {}]
  %s6 = inlined_call_operand.vmem [shape: f32[1,512], index: 6, kind: input, shape index: {}]
  %s7 = inlined_call_operand.hbm [shape: bf16[128,128], index: 7, kind: input, shape index: {}]
  %s8 = inlined_call_operand.hbm [shape: bf16[128,128], index: 8, kind: input, shape index: {}]
  %s9 = inlined_call_operand.vmem [shape: f32[1,128], index: 9, kind: input, shape index: {}]
  %s10 = inlined_call_operand.hbm [shape: f32[8,128], index: 10, kind: output, shape index: {}]
  %s11 = sld [smem:[#allocation0]]
  $region82: #{tpu_custom_call.1} parent=0
    _
  %s13 = ssub.s32 1, %s11
  %s14 = scalar_select 0, %s13, %s11
  $region1: #{tpu_custom_call.1} parent=0
    #allocation7 [shape = 'u8[16384]{0}', space=vmem, size = 0x4000, scoped, tag = 'input window, operand 1, single buffered']
    #allocation8 [shape = 's32[1]{0}', space=sflag, size = 0x4, scoped, tag = 'scoped memory for tpu_custom_call.1']
    #allocation9 [shape = 's32[1]{0}', space=sflag, size = 0x4, scoped, tag = 'scoped memory for tpu_custom_call.1']
    #allocation10 [shape = 'u8[131072]{0}', space=vmem, size = 0x20000, scoped, tag = 'input window, operand 2, single buffered']
    #allocation11 [shape = 's32[1]{0}', space=sflag, size = 0x4, scoped, tag = 'scoped memory for tpu_custom_call.1']
    #allocation12 [shape = 'u8[131072]{0}', space=vmem, size = 0x20000, scoped, tag = 'input window, operand 4, single buffered']
    #allocation13 [shape = 'u8[262144]{0}', space=vmem, size = 0x40000, scoped, tag = 'input window, operand 5, single buffered']
    #allocation14 [shape = 's32[1]{0}', space=sflag, size = 0x4, scoped, tag = 'scoped memory for tpu_custom_call.1']
    #allocation15 [shape = 'u8[32768]{0}', space=vmem, size = 0x8000, scoped, tag = 'input window, operand 7, single buffered']
    #allocation16 [shape = 'u8[32768]{0}', space=vmem, size = 0x8000, scoped, tag = 'input window, operand 8, single buffered']
    #allocation17 [shape = 's32[1]{0}', space=sflag, size = 0x4, scoped, tag = 'scoped memory for tpu_custom_call.1']
    #allocation18 [shape = 'u8[4096]{0}', space=vmem, size = 0x1000, scoped, tag = 'output window, operand 0, single buffered']
    %15 = vsyncpa [#allocation8], 0
    %16 = vsyncpa [#allocation11], 0
    %17 = vsyncpa [#allocation14], 0
    %18 = vsyncpa [#allocation17], 0
    %19 = vsyncpa [#allocation9], 0
    // Predicated region
    $region2: #{tpu_custom_call.1} parent=1 // pred_check
      _
    $region3: #{tpu_custom_call.1} parent=1 // pred_check_branch
      %21 = sbr.rel (0) target = $region5
    $region4: #{tpu_custom_call.1} parent=1 // pred_region
      _
    $region5: #{tpu_custom_call.1} parent=1 // pred_fallthru
      _
    // Predicated region
    $region6: #{tpu_custom_call.1} parent=1 // pred_check
      _
    $region7: #{tpu_custom_call.1} parent=1 // pred_check_branch
      %23 = sbr.rel (0) target = $region9
    $region8: #{tpu_custom_call.1} parent=1 // pred_region
      %s25 = ssub.s32 512, 512
      %26 = vsyncadd [#allocation8], %s25
      %s27 = sshll.u32 [#allocation7], 4
      %s28 = int_to_ptr.vmem [resolvable:$true] %s27
      %33 = dma.hbm_to_vmem [thread:$0]  %s1, 512, %s28, [#allocation8], 64, 64, 4
    $region9: #{tpu_custom_call.1} parent=1 // pred_fallthru
      _
    // Predicated region
    $region10: #{tpu_custom_call.1} parent=1 // pred_check
      _
    $region11: #{tpu_custom_call.1} parent=1 // pred_check_branch
      %35 = sbr.rel (0) target = $region13
    $region12: #{tpu_custom_call.1} parent=1 // pred_region
      %s37 = ssub.s32 4096, 4096
      %38 = vsyncadd [#allocation11], %s37
      %s39 = sshll.u32 [#allocation10], 4
      %s40 = int_to_ptr.vmem [resolvable:$true] %s39
      %45 = dma.hbm_to_vmem [thread:$0]  %s2, 4096, %s40, [#allocation11], 256, 256, 16
    $region13: #{tpu_custom_call.1} parent=1 // pred_fallthru
      _
    // Predicated region
    $region14: #{tpu_custom_call.1} parent=1 // pred_check
      _
    $region15: #{tpu_custom_call.1} parent=1 // pred_check_branch
      %47 = sbr.rel (0) target = $region17
    $region16: #{tpu_custom_call.1} parent=1 // pred_region
      _
    $region17: #{tpu_custom_call.1} parent=1 // pred_fallthru
      _
    // Predicated region
    $region18: #{tpu_custom_call.1} parent=1 // pred_check
      _
    $region19: #{tpu_custom_call.1} parent=1 // pred_check_branch
      %49 = sbr.rel (0) target = $region21
    $region20: #{tpu_custom_call.1} parent=1 // pred_region
      %s51 = ssub.s32 4096, 4096
      %52 = vsyncadd [#allocation11], %s51
      %s53 = sshll.u32 [#allocation12], 4
      %s54 = int_to_ptr.vmem [resolvable:$true] %s53
      %59 = dma.hbm_to_vmem [thread:$0]  %s4, 4096, %s54, [#allocation11], 256, 256, 16
    $region21: #{tpu_custom_call.1} parent=1 // pred_fallthru
      _
    // Predicated region
    $region22: #{tpu_custom_call.1} parent=1 // pred_check
      _
    $region23: #{tpu_custom_call.1} parent=1 // pred_check_branch
      %61 = sbr.rel (0) target = $region25
    $region24: #{tpu_custom_call.1} parent=1 // pred_region
      %s63 = ssub.s32 8192, 8192
      %64 = vsyncadd [#allocation14], %s63
      %s65 = sshll.u32 [#allocation13], 4
      %s66 = int_to_ptr.vmem [resolvable:$true] %s65
      %71 = dma.hbm_to_vmem [thread:$0]  %s5, 8192, %s66, [#allocation14], 256, 256, 16
    $region25: #{tpu_custom_call.1} parent=1 // pred_fallthru
      _
    // Predicated region
    $region26: #{tpu_custom_call.1} parent=1 // pred_check
      _
    $region27: #{tpu_custom_call.1} parent=1 // pred_check_branch
      %73 = sbr.rel (0) target = $region29
    $region28: #{tpu_custom_call.1} parent=1 // pred_region
      _
    $region29: #{tpu_custom_call.1} parent=1 // pred_fallthru
      _
    // Predicated region
    $region30: #{tpu_custom_call.1} parent=1 // pred_check
      _
    $region31: #{tpu_custom_call.1} parent=1 // pred_check_branch
      %75 = sbr.rel (0) target = $region33
    $region32: #{tpu_custom_call.1} parent=1 // pred_region
      %s77 = ssub.s32 1024, 1024
      %78 = vsyncadd [#allocation14], %s77
      %s79 = sshll.u32 [#allocation15], 4
      %s80 = int_to_ptr.vmem [resolvable:$true] %s79
      %85 = dma.hbm_to_vmem [thread:$0]  %s7, 1024, %s80, [#allocation14], 64, 64, 4
    $region33: #{tpu_custom_call.1} parent=1 // pred_fallthru
      _
    // Predicated region
    $region34: #{tpu_custom_call.1} parent=1 // pred_check
      _
    $region35: #{tpu_custom_call.1} parent=1 // pred_check_branch
      %87 = sbr.rel (0) target = $region37
    $region36: #{tpu_custom_call.1} parent=1 // pred_region
      %s89 = ssub.s32 1024, 1024
      %90 = vsyncadd [#allocation17], %s89
      %s91 = sshll.u32 [#allocation16], 4
      %s92 = int_to_ptr.vmem [resolvable:$true] %s91
      %97 = dma.hbm_to_vmem [thread:$0]  %s8, 1024, %s92, [#allocation17], 64, 64, 4
    $region37: #{tpu_custom_call.1} parent=1 // pred_fallthru
      _
    // Predicated region
    $region38: #{tpu_custom_call.1} parent=1 // pred_check
      _
    $region39: #{tpu_custom_call.1} parent=1 // pred_check_branch
      %99 = sbr.rel (0) target = $region41
    $region40: #{tpu_custom_call.1} parent=1 // pred_region
      _
    $region41: #{tpu_custom_call.1} parent=1 // pred_fallthru
      _
    // Predicated region
    $region42: #{tpu_custom_call.1} parent=1 // pred_check
      _
    $region43: #{tpu_custom_call.1} parent=1 // pred_check_branch
      %101 = sbr.rel (0) target = $region45
    $region44: #{tpu_custom_call.1} parent=1 // pred_region
      %102 = dma.done [#allocation8], 512
    $region45: #{tpu_custom_call.1} parent=1 // pred_fallthru
      _
    // Predicated region
    $region46: #{tpu_custom_call.1} parent=1 // pred_check
      _
    $region47: #{tpu_custom_call.1} parent=1 // pred_check_branch
      %104 = sbr.rel (0) target = $region49
    $region48: #{tpu_custom_call.1} parent=1 // pred_region
      %105 = dma.done [#allocation11], 4096
    $region49: #{tpu_custom_call.1} parent=1 // pred_fallthru
      _
    // Predicated region
    $region50: #{tpu_custom_call.1} parent=1 // pred_check
      _
    $region51: #{tpu_custom_call.1} parent=1 // pred_check_branch
      %107 = sbr.rel (0) target = $region53
    $region52: #{tpu_custom_call.1} parent=1 // pred_region
      %108 = dma.done [#allocation11], 4096
    $region53: #{tpu_custom_call.1} parent=1 // pred_fallthru
      _
    // Predicated region
    $region54: #{tpu_custom_call.1} parent=1 // pred_check
      _
    $region55: #{tpu_custom_call.1} parent=1 // pred_check_branch
      %110 = sbr.rel (0) target = $region57
    $region56: #{tpu_custom_call.1} parent=1 // pred_region
      %111 = dma.done [#allocation14], 8192
    $region57: #{tpu_custom_call.1} parent=1 // pred_fallthru
      _
    // Predicated region
    $region58: #{tpu_custom_call.1} parent=1 // pred_check
      _
    $region59: #{tpu_custom_call.1} parent=1 // pred_check_branch
      %113 = sbr.rel (0) target = $region61
    $region60: #{tpu_custom_call.1} parent=1 // pred_region
      %114 = dma.done [#allocation14], 1024
    $region61: #{tpu_custom_call.1} parent=1 // pred_fallthru
      _
    // Predicated region
    $region62: #{tpu_custom_call.1} parent=1 // pred_check
      _
    $region63: #{tpu_custom_call.1} parent=1 // pred_check_branch
      %116 = sbr.rel (0) target = $region65
    $region64: #{tpu_custom_call.1} parent=1 // pred_region
      %117 = dma.done [#allocation17], 1024
    $region65: #{tpu_custom_call.1} parent=1 // pred_fallthru
      _
    %p119 = scmp.eq.s32.totalorder 0, 0
    // Predicated region
    $region66: #{tpu_custom_call.1} parent=1 // pred_check
      %p120 = pneg %p119
    $region67: #{tpu_custom_call.1} parent=1 // pred_check_branch
      %122 = sbr.rel (%p120) target = $region69
    $region68: #{tpu_custom_call.1} parent=1 // pred_region
      %123 = vst [vmem:[#allocation3] sm:$0xff] 0.0
      %124 = vst [vmem:[#allocation4] sm:$0xff] 0.0
      %125 = vst [vmem:[#allocation5] sm:$0xff] 0.0
      %126 = vst [vmem:[#allocation6] sm:$0xff] 0.0
    $region69: #{tpu_custom_call.1} parent=1 // pred_fallthru
      _
    %v127 = vld [vmem:[#allocation7] sm:$0xf]
    %v128 = vld [vmem:[#allocation7 + $0x4] sm:$0xf]
    %v129 = vld [vmem:[#allocation7 + $0x8] sm:$0xf]
    %v130 = vld [vmem:[#allocation7 + $0xc] sm:$0xf]
    %v131 = vld [vmem:[#allocation7 + $0x10] sm:$0xf]
    %v132 = vld [vmem:[#allocation7 + $0x14] sm:$0xf]
    %v133 = vld [vmem:[#allocation7 + $0x18] sm:$0xf]
    %v134 = vld [vmem:[#allocation7 + $0x1c] sm:$0xf]
    %v135 = vld [vmem:[#allocation10] sm:$0xff]
    %v136 = vld [vmem:[#allocation10 + $0x8] sm:$0xff]
    %v137 = vld [vmem:[#allocation10 + $0x10] sm:$0xff]
    %v138 = vld [vmem:[#allocation10 + $0x18] sm:$0xff]
    %v139 = vld [vmem:[#allocation10 + $0x20] sm:$0xff]
    %v140 = vld [vmem:[#allocation10 + $0x28] sm:$0xff]
    %v141 = vld [vmem:[#allocation10 + $0x30] sm:$0xff]
    %v142 = vld [vmem:[#allocation10 + $0x38] sm:$0xff]
    %v143 = vld [vmem:[#allocation10 + $0x40] sm:$0xff]
    %v144 = vld [vmem:[#allocation10 + $0x48] sm:$0xff]
    %v145 = vld [vmem:[#allocation10 + $0x50] sm:$0xff]
    %v146 = vld [vmem:[#allocation10 + $0x58] sm:$0xff]
    %v147 = vld [vmem:[#allocation10 + $0x60] sm:$0xff]
    %v148 = vld [vmem:[#allocation10 + $0x68] sm:$0xff]
    %v149 = vld [vmem:[#allocation10 + $0x70] sm:$0xff]
    %v150 = vld [vmem:[#allocation10 + $0x78] sm:$0xff]
    %v151 = vld [vmem:[#allocation10 + $0x80] sm:$0xff]
    %v152 = vld [vmem:[#allocation10 + $0x88] sm:$0xff]
    %v153 = vld [vmem:[#allocation10 + $0x90] sm:$0xff]
    %v154 = vld [vmem:[#allocation10 + $0x98] sm:$0xff]
    %v155 = vld [vmem:[#allocation10 + $0xa0] sm:$0xff]
    %v156 = vld [vmem:[#allocation10 + $0xa8] sm:$0xff]
    %v157 = vld [vmem:[#allocation10 + $0xb0] sm:$0xff]
    %v158 = vld [vmem:[#allocation10 + $0xb8] sm:$0xff]
    %v159 = vld [vmem:[#allocation10 + $0xc0] sm:$0xff]
    %v160 = vld [vmem:[#allocation10 + $0xc8] sm:$0xff]
    %v161 = vld [vmem:[#allocation10 + $0xd0] sm:$0xff]
    %v162 = vld [vmem:[#allocation10 + $0xd8] sm:$0xff]
    %v163 = vld [vmem:[#allocation10 + $0xe0] sm:$0xff]
    %v164 = vld [vmem:[#allocation10 + $0xe8] sm:$0xff]
    %v165 = vld [vmem:[#allocation10 + $0xf0] sm:$0xff]
    %v166 = vld [vmem:[#allocation10 + $0xf8] sm:$0xff]
    %v167 = vld [vmem:[%s3] sm:$0xf]
    %v169 = vlaneseq
    %v170 = vshrl.u32 %v169, 7
    %v171 = vsub.s32 0, %v170
    %v172 = vrot.slane %v167, %v171
    %v173 = vlaneseq
    %v174 = vshrl.u32 %v173, 7
    %v175 = vsub.s32 1, %v174
    %v176 = vrot.slane %v167, %v175
    %v177 = vlaneseq
    %v178 = vshrl.u32 %v177, 7
    %v179 = vsub.s32 2, %v178
    %v180 = vrot.slane %v167, %v179
    %v181 = vlaneseq
    %v182 = vshrl.u32 %v181, 7
    %v183 = vsub.s32 3, %v182
    %v184 = vrot.slane %v167, %v183
    %v197 = vunpack.c.l.b16 %v127
    %v198 = vunpack.c.l.b16 %v128
    %v199 = vunpack.c.l.b16 %v129
    %v200 = vunpack.c.l.b16 %v130
    %v201 = vunpack.c.l.b16 %v131
    %v202 = vunpack.c.l.b16 %v132
    %v203 = vunpack.c.l.b16 %v133
    %v204 = vunpack.c.l.b16 %v134
    %v205 = vpack.c.b16 %v198, %v197
    %v206 = vpack.c.b16 %v200, %v199
    %v207 = vpack.c.b16 %v202, %v201
    %v208 = vpack.c.b16 %v204, %v203
    %v245 = vunpack.c.l.b16 %v135
    %v246 = vunpack.c.h.b16 %v135
    %v247 = vunpack.c.l.b16 %v136
    %v248 = vunpack.c.h.b16 %v136
    %v249 = vunpack.c.l.b16 %v137
    %v250 = vunpack.c.h.b16 %v137
    %v251 = vunpack.c.l.b16 %v138
    %v252 = vunpack.c.h.b16 %v138
    %v253 = vunpack.c.l.b16 %v139
    %v254 = vunpack.c.h.b16 %v139
    %v255 = vunpack.c.l.b16 %v140
    %v256 = vunpack.c.h.b16 %v140
    %v257 = vunpack.c.l.b16 %v141
    %v258 = vunpack.c.h.b16 %v141
    %v259 = vunpack.c.l.b16 %v142
    %v260 = vunpack.c.h.b16 %v142
    %v261 = vunpack.c.l.b16 %v143
    %v262 = vunpack.c.h.b16 %v143
    %v263 = vunpack.c.l.b16 %v144
    %v264 = vunpack.c.h.b16 %v144
    %v265 = vunpack.c.l.b16 %v145
    %v266 = vunpack.c.h.b16 %v145
    %v267 = vunpack.c.l.b16 %v146
    %v268 = vunpack.c.h.b16 %v146
    %v269 = vunpack.c.l.b16 %v147
    %v270 = vunpack.c.h.b16 %v147
    %v271 = vunpack.c.l.b16 %v148
    %v272 = vunpack.c.h.b16 %v148
    %v273 = vunpack.c.l.b16 %v149
    %v274 = vunpack.c.h.b16 %v149
    %v275 = vunpack.c.l.b16 %v150
    %v276 = vunpack.c.h.b16 %v150
    %v277 = vunpack.c.l.b16 %v151
    %v278 = vunpack.c.h.b16 %v151
    %v279 = vunpack.c.l.b16 %v152
    %v280 = vunpack.c.h.b16 %v152
    %v281 = vunpack.c.l.b16 %v153
    %v282 = vunpack.c.h.b16 %v153
    %v283 = vunpack.c.l.b16 %v154
    %v284 = vunpack.c.h.b16 %v154
    %v285 = vunpack.c.l.b16 %v155
    %v286 = vunpack.c.h.b16 %v155
    %v287 = vunpack.c.l.b16 %v156
    %v288 = vunpack.c.h.b16 %v156
    %v289 = vunpack.c.l.b16 %v157
    %v290 = vunpack.c.h.b16 %v157
    %v291 = vunpack.c.l.b16 %v158
    %v292 = vunpack.c.h.b16 %v158
    %v293 = vunpack.c.l.b16 %v159
    %v294 = vunpack.c.h.b16 %v159
    %v295 = vunpack.c.l.b16 %v160
    %v296 = vunpack.c.h.b16 %v160
    %v297 = vunpack.c.l.b16 %v161
    %v298 = vunpack.c.h.b16 %v161
    %v299 = vunpack.c.l.b16 %v162
    %v300 = vunpack.c.h.b16 %v162
    %v301 = vunpack.c.l.b16 %v163
    %v302 = vunpack.c.h.b16 %v163
    %v303 = vunpack.c.l.b16 %v164
    %v304 = vunpack.c.h.b16 %v164
    %v305 = vunpack.c.l.b16 %v165
    %v306 = vunpack.c.h.b16 %v165
    %v307 = vunpack.c.l.b16 %v166
    %v308 = vunpack.c.h.b16 %v166
    %v309 = vpack.c.b16 %v249, %v245
    %v310 = vpack.c.b16 %v250, %v246
    %v311 = vpack.c.b16 %v251, %v247
    %v312 = vpack.c.b16 %v252, %v248
    %v313 = vpack.c.b16 %v257, %v253
    %v314 = vpack.c.b16 %v258, %v254
    %v315 = vpack.c.b16 %v259, %v255
    %v316 = vpack.c.b16 %v260, %v256
    %v317 = vpack.c.b16 %v265, %v261
    %v318 = vpack.c.b16 %v266, %v262
    %v319 = vpack.c.b16 %v267, %v263
    %v320 = vpack.c.b16 %v268, %v264
    %v321 = vpack.c.b16 %v273, %v269
    %v322 = vpack.c.b16 %v274, %v270
    %v323 = vpack.c.b16 %v275, %v271
    %v324 = vpack.c.b16 %v276, %v272
    %v325 = vpack.c.b16 %v281, %v277
    %v326 = vpack.c.b16 %v282, %v278
    %v327 = vpack.c.b16 %v283, %v279
    %v328 = vpack.c.b16 %v284, %v280
    %v329 = vpack.c.b16 %v289, %v285
    %v330 = vpack.c.b16 %v290, %v286
    %v331 = vpack.c.b16 %v291, %v287
    %v332 = vpack.c.b16 %v292, %v288
    %v333 = vpack.c.b16 %v297, %v293
    %v334 = vpack.c.b16 %v298, %v294
    %v335 = vpack.c.b16 %v299, %v295
    %v336 = vpack.c.b16 %v300, %v296
    %v337 = vpack.c.b16 %v305, %v301
    %v338 = vpack.c.b16 %v306, %v302
    %v339 = vpack.c.b16 %v307, %v303
    %v340 = vpack.c.b16 %v308, %v304
    %373 = vmatprep.subr.bf16.mxu0 %v338
    %374 = vmatpush1.bf16.msra.mxu0 %v337
    %375 = vmatprep.subr.bf16.mxu0 %v334
    %376 = vmatpush1.bf16.msra.mxu0 %v333
    %377 = vmatprep.subr.bf16.mxu0 %v330
    %378 = vmatpush1.bf16.msra.mxu0 %v329
    %379 = vmatprep.subr.bf16.mxu0 %v326
    %380 = vmatpush1.bf16.msra.mxu0 %v325
    %381 = vmatprep.subr.bf16.mxu0 %v322
    %382 = vmatpush1.bf16.msra.mxu0 %v321
    %383 = vmatprep.subr.bf16.mxu0 %v318
    %384 = vmatpush1.bf16.msra.mxu0 %v317
    %385 = vmatprep.subr.bf16.mxu0 %v314
    %386 = vmatpush1.bf16.msra.mxu0 %v313
    %387 = vmatprep.subr.bf16.mxu0 %v310
    %388 = vmatpush1.bf16.msra.mxu0 %v309
    %389 = vmatprep.subr.bf16.mxu0 0
    %390 = vmatpush2.bf16.msra.mxu0 0
    %391 = vmatprep.subr.bf16.mxu0 0
    %392 = vmatpush2.bf16.msra.mxu0 0
    %393 = vmatprep.subr.bf16.mxu0 0
    %394 = vmatpush2.bf16.msra.mxu0 0
    %395 = vmatprep.subr.bf16.mxu0 0
    %396 = vmatpush2.bf16.msra.mxu0 0
    %397 = vmatprep.subr.bf16.mxu0 0
    %398 = vmatpush2.bf16.msra.mxu0 0
    %399 = vmatprep.subr.bf16.mxu0 0
    %400 = vmatpush2.bf16.msra.mxu0 0
    %401 = vmatprep.subr.bf16.mxu0 0
    %402 = vmatpush2.bf16.msra.mxu0 0
    %403 = vmatprep.subr.bf16.mxu0 0
    %404 = vmatpush2.bf16.msra.mxu0 0
    %405 = vmatprep.mubr.bf16.mxu0 0
    %406 = vmatmul.mubr.bf16.gmra.mxu0 %v205
    %v407 = vpop.f32.mrf.mxu0
    %v408 = vadd.f32 %v172, %v407
    %v409 = vpop.f32.mrf.mxu0
    %v410 = vadd.f32 %v176, %v409
    %v411 = vpop.f32.mrf.mxu0
    %v412 = vadd.f32 %v172, %v411
    %v413 = vpop.f32.mrf.mxu0
    %v414 = vadd.f32 %v176, %v413
    %415 = vmatprep.mubr.bf16.mxu0 0
    %416 = vmatmul.mubr.bf16.gmra.mxu0 %v206
    %v417 = vpop.f32.mrf.mxu0
    %v418 = vadd.f32 %v172, %v417
    %v419 = vpop.f32.mrf.mxu0
    %v420 = vadd.f32 %v176, %v419
    %v421 = vpop.f32.mrf.mxu0
    %v422 = vadd.f32 %v172, %v421
    %v423 = vpop.f32.mrf.mxu0
    %v424 = vadd.f32 %v176, %v423
    %425 = vmatprep.mubr.bf16.mxu0 0
    %426 = vmatmul.mubr.bf16.gmra.mxu0 %v207
    %v427 = vpop.f32.mrf.mxu0
    %v428 = vadd.f32 %v172, %v427
    %v429 = vpop.f32.mrf.mxu0
    %v430 = vadd.f32 %v176, %v429
    %v431 = vpop.f32.mrf.mxu0
    %v432 = vadd.f32 %v172, %v431
    %v433 = vpop.f32.mrf.mxu0
    %v434 = vadd.f32 %v176, %v433
    %435 = vmatprep.mubr.bf16.mxu0 0
    %436 = vmatmul.mubr.bf16.gmra.mxu0 %v208
    %v437 = vpop.f32.mrf.mxu0
    %v438 = vadd.f32 %v172, %v437
    %v439 = vpop.f32.mrf.mxu0
    %v440 = vadd.f32 %v176, %v439
    %v441 = vpop.f32.mrf.mxu0
    %v442 = vadd.f32 %v172, %v441
    %v443 = vpop.f32.mrf.mxu0
    %v444 = vadd.f32 %v176, %v443
    %445 = vdwg.mxu0
    %446 = vmatprep.subr.bf16.mxu0 %v340
    %447 = vmatpush1.bf16.msra.mxu0 %v339
    %448 = vmatprep.subr.bf16.mxu0 %v336
    %449 = vmatpush1.bf16.msra.mxu0 %v335
    %450 = vmatprep.subr.bf16.mxu0 %v332
    %451 = vmatpush1.bf16.msra.mxu0 %v331
    %452 = vmatprep.subr.bf16.mxu0 %v328
    %453 = vmatpush1.bf16.msra.mxu0 %v327
    %454 = vmatprep.subr.bf16.mxu0 %v324
    %455 = vmatpush1.bf16.msra.mxu0 %v323
    %456 = vmatprep.subr.bf16.mxu0 %v320
    %457 = vmatpush1.bf16.msra.mxu0 %v319
    %458 = vmatprep.subr.bf16.mxu0 %v316
    %459 = vmatpush1.bf16.msra.mxu0 %v315
    %460 = vmatprep.subr.bf16.mxu0 %v312
    %461 = vmatpush1.bf16.msra.mxu0 %v311
    %462 = vmatprep.subr.bf16.mxu0 0
    %463 = vmatpush2.bf16.msra.mxu0 0
    %464 = vmatprep.subr.bf16.mxu0 0
    %465 = vmatpush2.bf16.msra.mxu0 0
    %466 = vmatprep.subr.bf16.mxu0 0
    %467 = vmatpush2.bf16.msra.mxu0 0
    %468 = vmatprep.subr.bf16.mxu0 0
    %469 = vmatpush2.bf16.msra.mxu0 0
    %470 = vmatprep.subr.bf16.mxu0 0
    %471 = vmatpush2.bf16.msra.mxu0 0
    %472 = vmatprep.subr.bf16.mxu0 0
    %473 = vmatpush2.bf16.msra.mxu0 0
    %474 = vmatprep.subr.bf16.mxu0 0
    %475 = vmatpush2.bf16.msra.mxu0 0
    %476 = vmatprep.subr.bf16.mxu0 0
    %477 = vmatpush2.bf16.msra.mxu0 0
    %478 = vmatprep.mubr.bf16.mxu0 0
    %479 = vmatmul.mubr.bf16.gmra.mxu0 %v205
    %v480 = vpop.f32.mrf.mxu0
    %v481 = vadd.f32 %v180, %v480
    %v482 = vpop.f32.mrf.mxu0
    %v483 = vadd.f32 %v184, %v482
    %v484 = vpop.f32.mrf.mxu0
    %v485 = vadd.f32 %v180, %v484
    %v486 = vpop.f32.mrf.mxu0
    %v487 = vadd.f32 %v184, %v486
    %488 = vmatprep.mubr.bf16.mxu0 0
    %489 = vmatmul.mubr.bf16.gmra.mxu0 %v206
    %v490 = vpop.f32.mrf.mxu0
    %v491 = vadd.f32 %v180, %v490
    %v492 = vpop.f32.mrf.mxu0
    %v493 = vadd.f32 %v184, %v492
    %v494 = vpop.f32.mrf.mxu0
    %v495 = vadd.f32 %v180, %v494
    %v496 = vpop.f32.mrf.mxu0
    %v497 = vadd.f32 %v184, %v496
    %498 = vmatprep.mubr.bf16.mxu0 0
    %499 = vmatmul.mubr.bf16.gmra.mxu0 %v207
    %v500 = vpop.f32.mrf.mxu0
    %v501 = vadd.f32 %v180, %v500
    %v502 = vpop.f32.mrf.mxu0
    %v503 = vadd.f32 %v184, %v502
    %v504 = vpop.f32.mrf.mxu0
    %v505 = vadd.f32 %v180, %v504
    %v506 = vpop.f32.mrf.mxu0
    %v507 = vadd.f32 %v184, %v506
    %508 = vmatprep.mubr.bf16.mxu0 0
    %509 = vmatmul.mubr.bf16.gmra.mxu0 %v208
    %v510 = vpop.f32.mrf.mxu0
    %v511 = vadd.f32 %v180, %v510
    %v512 = vpop.f32.mrf.mxu0
    %v513 = vadd.f32 %v184, %v512
    %v514 = vpop.f32.mrf.mxu0
    %v515 = vadd.f32 %v180, %v514
    %v516 = vpop.f32.mrf.mxu0
    %v517 = vadd.f32 %v184, %v516
    %518 = vdwg.mxu0
    %519 = vst [vmem:[#allocation2] sm:$0xff] %v408
    %520 = vst [vmem:[#allocation2 + $0x8] sm:$0xff] %v410
    %521 = vst [vmem:[#allocation2 + $0x10] sm:$0xff] %v481
    %522 = vst [vmem:[#allocation2 + $0x18] sm:$0xff] %v483
    %523 = vst [vmem:[#allocation2 + $0x20] sm:$0xff] %v412
    %524 = vst [vmem:[#allocation2 + $0x28] sm:$0xff] %v414
    %525 = vst [vmem:[#allocation2 + $0x30] sm:$0xff] %v485
    %526 = vst [vmem:[#allocation2 + $0x38] sm:$0xff] %v487
    %527 = vst [vmem:[#allocation2 + $0x40] sm:$0xff] %v418
    %528 = vst [vmem:[#allocation2 + $0x48] sm:$0xff] %v420
    %529 = vst [vmem:[#allocation2 + $0x50] sm:$0xff] %v491
    %530 = vst [vmem:[#allocation2 + $0x58] sm:$0xff] %v493
    %531 = vst [vmem:[#allocation2 + $0x60] sm:$0xff] %v422
    %532 = vst [vmem:[#allocation2 + $0x68] sm:$0xff] %v424
    %533 = vst [vmem:[#allocation2 + $0x70] sm:$0xff] %v495
    %534 = vst [vmem:[#allocation2 + $0x78] sm:$0xff] %v497
    %535 = vst [vmem:[#allocation2 + $0x80] sm:$0xff] %v428
    %536 = vst [vmem:[#allocation2 + $0x88] sm:$0xff] %v430
    %537 = vst [vmem:[#allocation2 + $0x90] sm:$0xff] %v501
    %538 = vst [vmem:[#allocation2 + $0x98] sm:$0xff] %v503
    %539 = vst [vmem:[#allocation2 + $0xa0] sm:$0xff] %v432
    %540 = vst [vmem:[#allocation2 + $0xa8] sm:$0xff] %v434
    %541 = vst [vmem:[#allocation2 + $0xb0] sm:$0xff] %v505
    %542 = vst [vmem:[#allocation2 + $0xb8] sm:$0xff] %v507
    %543 = vst [vmem:[#allocation2 + $0xc0] sm:$0xff] %v438
    %544 = vst [vmem:[#allocation2 + $0xc8] sm:$0xff] %v440
    %545 = vst [vmem:[#allocation2 + $0xd0] sm:$0xff] %v511
    %546 = vst [vmem:[#allocation2 + $0xd8] sm:$0xff] %v513
    %547 = vst [vmem:[#allocation2 + $0xe0] sm:$0xff] %v442
    %548 = vst [vmem:[#allocation2 + $0xe8] sm:$0xff] %v444
    %549 = vst [vmem:[#allocation2 + $0xf0] sm:$0xff] %v515
    %550 = vst [vmem:[#allocation2 + $0xf8] sm:$0xff] %v517
    %v551 = vld [vmem:[#allocation12] sm:$0xff]
    %v552 = vld [vmem:[#allocation12 + $0x8] sm:$0xff]
    %v553 = vld [vmem:[#allocation12 + $0x10] sm:$0xff]
    %v554 = vld [vmem:[#allocation12 + $0x18] sm:$0xff]
    %v555 = vld [vmem:[#allocation12 + $0x20] sm:$0xff]
    %v556 = vld [vmem:[#allocation12 + $0x28] sm:$0xff]
    %v557 = vld [vmem:[#allocation12 + $0x30] sm:$0xff]
    %v558 = vld [vmem:[#allocation12 + $0x38] sm:$0xff]
    %v559 = vld [vmem:[#allocation12 + $0x40] sm:$0xff]
    %v560 = vld [vmem:[#allocation12 + $0x48] sm:$0xff]
    %v561 = vld [vmem:[#allocation12 + $0x50] sm:$0xff]
    %v562 = vld [vmem:[#allocation12 + $0x58] sm:$0xff]
    %v563 = vld [vmem:[#allocation12 + $0x60] sm:$0xff]
    %v564 = vld [vmem:[#allocation12 + $0x68] sm:$0xff]
    %v565 = vld [vmem:[#allocation12 + $0x70] sm:$0xff]
    %v566 = vld [vmem:[#allocation12 + $0x78] sm:$0xff]
    %v567 = vld [vmem:[#allocation12 + $0x80] sm:$0xff]
    %v568 = vld [vmem:[#allocation12 + $0x88] sm:$0xff]
    %v569 = vld [vmem:[#allocation12 + $0x90] sm:$0xff]
    %v570 = vld [vmem:[#allocation12 + $0x98] sm:$0xff]
    %v571 = vld [vmem:[#allocation12 + $0xa0] sm:$0xff]
    %v572 = vld [vmem:[#allocation12 + $0xa8] sm:$0xff]
    %v573 = vld [vmem:[#allocation12 + $0xb0] sm:$0xff]
    %v574 = vld [vmem:[#allocation12 + $0xb8] sm:$0xff]
    %v575 = vld [vmem:[#allocation12 + $0xc0] sm:$0xff]
    %v576 = vld [vmem:[#allocation12 + $0xc8] sm:$0xff]
    %v577 = vld [vmem:[#allocation12 + $0xd0] sm:$0xff]
    %v578 = vld [vmem:[#allocation12 + $0xd8] sm:$0xff]
    %v579 = vld [vmem:[#allocation12 + $0xe0] sm:$0xff]
    %v580 = vld [vmem:[#allocation12 + $0xe8] sm:$0xff]
    %v581 = vld [vmem:[#allocation12 + $0xf0] sm:$0xff]
    %v582 = vld [vmem:[#allocation12 + $0xf8] sm:$0xff]
    %v583 = vld [vmem:[#allocation13] sm:$0xff]
    %v584 = vld [vmem:[#allocation13 + $0x8] sm:$0xff]
    %v585 = vld [vmem:[#allocation13 + $0x10] sm:$0xff]
    %v586 = vld [vmem:[#allocation13 + $0x18] sm:$0xff]
    %v587 = vld [vmem:[#allocation13 + $0x20] sm:$0xff]
    %v588 = vld [vmem:[#allocation13 + $0x28] sm:$0xff]
    %v589 = vld [vmem:[#allocation13 + $0x30] sm:$0xff]
    %v590 = vld [vmem:[#allocation13 + $0x38] sm:$0xff]
    %v591 = vld [vmem:[#allocation13 + $0x40] sm:$0xff]
    %v592 = vld [vmem:[#allocation13 + $0x48] sm:$0xff]
    %v593 = vld [vmem:[#allocation13 + $0x50] sm:$0xff]
    %v594 = vld [vmem:[#allocation13 + $0x58] sm:$0xff]
    %v595 = vld [vmem:[#allocation13 + $0x60] sm:$0xff]
    %v596 = vld [vmem:[#allocation13 + $0x68] sm:$0xff]
    %v597 = vld [vmem:[#allocation13 + $0x70] sm:$0xff]
    %v598 = vld [vmem:[#allocation13 + $0x78] sm:$0xff]
    %v599 = vld [vmem:[#allocation13 + $0x80] sm:$0xff]
    %v600 = vld [vmem:[#allocation13 + $0x88] sm:$0xff]
    %v601 = vld [vmem:[#allocation13 + $0x90] sm:$0xff]
    %v602 = vld [vmem:[#allocation13 + $0x98] sm:$0xff]
    %v603 = vld [vmem:[#allocation13 + $0xa0] sm:$0xff]
    %v604 = vld [vmem:[#allocation13 + $0xa8] sm:$0xff]
    %v605 = vld [vmem:[#allocation13 + $0xb0] sm:$0xff]
    %v606 = vld [vmem:[#allocation13 + $0xb8] sm:$0xff]
    %v607 = vld [vmem:[#allocation13 + $0xc0] sm:$0xff]
    %v608 = vld [vmem:[#allocation13 + $0xc8] sm:$0xff]
    %v609 = vld [vmem:[#allocation13 + $0xd0] sm:$0xff]
    %v610 = vld [vmem:[#allocation13 + $0xd8] sm:$0xff]
    %v611 = vld [vmem:[#allocation13 + $0xe0] sm:$0xff]
    %v612 = vld [vmem:[#allocation13 + $0xe8] sm:$0xff]
    %v613 = vld [vmem:[#allocation13 + $0xf0] sm:$0xff]
    %v614 = vld [vmem:[#allocation13 + $0xf8] sm:$0xff]
    %v615 = vld [vmem:[#allocation13 + $0x100] sm:$0xff]
    %v616 = vld [vmem:[#allocation13 + $0x108] sm:$0xff]
    %v617 = vld [vmem:[#allocation13 + $0x110] sm:$0xff]
    %v618 = vld [vmem:[#allocation13 + $0x118] sm:$0xff]
    %v619 = vld [vmem:[#allocation13 + $0x120] sm:$0xff]
    %v620 = vld [vmem:[#allocation13 + $0x128] sm:$0xff]
    %v621 = vld [vmem:[#allocation13 + $0x130] sm:$0xff]
    %v622 = vld [vmem:[#allocation13 + $0x138] sm:$0xff]
    %v623 = vld [vmem:[#allocation13 + $0x140] sm:$0xff]
    %v624 = vld [vmem:[#allocation13 + $0x148] sm:$0xff]
    %v625 = vld [vmem:[#allocation13 + $0x150] sm:$0xff]
    %v626 = vld [vmem:[#allocation13 + $0x158] sm:$0xff]
    %v627 = vld [vmem:[#allocation13 + $0x160] sm:$0xff]
    %v628 = vld [vmem:[#allocation13 + $0x168] sm:$0xff]
    %v629 = vld [vmem:[#allocation13 + $0x170] sm:$0xff]
    %v630 = vld [vmem:[#allocation13 + $0x178] sm:$0xff]
    %v631 = vld [vmem:[#allocation13 + $0x180] sm:$0xff]
    %v632 = vld [vmem:[#allocation13 + $0x188] sm:$0xff]
    %v633 = vld [vmem:[#allocation13 + $0x190] sm:$0xff]
    %v634 = vld [vmem:[#allocation13 + $0x198] sm:$0xff]
    %v635 = vld [vmem:[#allocation13 + $0x1a0] sm:$0xff]
    %v636 = vld [vmem:[#allocation13 + $0x1a8] sm:$0xff]
    %v637 = vld [vmem:[#allocation13 + $0x1b0] sm:$0xff]
    %v638 = vld [vmem:[#allocation13 + $0x1b8] sm:$0xff]
    %v639 = vld [vmem:[#allocation13 + $0x1c0] sm:$0xff]
    %v640 = vld [vmem:[#allocation13 + $0x1c8] sm:$0xff]
    %v641 = vld [vmem:[#allocation13 + $0x1d0] sm:$0xff]
    %v642 = vld [vmem:[#allocation13 + $0x1d8] sm:$0xff]
    %v643 = vld [vmem:[#allocation13 + $0x1e0] sm:$0xff]
    %v644 = vld [vmem:[#allocation13 + $0x1e8] sm:$0xff]
    %v645 = vld [vmem:[#allocation13 + $0x1f0] sm:$0xff]
    %v646 = vld [vmem:[#allocation13 + $0x1f8] sm:$0xff]
    %v647 = vld [vmem:[%s6] sm:$0xf]
    %v648 = vld [vmem:[%s0] sm:$0xff]
    %649 = vset.pattern.permute.xlu0 0
    %650 = vperm.xlu0 %649, %v648
    %v651 = vpop.permute.xlu0 %650
    %s652 = smul.u32 0, 8
    %v653 = vstv %s652
    %vm654 = vcmp.lt.s32.totalorder %v653, %v651
    %v655 = vld [vmem:[#allocation3] sm:$0xff]
    %v656 = vld [vmem:[#allocation4] sm:$0xff]
    %s657 = smul.u32 0, 4
    %s658 = smul.addr %s657, 8
    %s659 = scalar_lea.vmem [#allocation2], %s658
    %v660 = vld [vmem:[%s659] sm:$0xff]
    %v661 = vld [vmem:[%s659 + $0x8] sm:$0xff]
    %v662 = vld [vmem:[%s659 + $0x10] sm:$0xff]
    %v663 = vld [vmem:[%s659 + $0x18] sm:$0xff]
    %v664 = vpack.c.bf16 %v655, %v655
    %v697 = vunpack.c.l.b16 %v551
    %v698 = vunpack.c.h.b16 %v551
    %v699 = vunpack.c.l.b16 %v552
    %v700 = vunpack.c.h.b16 %v552
    %v701 = vunpack.c.l.b16 %v553
    %v702 = vunpack.c.h.b16 %v553
    %v703 = vunpack.c.l.b16 %v554
    %v704 = vunpack.c.h.b16 %v554
    %v705 = vunpack.c.l.b16 %v555
    %v706 = vunpack.c.h.b16 %v555
    %v707 = vunpack.c.l.b16 %v556
    %v708 = vunpack.c.h.b16 %v556
    %v709 = vunpack.c.l.b16 %v557
    %v710 = vunpack.c.h.b16 %v557
    %v711 = vunpack.c.l.b16 %v558
    %v712 = vunpack.c.h.b16 %v558
    %v713 = vunpack.c.l.b16 %v559
    %v714 = vunpack.c.h.b16 %v559
    %v715 = vunpack.c.l.b16 %v560
    %v716 = vunpack.c.h.b16 %v560
    %v717 = vunpack.c.l.b16 %v561
    %v718 = vunpack.c.h.b16 %v561
    %v719 = vunpack.c.l.b16 %v562
    %v720 = vunpack.c.h.b16 %v562
    %v721 = vunpack.c.l.b16 %v563
    %v722 = vunpack.c.h.b16 %v563
    %v723 = vunpack.c.l.b16 %v564
    %v724 = vunpack.c.h.b16 %v564
    %v725 = vunpack.c.l.b16 %v565
    %v726 = vunpack.c.h.b16 %v565
    %v727 = vunpack.c.l.b16 %v566
    %v728 = vunpack.c.h.b16 %v566
    %v729 = vunpack.c.l.b16 %v567
    %v730 = vunpack.c.h.b16 %v567
    %v731 = vunpack.c.l.b16 %v568
    %v732 = vunpack.c.h.b16 %v568
    %v733 = vunpack.c.l.b16 %v569
    %v734 = vunpack.c.h.b16 %v569
    %v735 = vunpack.c.l.b16 %v570
    %v736 = vunpack.c.h.b16 %v570
    %v737 = vunpack.c.l.b16 %v571
    %v738 = vunpack.c.h.b16 %v571
    %v739 = vunpack.c.l.b16 %v572
    %v740 = vunpack.c.h.b16 %v572
    %v741 = vunpack.c.l.b16 %v573
    %v742 = vunpack.c.h.b16 %v573
    %v743 = vunpack.c.l.b16 %v574
    %v744 = vunpack.c.h.b16 %v574
    %v745 = vunpack.c.l.b16 %v575
    %v746 = vunpack.c.h.b16 %v575
    %v747 = vunpack.c.l.b16 %v576
    %v748 = vunpack.c.h.b16 %v576
    %v749 = vunpack.c.l.b16 %v577
    %v750 = vunpack.c.h.b16 %v577
    %v751 = vunpack.c.l.b16 %v578
    %v752 = vunpack.c.h.b16 %v578
    %v753 = vunpack.c.l.b16 %v579
    %v754 = vunpack.c.h.b16 %v579
    %v755 = vunpack.c.l.b16 %v580
    %v756 = vunpack.c.h.b16 %v580
    %v757 = vunpack.c.l.b16 %v581
    %v758 = vunpack.c.h.b16 %v581
    %v759 = vunpack.c.l.b16 %v582
    %v760 = vunpack.c.h.b16 %v582
    %v761 = vpack.c.b16 %v701, %v697
    %v762 = vpack.c.b16 %v702, %v698
    %v763 = vpack.c.b16 %v703, %v699
    %v764 = vpack.c.b16 %v704, %v700
    %v765 = vpack.c.b16 %v709, %v705
    %v766 = vpack.c.b16 %v710, %v706
    %v767 = vpack.c.b16 %v711, %v707
    %v768 = vpack.c.b16 %v712, %v708
    %v769 = vpack.c.b16 %v717, %v713
    %v770 = vpack.c.b16 %v718, %v714
    %v771 = vpack.c.b16 %v719, %v715
    %v772 = vpack.c.b16 %v720, %v716
    %v773 = vpack.c.b16 %v725, %v721
    %v774 = vpack.c.b16 %v726, %v722
    %v775 = vpack.c.b16 %v727, %v723
    %v776 = vpack.c.b16 %v728, %v724
    %v777 = vpack.c.b16 %v733, %v729
    %v778 = vpack.c.b16 %v734, %v730
    %v779 = vpack.c.b16 %v735, %v731
    %v780 = vpack.c.b16 %v736, %v732
    %v781 = vpack.c.b16 %v741, %v737
    %v782 = vpack.c.b16 %v742, %v738
    %v783 = vpack.c.b16 %v743, %v739
    %v784 = vpack.c.b16 %v744, %v740
    %v785 = vpack.c.b16 %v749, %v745
    %v786 = vpack.c.b16 %v750, %v746
    %v787 = vpack.c.b16 %v751, %v747
    %v788 = vpack.c.b16 %v752, %v748
    %v789 = vpack.c.b16 %v757, %v753
    %v790 = vpack.c.b16 %v758, %v754
    %v791 = vpack.c.b16 %v759, %v755
    %v792 = vpack.c.b16 %v760, %v756
    %825 = vmatprep.subr.bf16.mxu0 %v790
    %826 = vmatpush1.bf16.msra.mxu0 %v789
    %827 = vmatprep.subr.bf16.mxu0 %v786
    %828 = vmatpush1.bf16.msra.mxu0 %v785
    %829 = vmatprep.subr.bf16.mxu0 %v782
    %830 = vmatpush1.bf16.msra.mxu0 %v781
    %831 = vmatprep.subr.bf16.mxu0 %v778
    %832 = vmatpush1.bf16.msra.mxu0 %v777
    %833 = vmatprep.subr.bf16.mxu0 %v774
    %834 = vmatpush1.bf16.msra.mxu0 %v773
    %835 = vmatprep.subr.bf16.mxu0 %v770
    %836 = vmatpush1.bf16.msra.mxu0 %v769
    %837 = vmatprep.subr.bf16.mxu0 %v766
    %838 = vmatpush1.bf16.msra.mxu0 %v765
    %839 = vmatprep.subr.bf16.mxu0 %v762
    %840 = vmatpush1.bf16.msra.mxu0 %v761
    %841 = vmatprep.subr.bf16.mxu0 0
    %842 = vmatpush2.bf16.msra.mxu0 0
    %843 = vmatprep.subr.bf16.mxu0 0
    %844 = vmatpush2.bf16.msra.mxu0 0
    %845 = vmatprep.subr.bf16.mxu0 0
    %846 = vmatpush2.bf16.msra.mxu0 0
    %847 = vmatprep.subr.bf16.mxu0 0
    %848 = vmatpush2.bf16.msra.mxu0 0
    %849 = vmatprep.subr.bf16.mxu0 0
    %850 = vmatpush2.bf16.msra.mxu0 0
    %851 = vmatprep.subr.bf16.mxu0 0
    %852 = vmatpush2.bf16.msra.mxu0 0
    %853 = vmatprep.subr.bf16.mxu0 0
    %854 = vmatpush2.bf16.msra.mxu0 0
    %855 = vmatprep.subr.bf16.mxu0 0
    %856 = vmatpush2.bf16.msra.mxu0 0
    %857 = vmatprep.mubr.bf16.mxu0 0
    %858 = vmatmul.mubr.bf16.gmra.mxu0 %v664
    %v859 = vpop.f32.mrf.mxu0
    %v860 = vadd.f32 0.0, %v859
    %v861 = vpop.f32.mrf.mxu0
    %v862 = vadd.f32 0.0, %v861
    %v863 = vpop.f32.mrf.mxu0
    %v864 = vpop.f32.mrf.mxu0
    %865 = vdwg.mxu0
    %866 = vmatprep.subr.bf16.mxu0 %v792
    %867 = vmatpush1.bf16.msra.mxu0 %v791
    %868 = vmatprep.subr.bf16.mxu0 %v788
    %869 = vmatpush1.bf16.msra.mxu0 %v787
    %870 = vmatprep.subr.bf16.mxu0 %v784
    %871 = vmatpush1.bf16.msra.mxu0 %v783
    %872 = vmatprep.subr.bf16.mxu0 %v780
    %873 = vmatpush1.bf16.msra.mxu0 %v779
    %874 = vmatprep.subr.bf16.mxu0 %v776
    %875 = vmatpush1.bf16.msra.mxu0 %v775
    %876 = vmatprep.subr.bf16.mxu0 %v772
    %877 = vmatpush1.bf16.msra.mxu0 %v771
    %878 = vmatprep.subr.bf16.mxu0 %v768
    %879 = vmatpush1.bf16.msra.mxu0 %v767
    %880 = vmatprep.subr.bf16.mxu0 %v764
    %881 = vmatpush1.bf16.msra.mxu0 %v763
    %882 = vmatprep.subr.bf16.mxu0 0
    %883 = vmatpush2.bf16.msra.mxu0 0
    %884 = vmatprep.subr.bf16.mxu0 0
    %885 = vmatpush2.bf16.msra.mxu0 0
    %886 = vmatprep.subr.bf16.mxu0 0
    %887 = vmatpush2.bf16.msra.mxu0 0
    %888 = vmatprep.subr.bf16.mxu0 0
    %889 = vmatpush2.bf16.msra.mxu0 0
    %890 = vmatprep.subr.bf16.mxu0 0
    %891 = vmatpush2.bf16.msra.mxu0 0
    %892 = vmatprep.subr.bf16.mxu0 0
    %893 = vmatpush2.bf16.msra.mxu0 0
    %894 = vmatprep.subr.bf16.mxu0 0
    %895 = vmatpush2.bf16.msra.mxu0 0
    %896 = vmatprep.subr.bf16.mxu0 0
    %897 = vmatpush2.bf16.msra.mxu0 0
    %898 = vmatprep.mubr.bf16.mxu0 0
    %899 = vmatmul.mubr.bf16.gmra.mxu0 %v664
    %v900 = vpop.f32.mrf.mxu0
    %v901 = vadd.f32 0.0, %v900
    %v902 = vpop.f32.mrf.mxu0
    %v903 = vadd.f32 0.0, %v902
    %v904 = vpop.f32.mrf.mxu0
    %v905 = vpop.f32.mrf.mxu0
    %906 = vdwg.mxu0
    %v907 = vadd.f32 %v660, %v860
    %v908 = vadd.f32 %v661, %v862
    %v909 = vadd.f32 %v662, %v901
    %v910 = vadd.f32 %v663, %v903
    %v911 = vxor.u32 %v907, 2147483648
    %v912 = vmul.f32 %v911, 1.442695
    %v913 = vpow.pop %v912
    %v914 = vadd.f32 %v913, 1.0
    %v915 = vrcp.pop %v914
    %v916 = vmul.f32 1.0, %v915
    %v917 = vxor.u32 %v908, 2147483648
    %v918 = vmul.f32 %v917, 1.442695
    %v919 = vpow.pop %v918
    %v920 = vadd.f32 %v919, 1.0
    %v921 = vrcp.pop %v920
    %v922 = vmul.f32 1.0, %v921
    %v923 = vtanh.pop %v909
    %v924 = vxor.u32 %v910, 2147483648
    %v925 = vmul.f32 %v924, 1.442695
    %v926 = vpow.pop %v925
    %v927 = vadd.f32 %v926, 1.0
    %v928 = vrcp.pop %v927
    %v929 = vmul.f32 1.0, %v928
    %v930 = vmul.f32 %v922, %v656
    %v931 = vmul.f32 %v916, %v923
    %v932 = vadd.f32 %v930, %v931
    %v933 = vtanh.pop %v932
    %v934 = vmul.f32 %v929, %v933
    %v935 = vsel %vm654, %v934, %v655
    %936 = vst [vmem:[#allocation3] sm:$0xff] %v935
    %v937 = vsel %vm654, %v932, %v656
    %938 = vst [vmem:[#allocation4] sm:$0xff] %v937
    %v939 = vld [vmem:[#allocation5] sm:$0xff]
    %v940 = vld [vmem:[#allocation6] sm:$0xff]
    %v941 = vpack.c.bf16 %v935, %v935
    %v942 = vpack.c.bf16 %v939, %v939
    %v944 = vlaneseq
    %v945 = vshrl.u32 %v944, 7
    %v946 = vsub.s32 0, %v945
    %v947 = vrot.slane %v647, %v946
    %v948 = vlaneseq
    %v949 = vshrl.u32 %v948, 7
    %v950 = vsub.s32 1, %v949
    %v951 = vrot.slane %v647, %v950
    %v952 = vlaneseq
    %v953 = vshrl.u32 %v952, 7
    %v954 = vsub.s32 2, %v953
    %v955 = vrot.slane %v647, %v954
    %v956 = vlaneseq
    %v957 = vshrl.u32 %v956, 7
    %v958 = vsub.s32 3, %v957
    %v959 = vrot.slane %v647, %v958
    %v1028 = vunpack.c.l.b16 %v583
    %v1029 = vunpack.c.h.b16 %v583
    %v1030 = vunpack.c.l.b16 %v584
    %v1031 = vunpack.c.h.b16 %v584
    %v1032 = vunpack.c.l.b16 %v585
    %v1033 = vunpack.c.h.b16 %v585
    %v1034 = vunpack.c.l.b16 %v586
    %v1035 = vunpack.c.h.b16 %v586
    %v1036 = vunpack.c.l.b16 %v587
    %v1037 = vunpack.c.h.b16 %v587
    %v1038 = vunpack.c.l.b16 %v588
    %v1039 = vunpack.c.h.b16 %v588
    %v1040 = vunpack.c.l.b16 %v589
    %v1041 = vunpack.c.h.b16 %v589
    %v1042 = vunpack.c.l.b16 %v590
    %v1043 = vunpack.c.h.b16 %v590
    %v1044 = vunpack.c.l.b16 %v591
    %v1045 = vunpack.c.h.b16 %v591
    %v1046 = vunpack.c.l.b16 %v592
    %v1047 = vunpack.c.h.b16 %v592
    %v1048 = vunpack.c.l.b16 %v593
    %v1049 = vunpack.c.h.b16 %v593
    %v1050 = vunpack.c.l.b16 %v594
    %v1051 = vunpack.c.h.b16 %v594
    %v1052 = vunpack.c.l.b16 %v595
    %v1053 = vunpack.c.h.b16 %v595
    %v1054 = vunpack.c.l.b16 %v596
    %v1055 = vunpack.c.h.b16 %v596
    %v1056 = vunpack.c.l.b16 %v597
    %v1057 = vunpack.c.h.b16 %v597
    %v1058 = vunpack.c.l.b16 %v598
    %v1059 = vunpack.c.h.b16 %v598
    %v1060 = vunpack.c.l.b16 %v599
    %v1061 = vunpack.c.h.b16 %v599
    %v1062 = vunpack.c.l.b16 %v600
    %v1063 = vunpack.c.h.b16 %v600
    %v1064 = vunpack.c.l.b16 %v601
    %v1065 = vunpack.c.h.b16 %v601
    %v1066 = vunpack.c.l.b16 %v602
    %v1067 = vunpack.c.h.b16 %v602
    %v1068 = vunpack.c.l.b16 %v603
    %v1069 = vunpack.c.h.b16 %v603
    %v1070 = vunpack.c.l.b16 %v604
    %v1071 = vunpack.c.h.b16 %v604
    %v1072 = vunpack.c.l.b16 %v605
    %v1073 = vunpack.c.h.b16 %v605
    %v1074 = vunpack.c.l.b16 %v606
    %v1075 = vunpack.c.h.b16 %v606
    %v1076 = vunpack.c.l.b16 %v607
    %v1077 = vunpack.c.h.b16 %v607
    %v1078 = vunpack.c.l.b16 %v608
    %v1079 = vunpack.c.h.b16 %v608
    %v1080 = vunpack.c.l.b16 %v609
    %v1081 = vunpack.c.h.b16 %v609
    %v1082 = vunpack.c.l.b16 %v610
    %v1083 = vunpack.c.h.b16 %v610
    %v1084 = vunpack.c.l.b16 %v611
    %v1085 = vunpack.c.h.b16 %v611
    %v1086 = vunpack.c.l.b16 %v612
    %v1087 = vunpack.c.h.b16 %v612
    %v1088 = vunpack.c.l.b16 %v613
    %v1089 = vunpack.c.h.b16 %v613
    %v1090 = vunpack.c.l.b16 %v614
    %v1091 = vunpack.c.h.b16 %v614
    %v1092 = vunpack.c.l.b16 %v615
    %v1093 = vunpack.c.h.b16 %v615
    %v1094 = vunpack.c.l.b16 %v616
    %v1095 = vunpack.c.h.b16 %v616
    %v1096 = vunpack.c.l.b16 %v617
    %v1097 = vunpack.c.h.b16 %v617
    %v1098 = vunpack.c.l.b16 %v618
    %v1099 = vunpack.c.h.b16 %v618
    %v1100 = vunpack.c.l.b16 %v619
    %v1101 = vunpack.c.h.b16 %v619
    %v1102 = vunpack.c.l.b16 %v620
    %v1103 = vunpack.c.h.b16 %v620
    %v1104 = vunpack.c.l.b16 %v621
    %v1105 = vunpack.c.h.b16 %v621
    %v1106 = vunpack.c.l.b16 %v622
    %v1107 = vunpack.c.h.b16 %v622
    %v1108 = vunpack.c.l.b16 %v623
    %v1109 = vunpack.c.h.b16 %v623
    %v1110 = vunpack.c.l.b16 %v624
    %v1111 = vunpack.c.h.b16 %v624
    %v1112 = vunpack.c.l.b16 %v625
    %v1113 = vunpack.c.h.b16 %v625
    %v1114 = vunpack.c.l.b16 %v626
    %v1115 = vunpack.c.h.b16 %v626
    %v1116 = vunpack.c.l.b16 %v627
    %v1117 = vunpack.c.h.b16 %v627
    %v1118 = vunpack.c.l.b16 %v628
    %v1119 = vunpack.c.h.b16 %v628
    %v1120 = vunpack.c.l.b16 %v629
    %v1121 = vunpack.c.h.b16 %v629
    %v1122 = vunpack.c.l.b16 %v630
    %v1123 = vunpack.c.h.b16 %v630
    %v1124 = vunpack.c.l.b16 %v631
    %v1125 = vunpack.c.h.b16 %v631
    %v1126 = vunpack.c.l.b16 %v632
    %v1127 = vunpack.c.h.b16 %v632
    %v1128 = vunpack.c.l.b16 %v633
    %v1129 = vunpack.c.h.b16 %v633
    %v1130 = vunpack.c.l.b16 %v634
    %v1131 = vunpack.c.h.b16 %v634
    %v1132 = vunpack.c.l.b16 %v635
    %v1133 = vunpack.c.h.b16 %v635
    %v1134 = vunpack.c.l.b16 %v636
    %v1135 = vunpack.c.h.b16 %v636
    %v1136 = vunpack.c.l.b16 %v637
    %v1137 = vunpack.c.h.b16 %v637
    %v1138 = vunpack.c.l.b16 %v638
    %v1139 = vunpack.c.h.b16 %v638
    %v1140 = vunpack.c.l.b16 %v639
    %v1141 = vunpack.c.h.b16 %v639
    %v1142 = vunpack.c.l.b16 %v640
    %v1143 = vunpack.c.h.b16 %v640
    %v1144 = vunpack.c.l.b16 %v641
    %v1145 = vunpack.c.h.b16 %v641
    %v1146 = vunpack.c.l.b16 %v642
    %v1147 = vunpack.c.h.b16 %v642
    %v1148 = vunpack.c.l.b16 %v643
    %v1149 = vunpack.c.h.b16 %v643
    %v1150 = vunpack.c.l.b16 %v644
    %v1151 = vunpack.c.h.b16 %v644
    %v1152 = vunpack.c.l.b16 %v645
    %v1153 = vunpack.c.h.b16 %v645
    %v1154 = vunpack.c.l.b16 %v646
    %v1155 = vunpack.c.h.b16 %v646
    %v1156 = vpack.c.b16 %v1032, %v1028
    %v1157 = vpack.c.b16 %v1033, %v1029
    %v1158 = vpack.c.b16 %v1034, %v1030
    %v1159 = vpack.c.b16 %v1035, %v1031
    %v1160 = vpack.c.b16 %v1040, %v1036
    %v1161 = vpack.c.b16 %v1041, %v1037
    %v1162 = vpack.c.b16 %v1042, %v1038
    %v1163 = vpack.c.b16 %v1043, %v1039
    %v1164 = vpack.c.b16 %v1048, %v1044
    %v1165 = vpack.c.b16 %v1049, %v1045
    %v1166 = vpack.c.b16 %v1050, %v1046
    %v1167 = vpack.c.b16 %v1051, %v1047
    %v1168 = vpack.c.b16 %v1056, %v1052
    %v1169 = vpack.c.b16 %v1057, %v1053
    %v1170 = vpack.c.b16 %v1058, %v1054
    %v1171 = vpack.c.b16 %v1059, %v1055
    %v1172 = vpack.c.b16 %v1064, %v1060
    %v1173 = vpack.c.b16 %v1065, %v1061
    %v1174 = vpack.c.b16 %v1066, %v1062
    %v1175 = vpack.c.b16 %v1067, %v1063
    %v1176 = vpack.c.b16 %v1072, %v1068
    %v1177 = vpack.c.b16 %v1073, %v1069
    %v1178 = vpack.c.b16 %v1074, %v1070
    %v1179 = vpack.c.b16 %v1075, %v1071
    %v1180 = vpack.c.b16 %v1080, %v1076
    %v1181 = vpack.c.b16 %v1081, %v1077
    %v1182 = vpack.c.b16 %v1082, %v1078
    %v1183 = vpack.c.b16 %v1083, %v1079
    %v1184 = vpack.c.b16 %v1088, %v1084
    %v1185 = vpack.c.b16 %v1089, %v1085
    %v1186 = vpack.c.b16 %v1090, %v1086
    %v1187 = vpack.c.b16 %v1091, %v1087
    %v1188 = vpack.c.b16 %v1096, %v1092
    %v1189 = vpack.c.b16 %v1097, %v1093
    %v1190 = vpack.c.b16 %v1098, %v1094
    %v1191 = vpack.c.b16 %v1099, %v1095
    %v1192 = vpack.c.b16 %v1104, %v1100
    %v1193 = vpack.c.b16 %v1105, %v1101
    %v1194 = vpack.c.b16 %v1106, %v1102
    %v1195 = vpack.c.b16 %v1107, %v1103
    %v1196 = vpack.c.b16 %v1112, %v1108
    %v1197 = vpack.c.b16 %v1113, %v1109
    %v1198 = vpack.c.b16 %v1114, %v1110
    %v1199 = vpack.c.b16 %v1115, %v1111
    %v1200 = vpack.c.b16 %v1120, %v1116
    %v1201 = vpack.c.b16 %v1121, %v1117
    %v1202 = vpack.c.b16 %v1122, %v1118
    %v1203 = vpack.c.b16 %v1123, %v1119
    %v1204 = vpack.c.b16 %v1128, %v1124
    %v1205 = vpack.c.b16 %v1129, %v1125
    %v1206 = vpack.c.b16 %v1130, %v1126
    %v1207 = vpack.c.b16 %v1131, %v1127
    %v1208 = vpack.c.b16 %v1136, %v1132
    %v1209 = vpack.c.b16 %v1137, %v1133
    %v1210 = vpack.c.b16 %v1138, %v1134
    %v1211 = vpack.c.b16 %v1139, %v1135
    %v1212 = vpack.c.b16 %v1144, %v1140
    %v1213 = vpack.c.b16 %v1145, %v1141
    %v1214 = vpack.c.b16 %v1146, %v1142
    %v1215 = vpack.c.b16 %v1147, %v1143
    %v1216 = vpack.c.b16 %v1152, %v1148
    %v1217 = vpack.c.b16 %v1153, %v1149
    %v1218 = vpack.c.b16 %v1154, %v1150
    %v1219 = vpack.c.b16 %v1155, %v1151
    %1284 = vmatprep.subr.bf16.mxu0 %v1185
    %1285 = vmatpush1.bf16.msra.mxu0 %v1184
    %1286 = vmatprep.subr.bf16.mxu0 %v1181
    %1287 = vmatpush1.bf16.msra.mxu0 %v1180
    %1288 = vmatprep.subr.bf16.mxu0 %v1177
    %1289 = vmatpush1.bf16.msra.mxu0 %v1176
    %1290 = vmatprep.subr.bf16.mxu0 %v1173
    %1291 = vmatpush1.bf16.msra.mxu0 %v1172
    %1292 = vmatprep.subr.bf16.mxu0 %v1169
    %1293 = vmatpush1.bf16.msra.mxu0 %v1168
    %1294 = vmatprep.subr.bf16.mxu0 %v1165
    %1295 = vmatpush1.bf16.msra.mxu0 %v1164
    %1296 = vmatprep.subr.bf16.mxu0 %v1161
    %1297 = vmatpush1.bf16.msra.mxu0 %v1160
    %1298 = vmatprep.subr.bf16.mxu0 %v1157
    %1299 = vmatpush1.bf16.msra.mxu0 %v1156
    %1300 = vmatprep.subr.bf16.mxu0 %v1217
    %1301 = vmatpush2.bf16.msra.mxu0 %v1216
    %1302 = vmatprep.subr.bf16.mxu0 %v1213
    %1303 = vmatpush2.bf16.msra.mxu0 %v1212
    %1304 = vmatprep.subr.bf16.mxu0 %v1209
    %1305 = vmatpush2.bf16.msra.mxu0 %v1208
    %1306 = vmatprep.subr.bf16.mxu0 %v1205
    %1307 = vmatpush2.bf16.msra.mxu0 %v1204
    %1308 = vmatprep.subr.bf16.mxu0 %v1201
    %1309 = vmatpush2.bf16.msra.mxu0 %v1200
    %1310 = vmatprep.subr.bf16.mxu0 %v1197
    %1311 = vmatpush2.bf16.msra.mxu0 %v1196
    %1312 = vmatprep.subr.bf16.mxu0 %v1193
    %1313 = vmatpush2.bf16.msra.mxu0 %v1192
    %1314 = vmatprep.subr.bf16.mxu0 %v1189
    %1315 = vmatpush2.bf16.msra.mxu0 %v1188
    %1316 = vmatprep.mubr.bf16.mxu0 %v942
    %1317 = vmatmul.mubr.bf16.gmra.mxu0 %v941
    %v1318 = vpop.f32.mrf.mxu0
    %v1319 = vadd.f32 %v947, %v1318
    %v1320 = vpop.f32.mrf.mxu0
    %v1321 = vadd.f32 %v951, %v1320
    %v1322 = vpop.f32.mrf.mxu0
    %v1323 = vpop.f32.mrf.mxu0
    %1324 = vdwg.mxu0
    %1325 = vmatprep.subr.bf16.mxu0 %v1187
    %1326 = vmatpush1.bf16.msra.mxu0 %v1186
    %1327 = vmatprep.subr.bf16.mxu0 %v1183
    %1328 = vmatpush1.bf16.msra.mxu0 %v1182
    %1329 = vmatprep.subr.bf16.mxu0 %v1179
    %1330 = vmatpush1.bf16.msra.mxu0 %v1178
    %1331 = vmatprep.subr.bf16.mxu0 %v1175
    %1332 = vmatpush1.bf16.msra.mxu0 %v1174
    %1333 = vmatprep.subr.bf16.mxu0 %v1171
    %1334 = vmatpush1.bf16.msra.mxu0 %v1170
    %1335 = vmatprep.subr.bf16.mxu0 %v1167
    %1336 = vmatpush1.bf16.msra.mxu0 %v1166
    %1337 = vmatprep.subr.bf16.mxu0 %v1163
    %1338 = vmatpush1.bf16.msra.mxu0 %v1162
    %1339 = vmatprep.subr.bf16.mxu0 %v1159
    %1340 = vmatpush1.bf16.msra.mxu0 %v1158
    %1341 = vmatprep.subr.bf16.mxu0 %v1219
    %1342 = vmatpush2.bf16.msra.mxu0 %v1218
    %1343 = vmatprep.subr.bf16.mxu0 %v1215
    %1344 = vmatpush2.bf16.msra.mxu0 %v1214
    %1345 = vmatprep.subr.bf16.mxu0 %v1211
    %1346 = vmatpush2.bf16.msra.mxu0 %v1210
    %1347 = vmatprep.subr.bf16.mxu0 %v1207
    %1348 = vmatpush2.bf16.msra.mxu0 %v1206
    %1349 = vmatprep.subr.bf16.mxu0 %v1203
    %1350 = vmatpush2.bf16.msra.mxu0 %v1202
    %1351 = vmatprep.subr.bf16.mxu0 %v1199
    %1352 = vmatpush2.bf16.msra.mxu0 %v1198
    %1353 = vmatprep.subr.bf16.mxu0 %v1195
    %1354 = vmatpush2.bf16.msra.mxu0 %v1194
    %1355 = vmatprep.subr.bf16.mxu0 %v1191
    %1356 = vmatpush2.bf16.msra.mxu0 %v1190
    %1357 = vmatprep.mubr.bf16.mxu0 %v942
    %1358 = vmatmul.mubr.bf16.gmra.mxu0 %v941
    %v1359 = vpop.f32.mrf.mxu0
    %v1360 = vadd.f32 %v955, %v1359
    %v1361 = vpop.f32.mrf.mxu0
    %v1362 = vadd.f32 %v959, %v1361
    %v1363 = vpop.f32.mrf.mxu0
    %v1364 = vpop.f32.mrf.mxu0
    %1365 = vdwg.mxu0
    %v1366 = vxor.u32 %v1319, 2147483648
    %v1367 = vmul.f32 %v1366, 1.442695
    %v1368 = vpow.pop %v1367
    %v1369 = vadd.f32 %v1368, 1.0
    %v1370 = vrcp.pop %v1369
    %v1371 = vmul.f32 1.0, %v1370
    %v1372 = vxor.u32 %v1321, 2147483648
    %v1373 = vmul.f32 %v1372, 1.442695
    %v1374 = vpow.pop %v1373
    %v1375 = vadd.f32 %v1374, 1.0
    %v1376 = vrcp.pop %v1375
    %v1377 = vmul.f32 1.0, %v1376
    %v1378 = vtanh.pop %v1360
    %v1379 = vxor.u32 %v1362, 2147483648
    %v1380 = vmul.f32 %v1379, 1.442695
    %v1381 = vpow.pop %v1380
    %v1382 = vadd.f32 %v1381, 1.0
    %v1383 = vrcp.pop %v1382
    %v1384 = vmul.f32 1.0, %v1383
    %v1385 = vmul.f32 %v1377, %v940
    %v1386 = vmul.f32 %v1371, %v1378
    %v1387 = vadd.f32 %v1385, %v1386
    %v1388 = vtanh.pop %v1387
    %v1389 = vmul.f32 %v1384, %v1388
    %v1390 = vsel %vm654, %v1389, %v939
    %1391 = vst [vmem:[#allocation5] sm:$0xff] %v1390
    %v1392 = vsel %vm654, %v1387, %v940
    %1393 = vst [vmem:[#allocation6] sm:$0xff] %v1392
    %s1394 = sadd.s32 %s652, 1
    %v1395 = vstv %s1394
    %vm1396 = vcmp.lt.s32.totalorder %v1395, %v651
    %v1397 = vld [vmem:[#allocation3] sm:$0xff]
    %v1398 = vld [vmem:[#allocation4] sm:$0xff]
    %s1399 = smul.u32 1, 4
    %s1400 = smul.addr %s1399, 8
    %s1401 = scalar_lea.vmem [#allocation2], %s1400
    %v1402 = vld [vmem:[%s1401] sm:$0xff]
    %v1403 = vld [vmem:[%s1401 + $0x8] sm:$0xff]
    %v1404 = vld [vmem:[%s1401 + $0x10] sm:$0xff]
    %v1405 = vld [vmem:[%s1401 + $0x18] sm:$0xff]
    %v1406 = vpack.c.bf16 %v1397, %v1397
    %1407 = vmatprep.subr.bf16.mxu0 %v790
    %1408 = vmatpush1.bf16.msra.mxu0 %v789
    %1409 = vmatprep.subr.bf16.mxu0 %v786
    %1410 = vmatpush1.bf16.msra.mxu0 %v785
    %1411 = vmatprep.subr.bf16.mxu0 %v782
    %1412 = vmatpush1.bf16.msra.mxu0 %v781
    %1413 = vmatprep.subr.bf16.mxu0 %v778
    %1414 = vmatpush1.bf16.msra.mxu0 %v777
    %1415 = vmatprep.subr.bf16.mxu0 %v774
    %1416 = vmatpush1.bf16.msra.mxu0 %v773
    %1417 = vmatprep.subr.bf16.mxu0 %v770
    %1418 = vmatpush1.bf16.msra.mxu0 %v769
    %1419 = vmatprep.subr.bf16.mxu0 %v766
    %1420 = vmatpush1.bf16.msra.mxu0 %v765
    %1421 = vmatprep.subr.bf16.mxu0 %v762
    %1422 = vmatpush1.bf16.msra.mxu0 %v761
    %1423 = vmatprep.subr.bf16.mxu0 0
    %1424 = vmatpush2.bf16.msra.mxu0 0
    %1425 = vmatprep.subr.bf16.mxu0 0
    %1426 = vmatpush2.bf16.msra.mxu0 0
    %1427 = vmatprep.subr.bf16.mxu0 0
    %1428 = vmatpush2.bf16.msra.mxu0 0
    %1429 = vmatprep.subr.bf16.mxu0 0
    %1430 = vmatpush2.bf16.msra.mxu0 0
    %1431 = vmatprep.subr.bf16.mxu0 0
    %1432 = vmatpush2.bf16.msra.mxu0 0
    %1433 = vmatprep.subr.bf16.mxu0 0
    %1434 = vmatpush2.bf16.msra.mxu0 0
    %1435 = vmatprep.subr.bf16.mxu0 0
    %1436 = vmatpush2.bf16.msra.mxu0 0
    %1437 = vmatprep.subr.bf16.mxu0 0
    %1438 = vmatpush2.bf16.msra.mxu0 0
    %1439 = vmatprep.mubr.bf16.mxu0 0
    %1440 = vmatmul.mubr.bf16.gmra.mxu0 %v1406
    %v1441 = vpop.f32.mrf.mxu0
    %v1442 = vadd.f32 0.0, %v1441
    %v1443 = vpop.f32.mrf.mxu0
    %v1444 = vadd.f32 0.0, %v1443
    %v1445 = vpop.f32.mrf.mxu0
    %v1446 = vpop.f32.mrf.mxu0
    %1447 = vdwg.mxu0
    %1448 = vmatprep.subr.bf16.mxu0 %v792
    %1449 = vmatpush1.bf16.msra.mxu0 %v791
    %1450 = vmatprep.subr.bf16.mxu0 %v788
    %1451 = vmatpush1.bf16.msra.mxu0 %v787
    %1452 = vmatprep.subr.bf16.mxu0 %v784
    %1453 = vmatpush1.bf16.msra.mxu0 %v783
    %1454 = vmatprep.subr.bf16.mxu0 %v780
    %1455 = vmatpush1.bf16.msra.mxu0 %v779
    %1456 = vmatprep.subr.bf16.mxu0 %v776
    %1457 = vmatpush1.bf16.msra.mxu0 %v775
    %1458 = vmatprep.subr.bf16.mxu0 %v772
    %1459 = vmatpush1.bf16.msra.mxu0 %v771
    %1460 = vmatprep.subr.bf16.mxu0 %v768
    %1461 = vmatpush1.bf16.msra.mxu0 %v767
    %1462 = vmatprep.subr.bf16.mxu0 %v764
    %1463 = vmatpush1.bf16.msra.mxu0 %v763
    %1464 = vmatprep.subr.bf16.mxu0 0
    %1465 = vmatpush2.bf16.msra.mxu0 0
    %1466 = vmatprep.subr.bf16.mxu0 0
    %1467 = vmatpush2.bf16.msra.mxu0 0
    %1468 = vmatprep.subr.bf16.mxu0 0
    %1469 = vmatpush2.bf16.msra.mxu0 0
    %1470 = vmatprep.subr.bf16.mxu0 0
    %1471 = vmatpush2.bf16.msra.mxu0 0
    %1472 = vmatprep.subr.bf16.mxu0 0
    %1473 = vmatpush2.bf16.msra.mxu0 0
    %1474 = vmatprep.subr.bf16.mxu0 0
    %1475 = vmatpush2.bf16.msra.mxu0 0
    %1476 = vmatprep.subr.bf16.mxu0 0
    %1477 = vmatpush2.bf16.msra.mxu0 0
    %1478 = vmatprep.subr.bf16.mxu0 0
    %1479 = vmatpush2.bf16.msra.mxu0 0
    %1480 = vmatprep.mubr.bf16.mxu0 0
    %1481 = vmatmul.mubr.bf16.gmra.mxu0 %v1406
    %v1482 = vpop.f32.mrf.mxu0
    %v1483 = vadd.f32 0.0, %v1482
    %v1484 = vpop.f32.mrf.mxu0
    %v1485 = vadd.f32 0.0, %v1484
    %v1486 = vpop.f32.mrf.mxu0
    %v1487 = vpop.f32.mrf.mxu0
    %1488 = vdwg.mxu0
    %v1489 = vadd.f32 %v1402, %v1442
    %v1490 = vadd.f32 %v1403, %v1444
    %v1491 = vadd.f32 %v1404, %v1483
    %v1492 = vadd.f32 %v1405, %v1485
    %v1493 = vxor.u32 %v1489, 2147483648
    %v1494 = vmul.f32 %v1493, 1.442695
    %v1495 = vpow.pop %v1494
    %v1496 = vadd.f32 %v1495, 1.0
    %v1497 = vrcp.pop %v1496
    %v1498 = vmul.f32 1.0, %v1497
    %v1499 = vxor.u32 %v1490, 2147483648
    %v1500 = vmul.f32 %v1499, 1.442695
    %v1501 = vpow.pop %v1500
    %v1502 = vadd.f32 %v1501, 1.0
    %v1503 = vrcp.pop %v1502
    %v1504 = vmul.f32 1.0, %v1503
    %v1505 = vtanh.pop %v1491
    %v1506 = vxor.u32 %v1492, 2147483648
    %v1507 = vmul.f32 %v1506, 1.442695
    %v1508 = vpow.pop %v1507
    %v1509 = vadd.f32 %v1508, 1.0
    %v1510 = vrcp.pop %v1509
    %v1511 = vmul.f32 1.0, %v1510
    %v1512 = vmul.f32 %v1504, %v1398
    %v1513 = vmul.f32 %v1498, %v1505
    %v1514 = vadd.f32 %v1512, %v1513
    %v1515 = vtanh.pop %v1514
    %v1516 = vmul.f32 %v1511, %v1515
    %v1517 = vsel %vm1396, %v1516, %v1397
    %1518 = vst [vmem:[#allocation3] sm:$0xff] %v1517
    %v1519 = vsel %vm1396, %v1514, %v1398
    %1520 = vst [vmem:[#allocation4] sm:$0xff] %v1519
    %v1521 = vld [vmem:[#allocation5] sm:$0xff]
    %v1522 = vld [vmem:[#allocation6] sm:$0xff]
    %v1523 = vpack.c.bf16 %v1517, %v1517
    %v1524 = vpack.c.bf16 %v1521, %v1521
    %1525 = vmatprep.subr.bf16.mxu0 %v1185
    %1526 = vmatpush1.bf16.msra.mxu0 %v1184
    %1527 = vmatprep.subr.bf16.mxu0 %v1181
    %1528 = vmatpush1.bf16.msra.mxu0 %v1180
    %1529 = vmatprep.subr.bf16.mxu0 %v1177
    %1530 = vmatpush1.bf16.msra.mxu0 %v1176
    %1531 = vmatprep.subr.bf16.mxu0 %v1173
    %1532 = vmatpush1.bf16.msra.mxu0 %v1172
    %1533 = vmatprep.subr.bf16.mxu0 %v1169
    %1534 = vmatpush1.bf16.msra.mxu0 %v1168
    %1535 = vmatprep.subr.bf16.mxu0 %v1165
    %1536 = vmatpush1.bf16.msra.mxu0 %v1164
    %1537 = vmatprep.subr.bf16.mxu0 %v1161
    %1538 = vmatpush1.bf16.msra.mxu0 %v1160
    %1539 = vmatprep.subr.bf16.mxu0 %v1157
    %1540 = vmatpush1.bf16.msra.mxu0 %v1156
    %1541 = vmatprep.subr.bf16.mxu0 %v1217
    %1542 = vmatpush2.bf16.msra.mxu0 %v1216
    %1543 = vmatprep.subr.bf16.mxu0 %v1213
    %1544 = vmatpush2.bf16.msra.mxu0 %v1212
    %1545 = vmatprep.subr.bf16.mxu0 %v1209
    %1546 = vmatpush2.bf16.msra.mxu0 %v1208
    %1547 = vmatprep.subr.bf16.mxu0 %v1205
    %1548 = vmatpush2.bf16.msra.mxu0 %v1204
    %1549 = vmatprep.subr.bf16.mxu0 %v1201
    %1550 = vmatpush2.bf16.msra.mxu0 %v1200
    %1551 = vmatprep.subr.bf16.mxu0 %v1197
    %1552 = vmatpush2.bf16.msra.mxu0 %v1196
    %1553 = vmatprep.subr.bf16.mxu0 %v1193
    %1554 = vmatpush2.bf16.msra.mxu0 %v1192
    %1555 = vmatprep.subr.bf16.mxu0 %v1189
    %1556 = vmatpush2.bf16.msra.mxu0 %v1188
    %1557 = vmatprep.mubr.bf16.mxu0 %v1524
    %1558 = vmatmul.mubr.bf16.gmra.mxu0 %v1523
    %v1559 = vpop.f32.mrf.mxu0
    %v1560 = vadd.f32 %v947, %v1559
    %v1561 = vpop.f32.mrf.mxu0
    %v1562 = vadd.f32 %v951, %v1561
    %v1563 = vpop.f32.mrf.mxu0
    %v1564 = vpop.f32.mrf.mxu0
    %1565 = vdwg.mxu0
    %1566 = vmatprep.subr.bf16.mxu0 %v1187
    %1567 = vmatpush1.bf16.msra.mxu0 %v1186
    %1568 = vmatprep.subr.bf16.mxu0 %v1183
    %1569 = vmatpush1.bf16.msra.mxu0 %v1182
    %1570 = vmatprep.subr.bf16.mxu0 %v1179
    %1571 = vmatpush1.bf16.msra.mxu0 %v1178
    %1572 = vmatprep.subr.bf16.mxu0 %v1175
    %1573 = vmatpush1.bf16.msra.mxu0 %v1174
    %1574 = vmatprep.subr.bf16.mxu0 %v1171
    %1575 = vmatpush1.bf16.msra.mxu0 %v1170
    %1576 = vmatprep.subr.bf16.mxu0 %v1167
    %1577 = vmatpush1.bf16.msra.mxu0 %v1166
    %1578 = vmatprep.subr.bf16.mxu0 %v1163
    %1579 = vmatpush1.bf16.msra.mxu0 %v1162
    %1580 = vmatprep.subr.bf16.mxu0 %v1159
    %1581 = vmatpush1.bf16.msra.mxu0 %v1158
    %1582 = vmatprep.subr.bf16.mxu0 %v1219
    %1583 = vmatpush2.bf16.msra.mxu0 %v1218
    %1584 = vmatprep.subr.bf16.mxu0 %v1215
    %1585 = vmatpush2.bf16.msra.mxu0 %v1214
    %1586 = vmatprep.subr.bf16.mxu0 %v1211
    %1587 = vmatpush2.bf16.msra.mxu0 %v1210
    %1588 = vmatprep.subr.bf16.mxu0 %v1207
    %1589 = vmatpush2.bf16.msra.mxu0 %v1206
    %1590 = vmatprep.subr.bf16.mxu0 %v1203
    %1591 = vmatpush2.bf16.msra.mxu0 %v1202
    %1592 = vmatprep.subr.bf16.mxu0 %v1199
    %1593 = vmatpush2.bf16.msra.mxu0 %v1198
    %1594 = vmatprep.subr.bf16.mxu0 %v1195
    %1595 = vmatpush2.bf16.msra.mxu0 %v1194
    %1596 = vmatprep.subr.bf16.mxu0 %v1191
    %1597 = vmatpush2.bf16.msra.mxu0 %v1190
    %1598 = vmatprep.mubr.bf16.mxu0 %v1524
    %1599 = vmatmul.mubr.bf16.gmra.mxu0 %v1523
    %v1600 = vpop.f32.mrf.mxu0
    %v1601 = vadd.f32 %v955, %v1600
    %v1602 = vpop.f32.mrf.mxu0
    %v1603 = vadd.f32 %v959, %v1602
    %v1604 = vpop.f32.mrf.mxu0
    %v1605 = vpop.f32.mrf.mxu0
    %1606 = vdwg.mxu0
    %v1607 = vxor.u32 %v1560, 2147483648
    %v1608 = vmul.f32 %v1607, 1.442695
    %v1609 = vpow.pop %v1608
    %v1610 = vadd.f32 %v1609, 1.0
    %v1611 = vrcp.pop %v1610
    %v1612 = vmul.f32 1.0, %v1611
    %v1613 = vxor.u32 %v1562, 2147483648
    %v1614 = vmul.f32 %v1613, 1.442695
    %v1615 = vpow.pop %v1614
    %v1616 = vadd.f32 %v1615, 1.0
    %v1617 = vrcp.pop %v1616
    %v1618 = vmul.f32 1.0, %v1617
    %v1619 = vtanh.pop %v1601
    %v1620 = vxor.u32 %v1603, 2147483648
    %v1621 = vmul.f32 %v1620, 1.442695
    %v1622 = vpow.pop %v1621
    %v1623 = vadd.f32 %v1622, 1.0
    %v1624 = vrcp.pop %v1623
    %v1625 = vmul.f32 1.0, %v1624
    %v1626 = vmul.f32 %v1618, %v1522
    %v1627 = vmul.f32 %v1612, %v1619
    %v1628 = vadd.f32 %v1626, %v1627
    %v1629 = vtanh.pop %v1628
    %v1630 = vmul.f32 %v1625, %v1629
    %v1631 = vsel %vm1396, %v1630, %v1521
    %1632 = vst [vmem:[#allocation5] sm:$0xff] %v1631
    %v1633 = vsel %vm1396, %v1628, %v1522
    %1634 = vst [vmem:[#allocation6] sm:$0xff] %v1633
    %s1635 = sadd.s32 %s652, 2
    %v1636 = vstv %s1635
    %vm1637 = vcmp.lt.s32.totalorder %v1636, %v651
    %v1638 = vld [vmem:[#allocation3] sm:$0xff]
    %v1639 = vld [vmem:[#allocation4] sm:$0xff]
    %s1640 = smul.u32 2, 4
    %s1641 = smul.addr %s1640, 8
    %s1642 = scalar_lea.vmem [#allocation2], %s1641
    %v1643 = vld [vmem:[%s1642] sm:$0xff]
    %v1644 = vld [vmem:[%s1642 + $0x8] sm:$0xff]
    %v1645 = vld [vmem:[%s1642 + $0x10] sm:$0xff]
    %v1646 = vld [vmem:[%s1642 + $0x18] sm:$0xff]
    %v1647 = vpack.c.bf16 %v1638, %v1638
    %1648 = vmatprep.subr.bf16.mxu0 %v790
    %1649 = vmatpush1.bf16.msra.mxu0 %v789
    %1650 = vmatprep.subr.bf16.mxu0 %v786
    %1651 = vmatpush1.bf16.msra.mxu0 %v785
    %1652 = vmatprep.subr.bf16.mxu0 %v782
    %1653 = vmatpush1.bf16.msra.mxu0 %v781
    %1654 = vmatprep.subr.bf16.mxu0 %v778
    %1655 = vmatpush1.bf16.msra.mxu0 %v777
    %1656 = vmatprep.subr.bf16.mxu0 %v774
    %1657 = vmatpush1.bf16.msra.mxu0 %v773
    %1658 = vmatprep.subr.bf16.mxu0 %v770
    %1659 = vmatpush1.bf16.msra.mxu0 %v769
    %1660 = vmatprep.subr.bf16.mxu0 %v766
    %1661 = vmatpush1.bf16.msra.mxu0 %v765
    %1662 = vmatprep.subr.bf16.mxu0 %v762
    %1663 = vmatpush1.bf16.msra.mxu0 %v761
    %1664 = vmatprep.subr.bf16.mxu0 0
    %1665 = vmatpush2.bf16.msra.mxu0 0
    %1666 = vmatprep.subr.bf16.mxu0 0
    %1667 = vmatpush2.bf16.msra.mxu0 0
    %1668 = vmatprep.subr.bf16.mxu0 0
    %1669 = vmatpush2.bf16.msra.mxu0 0
    %1670 = vmatprep.subr.bf16.mxu0 0
    %1671 = vmatpush2.bf16.msra.mxu0 0
    %1672 = vmatprep.subr.bf16.mxu0 0
    %1673 = vmatpush2.bf16.msra.mxu0 0
    %1674 = vmatprep.subr.bf16.mxu0 0
    %1675 = vmatpush2.bf16.msra.mxu0 0
    %1676 = vmatprep.subr.bf16.mxu0 0
    %1677 = vmatpush2.bf16.msra.mxu0 0
    %1678 = vmatprep.subr.bf16.mxu0 0
    %1679 = vmatpush2.bf16.msra.mxu0 0
    %1680 = vmatprep.mubr.bf16.mxu0 0
    %1681 = vmatmul.mubr.bf16.gmra.mxu0 %v1647
    %v1682 = vpop.f32.mrf.mxu0
    %v1683 = vadd.f32 0.0, %v1682
    %v1684 = vpop.f32.mrf.mxu0
    %v1685 = vadd.f32 0.0, %v1684
    %v1686 = vpop.f32.mrf.mxu0
    %v1687 = vpop.f32.mrf.mxu0
    %1688 = vdwg.mxu0
    %1689 = vmatprep.subr.bf16.mxu0 %v792
    %1690 = vmatpush1.bf16.msra.mxu0 %v791
    %1691 = vmatprep.subr.bf16.mxu0 %v788
    %1692 = vmatpush1.bf16.msra.mxu0 %v787
    %1693 = vmatprep.subr.bf16.mxu0 %v784
    %1694 = vmatpush1.bf16.msra.mxu0 %v783
    %1695 = vmatprep.subr.bf16.mxu0 %v780
    %1696 = vmatpush1.bf16.msra.mxu0 %v779
    %1697 = vmatprep.subr.bf16.mxu0 %v776
    %1698 = vmatpush1.bf16.msra.mxu0 %v775
    %1699 = vmatprep.subr.bf16.mxu0 %v772
    %1700 = vmatpush1.bf16.msra.mxu0 %v771
    %1701 = vmatprep.subr.bf16.mxu0 %v768
    %1702 = vmatpush1.bf16.msra.mxu0 %v767
    %1703 = vmatprep.subr.bf16.mxu0 %v764
    %1704 = vmatpush1.bf16.msra.mxu0 %v763
    %1705 = vmatprep.subr.bf16.mxu0 0
    %1706 = vmatpush2.bf16.msra.mxu0 0
    %1707 = vmatprep.subr.bf16.mxu0 0
    %1708 = vmatpush2.bf16.msra.mxu0 0
    %1709 = vmatprep.subr.bf16.mxu0 0
    %1710 = vmatpush2.bf16.msra.mxu0 0
    %1711 = vmatprep.subr.bf16.mxu0 0
    %1712 = vmatpush2.bf16.msra.mxu0 0
    %1713 = vmatprep.subr.bf16.mxu0 0
    %1714 = vmatpush2.bf16.msra.mxu0 0
    %1715 = vmatprep.subr.bf16.mxu0 0
    %1716 = vmatpush2.bf16.msra.mxu0 0
    %1717 = vmatprep.subr.bf16.mxu0 0
    %1718 = vmatpush2.bf16.msra.mxu0 0
    %1719 = vmatprep.subr.bf16.mxu0 0
    %1720 = vmatpush2.bf16.msra.mxu0 0
    %1721 = vmatprep.mubr.bf16.mxu0 0
    %1722 = vmatmul.mubr.bf16.gmra.mxu0 %v1647
    %v1723 = vpop.f32.mrf.mxu0
    %v1724 = vadd.f32 0.0, %v1723
    %v1725 = vpop.f32.mrf.mxu0
    %v1726 = vadd.f32 0.0, %v1725
    %v1727 = vpop.f32.mrf.mxu0
    %v1728 = vpop.f32.mrf.mxu0
    %1729 = vdwg.mxu0
    %v1730 = vadd.f32 %v1643, %v1683
    %v1731 = vadd.f32 %v1644, %v1685
    %v1732 = vadd.f32 %v1645, %v1724
    %v1733 = vadd.f32 %v1646, %v1726
    %v1734 = vxor.u32 %v1730, 2147483648
    %v1735 = vmul.f32 %v1734, 1.442695
    %v1736 = vpow.pop %v1735
    %v1737 = vadd.f32 %v1736, 1.0
    %v1738 = vrcp.pop %v1737
    %v1739 = vmul.f32 1.0, %v1738
    %v1740 = vxor.u32 %v1731, 2147483648
    %v1741 = vmul.f32 %v1740, 1.442695
    %v1742 = vpow.pop %v1741
    %v1743 = vadd.f32 %v1742, 1.0
    %v1744 = vrcp.pop %v1743
    %v1745 = vmul.f32 1.0, %v1744
    %v1746 = vtanh.pop %v1732
    %v1747 = vxor.u32 %v1733, 2147483648
    %v1748 = vmul.f32 %v1747, 1.442695
    %v1749 = vpow.pop %v1748
    %v1750 = vadd.f32 %v1749, 1.0
    %v1751 = vrcp.pop %v1750
    %v1752 = vmul.f32 1.0, %v1751
    %v1753 = vmul.f32 %v1745, %v1639
    %v1754 = vmul.f32 %v1739, %v1746
    %v1755 = vadd.f32 %v1753, %v1754
    %v1756 = vtanh.pop %v1755
    %v1757 = vmul.f32 %v1752, %v1756
    %v1758 = vsel %vm1637, %v1757, %v1638
    %1759 = vst [vmem:[#allocation3] sm:$0xff] %v1758
    %v1760 = vsel %vm1637, %v1755, %v1639
    %1761 = vst [vmem:[#allocation4] sm:$0xff] %v1760
    %v1762 = vld [vmem:[#allocation5] sm:$0xff]
    %v1763 = vld [vmem:[#allocation6] sm:$0xff]
    %v1764 = vpack.c.bf16 %v1758, %v1758
    %v1765 = vpack.c.bf16 %v1762, %v1762
    %1766 = vmatprep.subr.bf16.mxu0 %v1185
    %1767 = vmatpush1.bf16.msra.mxu0 %v1184
    %1768 = vmatprep.subr.bf16.mxu0 %v1181
    %1769 = vmatpush1.bf16.msra.mxu0 %v1180
    %1770 = vmatprep.subr.bf16.mxu0 %v1177
    %1771 = vmatpush1.bf16.msra.mxu0 %v1176
    %1772 = vmatprep.subr.bf16.mxu0 %v1173
    %1773 = vmatpush1.bf16.msra.mxu0 %v1172
    %1774 = vmatprep.subr.bf16.mxu0 %v1169
    %1775 = vmatpush1.bf16.msra.mxu0 %v1168
    %1776 = vmatprep.subr.bf16.mxu0 %v1165
    %1777 = vmatpush1.bf16.msra.mxu0 %v1164
    %1778 = vmatprep.subr.bf16.mxu0 %v1161
    %1779 = vmatpush1.bf16.msra.mxu0 %v1160
    %1780 = vmatprep.subr.bf16.mxu0 %v1157
    %1781 = vmatpush1.bf16.msra.mxu0 %v1156
    %1782 = vmatprep.subr.bf16.mxu0 %v1217
    %1783 = vmatpush2.bf16.msra.mxu0 %v1216
    %1784 = vmatprep.subr.bf16.mxu0 %v1213
    %1785 = vmatpush2.bf16.msra.mxu0 %v1212
    %1786 = vmatprep.subr.bf16.mxu0 %v1209
    %1787 = vmatpush2.bf16.msra.mxu0 %v1208
    %1788 = vmatprep.subr.bf16.mxu0 %v1205
    %1789 = vmatpush2.bf16.msra.mxu0 %v1204
    %1790 = vmatprep.subr.bf16.mxu0 %v1201
    %1791 = vmatpush2.bf16.msra.mxu0 %v1200
    %1792 = vmatprep.subr.bf16.mxu0 %v1197
    %1793 = vmatpush2.bf16.msra.mxu0 %v1196
    %1794 = vmatprep.subr.bf16.mxu0 %v1193
    %1795 = vmatpush2.bf16.msra.mxu0 %v1192
    %1796 = vmatprep.subr.bf16.mxu0 %v1189
    %1797 = vmatpush2.bf16.msra.mxu0 %v1188
    %1798 = vmatprep.mubr.bf16.mxu0 %v1765
    %1799 = vmatmul.mubr.bf16.gmra.mxu0 %v1764
    %v1800 = vpop.f32.mrf.mxu0
    %v1801 = vadd.f32 %v947, %v1800
    %v1802 = vpop.f32.mrf.mxu0
    %v1803 = vadd.f32 %v951, %v1802
    %v1804 = vpop.f32.mrf.mxu0
    %v1805 = vpop.f32.mrf.mxu0
    %1806 = vdwg.mxu0
    %1807 = vmatprep.subr.bf16.mxu0 %v1187
    %1808 = vmatpush1.bf16.msra.mxu0 %v1186
    %1809 = vmatprep.subr.bf16.mxu0 %v1183
    %1810 = vmatpush1.bf16.msra.mxu0 %v1182
    %1811 = vmatprep.subr.bf16.mxu0 %v1179
    %1812 = vmatpush1.bf16.msra.mxu0 %v1178
    %1813 = vmatprep.subr.bf16.mxu0 %v1175
    %1814 = vmatpush1.bf16.msra.mxu0 %v1174
    %1815 = vmatprep.subr.bf16.mxu0 %v1171
    %1816 = vmatpush1.bf16.msra.mxu0 %v1170
    %1817 = vmatprep.subr.bf16.mxu0 %v1167
    %1818 = vmatpush1.bf16.msra.mxu0 %v1166
    %1819 = vmatprep.subr.bf16.mxu0 %v1163
    %1820 = vmatpush1.bf16.msra.mxu0 %v1162
    %1821 = vmatprep.subr.bf16.mxu0 %v1159
    %1822 = vmatpush1.bf16.msra.mxu0 %v1158
    %1823 = vmatprep.subr.bf16.mxu0 %v1219
    %1824 = vmatpush2.bf16.msra.mxu0 %v1218
    %1825 = vmatprep.subr.bf16.mxu0 %v1215
    %1826 = vmatpush2.bf16.msra.mxu0 %v1214
    %1827 = vmatprep.subr.bf16.mxu0 %v1211
    %1828 = vmatpush2.bf16.msra.mxu0 %v1210
    %1829 = vmatprep.subr.bf16.mxu0 %v1207
    %1830 = vmatpush2.bf16.msra.mxu0 %v1206
    %1831 = vmatprep.subr.bf16.mxu0 %v1203
    %1832 = vmatpush2.bf16.msra.mxu0 %v1202
    %1833 = vmatprep.subr.bf16.mxu0 %v1199
    %1834 = vmatpush2.bf16.msra.mxu0 %v1198
    %1835 = vmatprep.subr.bf16.mxu0 %v1195
    %1836 = vmatpush2.bf16.msra.mxu0 %v1194
    %1837 = vmatprep.subr.bf16.mxu0 %v1191
    %1838 = vmatpush2.bf16.msra.mxu0 %v1190
    %1839 = vmatprep.mubr.bf16.mxu0 %v1765
    %1840 = vmatmul.mubr.bf16.gmra.mxu0 %v1764
    %v1841 = vpop.f32.mrf.mxu0
    %v1842 = vadd.f32 %v955, %v1841
    %v1843 = vpop.f32.mrf.mxu0
    %v1844 = vadd.f32 %v959, %v1843
    %v1845 = vpop.f32.mrf.mxu0
    %v1846 = vpop.f32.mrf.mxu0
    %1847 = vdwg.mxu0
    %v1848 = vxor.u32 %v1801, 2147483648
    %v1849 = vmul.f32 %v1848, 1.442695
    %v1850 = vpow.pop %v1849
    %v1851 = vadd.f32 %v1850, 1.0
    %v1852 = vrcp.pop %v1851
    %v1853 = vmul.f32 1.0, %v1852
    %v1854 = vxor.u32 %v1803, 2147483648
    %v1855 = vmul.f32 %v1854, 1.442695
    %v1856 = vpow.pop %v1855
    %v1857 = vadd.f32 %v1856, 1.0
    %v1858 = vrcp.pop %v1857
    %v1859 = vmul.f32 1.0, %v1858
    %v1860 = vtanh.pop %v1842
    %v1861 = vxor.u32 %v1844, 2147483648
    %v1862 = vmul.f32 %v1861, 1.442695
    %v1863 = vpow.pop %v1862
    %v1864 = vadd.f32 %v1863, 1.0
    %v1865 = vrcp.pop %v1864
    %v1866 = vmul.f32 1.0, %v1865
    %v1867 = vmul.f32 %v1859, %v1763
    %v1868 = vmul.f32 %v1853, %v1860
    %v1869 = vadd.f32 %v1867, %v1868
    %v1870 = vtanh.pop %v1869
    %v1871 = vmul.f32 %v1866, %v1870
    %v1872 = vsel %vm1637, %v1871, %v1762
    %1873 = vst [vmem:[#allocation5] sm:$0xff] %v1872
    %v1874 = vsel %vm1637, %v1869, %v1763
    %1875 = vst [vmem:[#allocation6] sm:$0xff] %v1874
    %s1876 = sadd.s32 %s652, 3
    %v1877 = vstv %s1876
    %vm1878 = vcmp.lt.s32.totalorder %v1877, %v651
    %v1879 = vld [vmem:[#allocation3] sm:$0xff]
    %v1880 = vld [vmem:[#allocation4] sm:$0xff]
    %s1881 = smul.u32 3, 4
    %s1882 = smul.addr %s1881, 8
    %s1883 = scalar_lea.vmem [#allocation2], %s1882
    %v1884 = vld [vmem:[%s1883] sm:$0xff]
    %v1885 = vld [vmem:[%s1883 + $0x8] sm:$0xff]
    %v1886 = vld [vmem:[%s1883 + $0x10] sm:$0xff]
    %v1887 = vld [vmem:[%s1883 + $0x18] sm:$0xff]
    %v1888 = vpack.c.bf16 %v1879, %v1879
    %1889 = vmatprep.subr.bf16.mxu0 %v790
    %1890 = vmatpush1.bf16.msra.mxu0 %v789
    %1891 = vmatprep.subr.bf16.mxu0 %v786
    %1892 = vmatpush1.bf16.msra.mxu0 %v785
    %1893 = vmatprep.subr.bf16.mxu0 %v782
    %1894 = vmatpush1.bf16.msra.mxu0 %v781
    %1895 = vmatprep.subr.bf16.mxu0 %v778
    %1896 = vmatpush1.bf16.msra.mxu0 %v777
    %1897 = vmatprep.subr.bf16.mxu0 %v774
    %1898 = vmatpush1.bf16.msra.mxu0 %v773
    %1899 = vmatprep.subr.bf16.mxu0 %v770
    %1900 = vmatpush1.bf16.msra.mxu0 %v769
    %1901 = vmatprep.subr.bf16.mxu0 %v766
    %1902 = vmatpush1.bf16.msra.mxu0 %v765
    %1903 = vmatprep.subr.bf16.mxu0 %v762
    %1904 = vmatpush1.bf16.msra.mxu0 %v761
    %1905 = vmatprep.subr.bf16.mxu0 0
    %1906 = vmatpush2.bf16.msra.mxu0 0
    %1907 = vmatprep.subr.bf16.mxu0 0
    %1908 = vmatpush2.bf16.msra.mxu0 0
    %1909 = vmatprep.subr.bf16.mxu0 0
    %1910 = vmatpush2.bf16.msra.mxu0 0
    %1911 = vmatprep.subr.bf16.mxu0 0
    %1912 = vmatpush2.bf16.msra.mxu0 0
    %1913 = vmatprep.subr.bf16.mxu0 0
    %1914 = vmatpush2.bf16.msra.mxu0 0
    %1915 = vmatprep.subr.bf16.mxu0 0
    %1916 = vmatpush2.bf16.msra.mxu0 0
    %1917 = vmatprep.subr.bf16.mxu0 0
    %1918 = vmatpush2.bf16.msra.mxu0 0
    %1919 = vmatprep.subr.bf16.mxu0 0
    %1920 = vmatpush2.bf16.msra.mxu0 0
    %1921 = vmatprep.mubr.bf16.mxu0 0
    %1922 = vmatmul.mubr.bf16.gmra.mxu0 %v1888
    %v1923 = vpop.f32.mrf.mxu0
    %v1924 = vadd.f32 0.0, %v1923
    %v1925 = vpop.f32.mrf.mxu0
    %v1926 = vadd.f32 0.0, %v1925
    %v1927 = vpop.f32.mrf.mxu0
    %v1928 = vpop.f32.mrf.mxu0
    %1929 = vdwg.mxu0
    %1930 = vmatprep.subr.bf16.mxu0 %v792
    %1931 = vmatpush1.bf16.msra.mxu0 %v791
    %1932 = vmatprep.subr.bf16.mxu0 %v788
    %1933 = vmatpush1.bf16.msra.mxu0 %v787
    %1934 = vmatprep.subr.bf16.mxu0 %v784
    %1935 = vmatpush1.bf16.msra.mxu0 %v783
    %1936 = vmatprep.subr.bf16.mxu0 %v780
    %1937 = vmatpush1.bf16.msra.mxu0 %v779
    %1938 = vmatprep.subr.bf16.mxu0 %v776
    %1939 = vmatpush1.bf16.msra.mxu0 %v775
    %1940 = vmatprep.subr.bf16.mxu0 %v772
    %1941 = vmatpush1.bf16.msra.mxu0 %v771
    %1942 = vmatprep.subr.bf16.mxu0 %v768
    %1943 = vmatpush1.bf16.msra.mxu0 %v767
    %1944 = vmatprep.subr.bf16.mxu0 %v764
    %1945 = vmatpush1.bf16.msra.mxu0 %v763
    %1946 = vmatprep.subr.bf16.mxu0 0
    %1947 = vmatpush2.bf16.msra.mxu0 0
    %1948 = vmatprep.subr.bf16.mxu0 0
    %1949 = vmatpush2.bf16.msra.mxu0 0
    %1950 = vmatprep.subr.bf16.mxu0 0
    %1951 = vmatpush2.bf16.msra.mxu0 0
    %1952 = vmatprep.subr.bf16.mxu0 0
    %1953 = vmatpush2.bf16.msra.mxu0 0
    %1954 = vmatprep.subr.bf16.mxu0 0
    %1955 = vmatpush2.bf16.msra.mxu0 0
    %1956 = vmatprep.subr.bf16.mxu0 0
    %1957 = vmatpush2.bf16.msra.mxu0 0
    %1958 = vmatprep.subr.bf16.mxu0 0
    %1959 = vmatpush2.bf16.msra.mxu0 0
    %1960 = vmatprep.subr.bf16.mxu0 0
    %1961 = vmatpush2.bf16.msra.mxu0 0
    %1962 = vmatprep.mubr.bf16.mxu0 0
    %1963 = vmatmul.mubr.bf16.gmra.mxu0 %v1888
    %v1964 = vpop.f32.mrf.mxu0
    %v1965 = vadd.f32 0.0, %v1964
    %v1966 = vpop.f32.mrf.mxu0
    %v1967 = vadd.f32 0.0, %v1966
    %v1968 = vpop.f32.mrf.mxu0
    %v1969 = vpop.f32.mrf.mxu0
    %1970 = vdwg.mxu0
    %v1971 = vadd.f32 %v1884, %v1924
    %v1972 = vadd.f32 %v1885, %v1926
    %v1973 = vadd.f32 %v1886, %v1965
    %v1974 = vadd.f32 %v1887, %v1967
    %v1975 = vxor.u32 %v1971, 2147483648
    %v1976 = vmul.f32 %v1975, 1.442695
    %v1977 = vpow.pop %v1976
    %v1978 = vadd.f32 %v1977, 1.0
    %v1979 = vrcp.pop %v1978
    %v1980 = vmul.f32 1.0, %v1979
    %v1981 = vxor.u32 %v1972, 2147483648
    %v1982 = vmul.f32 %v1981, 1.442695
    %v1983 = vpow.pop %v1982
    %v1984 = vadd.f32 %v1983, 1.0
    %v1985 = vrcp.pop %v1984
    %v1986 = vmul.f32 1.0, %v1985
    %v1987 = vtanh.pop %v1973
    %v1988 = vxor.u32 %v1974, 2147483648
    %v1989 = vmul.f32 %v1988, 1.442695
    %v1990 = vpow.pop %v1989
    %v1991 = vadd.f32 %v1990, 1.0
    %v1992 = vrcp.pop %v1991
    %v1993 = vmul.f32 1.0, %v1992
    %v1994 = vmul.f32 %v1986, %v1880
    %v1995 = vmul.f32 %v1980, %v1987
    %v1996 = vadd.f32 %v1994, %v1995
    %v1997 = vtanh.pop %v1996
    %v1998 = vmul.f32 %v1993, %v1997
    %v1999 = vsel %vm1878, %v1998, %v1879
    %2000 = vst [vmem:[#allocation3] sm:$0xff] %v1999
    %v2001 = vsel %vm1878, %v1996, %v1880
    %2002 = vst [vmem:[#allocation4] sm:$0xff] %v2001
    %v2003 = vld [vmem:[#allocation5] sm:$0xff]
    %v2004 = vld [vmem:[#allocation6] sm:$0xff]
    %v2005 = vpack.c.bf16 %v1999, %v1999
    %v2006 = vpack.c.bf16 %v2003, %v2003
    %2007 = vmatprep.subr.bf16.mxu0 %v1185
    %2008 = vmatpush1.bf16.msra.mxu0 %v1184
    %2009 = vmatprep.subr.bf16.mxu0 %v1181
    %2010 = vmatpush1.bf16.msra.mxu0 %v1180
    %2011 = vmatprep.subr.bf16.mxu0 %v1177
    %2012 = vmatpush1.bf16.msra.mxu0 %v1176
    %2013 = vmatprep.subr.bf16.mxu0 %v1173
    %2014 = vmatpush1.bf16.msra.mxu0 %v1172
    %2015 = vmatprep.subr.bf16.mxu0 %v1169
    %2016 = vmatpush1.bf16.msra.mxu0 %v1168
    %2017 = vmatprep.subr.bf16.mxu0 %v1165
    %2018 = vmatpush1.bf16.msra.mxu0 %v1164
    %2019 = vmatprep.subr.bf16.mxu0 %v1161
    %2020 = vmatpush1.bf16.msra.mxu0 %v1160
    %2021 = vmatprep.subr.bf16.mxu0 %v1157
    %2022 = vmatpush1.bf16.msra.mxu0 %v1156
    %2023 = vmatprep.subr.bf16.mxu0 %v1217
    %2024 = vmatpush2.bf16.msra.mxu0 %v1216
    %2025 = vmatprep.subr.bf16.mxu0 %v1213
    %2026 = vmatpush2.bf16.msra.mxu0 %v1212
    %2027 = vmatprep.subr.bf16.mxu0 %v1209
    %2028 = vmatpush2.bf16.msra.mxu0 %v1208
    %2029 = vmatprep.subr.bf16.mxu0 %v1205
    %2030 = vmatpush2.bf16.msra.mxu0 %v1204
    %2031 = vmatprep.subr.bf16.mxu0 %v1201
    %2032 = vmatpush2.bf16.msra.mxu0 %v1200
    %2033 = vmatprep.subr.bf16.mxu0 %v1197
    %2034 = vmatpush2.bf16.msra.mxu0 %v1196
    %2035 = vmatprep.subr.bf16.mxu0 %v1193
    %2036 = vmatpush2.bf16.msra.mxu0 %v1192
    %2037 = vmatprep.subr.bf16.mxu0 %v1189
    %2038 = vmatpush2.bf16.msra.mxu0 %v1188
    %2039 = vmatprep.mubr.bf16.mxu0 %v2006
    %2040 = vmatmul.mubr.bf16.gmra.mxu0 %v2005
    %v2041 = vpop.f32.mrf.mxu0
    %v2042 = vadd.f32 %v947, %v2041
    %v2043 = vpop.f32.mrf.mxu0
    %v2044 = vadd.f32 %v951, %v2043
    %v2045 = vpop.f32.mrf.mxu0
    %v2046 = vpop.f32.mrf.mxu0
    %2047 = vdwg.mxu0
    %2048 = vmatprep.subr.bf16.mxu0 %v1187
    %2049 = vmatpush1.bf16.msra.mxu0 %v1186
    %2050 = vmatprep.subr.bf16.mxu0 %v1183
    %2051 = vmatpush1.bf16.msra.mxu0 %v1182
    %2052 = vmatprep.subr.bf16.mxu0 %v1179
    %2053 = vmatpush1.bf16.msra.mxu0 %v1178
    %2054 = vmatprep.subr.bf16.mxu0 %v1175
    %2055 = vmatpush1.bf16.msra.mxu0 %v1174
    %2056 = vmatprep.subr.bf16.mxu0 %v1171
    %2057 = vmatpush1.bf16.msra.mxu0 %v1170
    %2058 = vmatprep.subr.bf16.mxu0 %v1167
    %2059 = vmatpush1.bf16.msra.mxu0 %v1166
    %2060 = vmatprep.subr.bf16.mxu0 %v1163
    %2061 = vmatpush1.bf16.msra.mxu0 %v1162
    %2062 = vmatprep.subr.bf16.mxu0 %v1159
    %2063 = vmatpush1.bf16.msra.mxu0 %v1158
    %2064 = vmatprep.subr.bf16.mxu0 %v1219
    %2065 = vmatpush2.bf16.msra.mxu0 %v1218
    %2066 = vmatprep.subr.bf16.mxu0 %v1215
    %2067 = vmatpush2.bf16.msra.mxu0 %v1214
    %2068 = vmatprep.subr.bf16.mxu0 %v1211
    %2069 = vmatpush2.bf16.msra.mxu0 %v1210
    %2070 = vmatprep.subr.bf16.mxu0 %v1207
    %2071 = vmatpush2.bf16.msra.mxu0 %v1206
    %2072 = vmatprep.subr.bf16.mxu0 %v1203
    %2073 = vmatpush2.bf16.msra.mxu0 %v1202
    %2074 = vmatprep.subr.bf16.mxu0 %v1199
    %2075 = vmatpush2.bf16.msra.mxu0 %v1198
    %2076 = vmatprep.subr.bf16.mxu0 %v1195
    %2077 = vmatpush2.bf16.msra.mxu0 %v1194
    %2078 = vmatprep.subr.bf16.mxu0 %v1191
    %2079 = vmatpush2.bf16.msra.mxu0 %v1190
    %2080 = vmatprep.mubr.bf16.mxu0 %v2006
    %2081 = vmatmul.mubr.bf16.gmra.mxu0 %v2005
    %v2082 = vpop.f32.mrf.mxu0
    %v2083 = vadd.f32 %v955, %v2082
    %v2084 = vpop.f32.mrf.mxu0
    %v2085 = vadd.f32 %v959, %v2084
    %v2086 = vpop.f32.mrf.mxu0
    %v2087 = vpop.f32.mrf.mxu0
    %2088 = vdwg.mxu0
    %v2089 = vxor.u32 %v2042, 2147483648
    %v2090 = vmul.f32 %v2089, 1.442695
    %v2091 = vpow.pop %v2090
    %v2092 = vadd.f32 %v2091, 1.0
    %v2093 = vrcp.pop %v2092
    %v2094 = vmul.f32 1.0, %v2093
    %v2095 = vxor.u32 %v2044, 2147483648
    %v2096 = vmul.f32 %v2095, 1.442695
    %v2097 = vpow.pop %v2096
    %v2098 = vadd.f32 %v2097, 1.0
    %v2099 = vrcp.pop %v2098
    %v2100 = vmul.f32 1.0, %v2099
    %v2101 = vtanh.pop %v2083
    %v2102 = vxor.u32 %v2085, 2147483648
    %v2103 = vmul.f32 %v2102, 1.442695
    %v2104 = vpow.pop %v2103
    %v2105 = vadd.f32 %v2104, 1.0
    %v2106 = vrcp.pop %v2105
    %v2107 = vmul.f32 1.0, %v2106
    %v2108 = vmul.f32 %v2100, %v2004
    %v2109 = vmul.f32 %v2094, %v2101
    %v2110 = vadd.f32 %v2108, %v2109
    %v2111 = vtanh.pop %v2110
    %v2112 = vmul.f32 %v2107, %v2111
    %v2113 = vsel %vm1878, %v2112, %v2003
    %2114 = vst [vmem:[#allocation5] sm:$0xff] %v2113
    %v2115 = vsel %vm1878, %v2110, %v2004
    %2116 = vst [vmem:[#allocation6] sm:$0xff] %v2115
    %s2117 = sadd.s32 %s652, 4
    %v2118 = vstv %s2117
    %vm2119 = vcmp.lt.s32.totalorder %v2118, %v651
    %v2120 = vld [vmem:[#allocation3] sm:$0xff]
    %v2121 = vld [vmem:[#allocation4] sm:$0xff]
    %s2122 = smul.u32 4, 4
    %s2123 = smul.addr %s2122, 8
    %s2124 = scalar_lea.vmem [#allocation2], %s2123
    %v2125 = vld [vmem:[%s2124] sm:$0xff]
    %v2126 = vld [vmem:[%s2124 + $0x8] sm:$0xff]
    %v2127 = vld [vmem:[%s2124 + $0x10] sm:$0xff]
    %v2128 = vld [vmem:[%s2124 + $0x18] sm:$0xff]
    %v2129 = vpack.c.bf16 %v2120, %v2120
    %2130 = vmatprep.subr.bf16.mxu0 %v790
    %2131 = vmatpush1.bf16.msra.mxu0 %v789
    %2132 = vmatprep.subr.bf16.mxu0 %v786
    %2133 = vmatpush1.bf16.msra.mxu0 %v785
    %2134 = vmatprep.subr.bf16.mxu0 %v782
    %2135 = vmatpush1.bf16.msra.mxu0 %v781
    %2136 = vmatprep.subr.bf16.mxu0 %v778
    %2137 = vmatpush1.bf16.msra.mxu0 %v777
    %2138 = vmatprep.subr.bf16.mxu0 %v774
    %2139 = vmatpush1.bf16.msra.mxu0 %v773
    %2140 = vmatprep.subr.bf16.mxu0 %v770
    %2141 = vmatpush1.bf16.msra.mxu0 %v769
    %2142 = vmatprep.subr.bf16.mxu0 %v766
    %2143 = vmatpush1.bf16.msra.mxu0 %v765
    %2144 = vmatprep.subr.bf16.mxu0 %v762
    %2145 = vmatpush1.bf16.msra.mxu0 %v761
    %2146 = vmatprep.subr.bf16.mxu0 0
    %2147 = vmatpush2.bf16.msra.mxu0 0
    %2148 = vmatprep.subr.bf16.mxu0 0
    %2149 = vmatpush2.bf16.msra.mxu0 0
    %2150 = vmatprep.subr.bf16.mxu0 0
    %2151 = vmatpush2.bf16.msra.mxu0 0
    %2152 = vmatprep.subr.bf16.mxu0 0
    %2153 = vmatpush2.bf16.msra.mxu0 0
    %2154 = vmatprep.subr.bf16.mxu0 0
    %2155 = vmatpush2.bf16.msra.mxu0 0
    %2156 = vmatprep.subr.bf16.mxu0 0
    %2157 = vmatpush2.bf16.msra.mxu0 0
    %2158 = vmatprep.subr.bf16.mxu0 0
    %2159 = vmatpush2.bf16.msra.mxu0 0
    %2160 = vmatprep.subr.bf16.mxu0 0
    %2161 = vmatpush2.bf16.msra.mxu0 0
    %2162 = vmatprep.mubr.bf16.mxu0 0
    %2163 = vmatmul.mubr.bf16.gmra.mxu0 %v2129
    %v2164 = vpop.f32.mrf.mxu0
    %v2165 = vadd.f32 0.0, %v2164
    %v2166 = vpop.f32.mrf.mxu0
    %v2167 = vadd.f32 0.0, %v2166
    %v2168 = vpop.f32.mrf.mxu0
    %v2169 = vpop.f32.mrf.mxu0
    %2170 = vdwg.mxu0
    %2171 = vmatprep.subr.bf16.mxu0 %v792
    %2172 = vmatpush1.bf16.msra.mxu0 %v791
    %2173 = vmatprep.subr.bf16.mxu0 %v788
    %2174 = vmatpush1.bf16.msra.mxu0 %v787
    %2175 = vmatprep.subr.bf16.mxu0 %v784
    %2176 = vmatpush1.bf16.msra.mxu0 %v783
    %2177 = vmatprep.subr.bf16.mxu0 %v780
    %2178 = vmatpush1.bf16.msra.mxu0 %v779
    %2179 = vmatprep.subr.bf16.mxu0 %v776
    %2180 = vmatpush1.bf16.msra.mxu0 %v775
    %2181 = vmatprep.subr.bf16.mxu0 %v772
    %2182 = vmatpush1.bf16.msra.mxu0 %v771
    %2183 = vmatprep.subr.bf16.mxu0 %v768
    %2184 = vmatpush1.bf16.msra.mxu0 %v767
    %2185 = vmatprep.subr.bf16.mxu0 %v764
    %2186 = vmatpush1.bf16.msra.mxu0 %v763
    %2187 = vmatprep.subr.bf16.mxu0 0
    %2188 = vmatpush2.bf16.msra.mxu0 0
    %2189 = vmatprep.subr.bf16.mxu0 0
    %2190 = vmatpush2.bf16.msra.mxu0 0
    %2191 = vmatprep.subr.bf16.mxu0 0
    %2192 = vmatpush2.bf16.msra.mxu0 0
    %2193 = vmatprep.subr.bf16.mxu0 0
    %2194 = vmatpush2.bf16.msra.mxu0 0
    %2195 = vmatprep.subr.bf16.mxu0 0
    %2196 = vmatpush2.bf16.msra.mxu0 0
    %2197 = vmatprep.subr.bf16.mxu0 0
    %2198 = vmatpush2.bf16.msra.mxu0 0
    %2199 = vmatprep.subr.bf16.mxu0 0
    %2200 = vmatpush2.bf16.msra.mxu0 0
    %2201 = vmatprep.subr.bf16.mxu0 0
    %2202 = vmatpush2.bf16.msra.mxu0 0
    %2203 = vmatprep.mubr.bf16.mxu0 0
    %2204 = vmatmul.mubr.bf16.gmra.mxu0 %v2129
    %v2205 = vpop.f32.mrf.mxu0
    %v2206 = vadd.f32 0.0, %v2205
    %v2207 = vpop.f32.mrf.mxu0
    %v2208 = vadd.f32 0.0, %v2207
    %v2209 = vpop.f32.mrf.mxu0
    %v2210 = vpop.f32.mrf.mxu0
    %2211 = vdwg.mxu0
    %v2212 = vadd.f32 %v2125, %v2165
    %v2213 = vadd.f32 %v2126, %v2167
    %v2214 = vadd.f32 %v2127, %v2206
    %v2215 = vadd.f32 %v2128, %v2208
    %v2216 = vxor.u32 %v2212, 2147483648
    %v2217 = vmul.f32 %v2216, 1.442695
    %v2218 = vpow.pop %v2217
    %v2219 = vadd.f32 %v2218, 1.0
    %v2220 = vrcp.pop %v2219
    %v2221 = vmul.f32 1.0, %v2220
    %v2222 = vxor.u32 %v2213, 2147483648
    %v2223 = vmul.f32 %v2222, 1.442695
    %v2224 = vpow.pop %v2223
    %v2225 = vadd.f32 %v2224, 1.0
    %v2226 = vrcp.pop %v2225
    %v2227 = vmul.f32 1.0, %v2226
    %v2228 = vtanh.pop %v2214
    %v2229 = vxor.u32 %v2215, 2147483648
    %v2230 = vmul.f32 %v2229, 1.442695
    %v2231 = vpow.pop %v2230
    %v2232 = vadd.f32 %v2231, 1.0
    %v2233 = vrcp.pop %v2232
    %v2234 = vmul.f32 1.0, %v2233
    %v2235 = vmul.f32 %v2227, %v2121
    %v2236 = vmul.f32 %v2221, %v2228
    %v2237 = vadd.f32 %v2235, %v2236
    %v2238 = vtanh.pop %v2237
    %v2239 = vmul.f32 %v2234, %v2238
    %v2240 = vsel %vm2119, %v2239, %v2120
    %2241 = vst [vmem:[#allocation3] sm:$0xff] %v2240
    %v2242 = vsel %vm2119, %v2237, %v2121
    %2243 = vst [vmem:[#allocation4] sm:$0xff] %v2242
    %v2244 = vld [vmem:[#allocation5] sm:$0xff]
    %v2245 = vld [vmem:[#allocation6] sm:$0xff]
    %v2246 = vpack.c.bf16 %v2240, %v2240
    %v2247 = vpack.c.bf16 %v2244, %v2244
    %2248 = vmatprep.subr.bf16.mxu0 %v1185
    %2249 = vmatpush1.bf16.msra.mxu0 %v1184
    %2250 = vmatprep.subr.bf16.mxu0 %v1181
    %2251 = vmatpush1.bf16.msra.mxu0 %v1180
    %2252 = vmatprep.subr.bf16.mxu0 %v1177
    %2253 = vmatpush1.bf16.msra.mxu0 %v1176
    %2254 = vmatprep.subr.bf16.mxu0 %v1173
    %2255 = vmatpush1.bf16.msra.mxu0 %v1172
    %2256 = vmatprep.subr.bf16.mxu0 %v1169
    %2257 = vmatpush1.bf16.msra.mxu0 %v1168
    %2258 = vmatprep.subr.bf16.mxu0 %v1165
    %2259 = vmatpush1.bf16.msra.mxu0 %v1164
    %2260 = vmatprep.subr.bf16.mxu0 %v1161
    %2261 = vmatpush1.bf16.msra.mxu0 %v1160
    %2262 = vmatprep.subr.bf16.mxu0 %v1157
    %2263 = vmatpush1.bf16.msra.mxu0 %v1156
    %2264 = vmatprep.subr.bf16.mxu0 %v1217
    %2265 = vmatpush2.bf16.msra.mxu0 %v1216
    %2266 = vmatprep.subr.bf16.mxu0 %v1213
    %2267 = vmatpush2.bf16.msra.mxu0 %v1212
    %2268 = vmatprep.subr.bf16.mxu0 %v1209
    %2269 = vmatpush2.bf16.msra.mxu0 %v1208
    %2270 = vmatprep.subr.bf16.mxu0 %v1205
    %2271 = vmatpush2.bf16.msra.mxu0 %v1204
    %2272 = vmatprep.subr.bf16.mxu0 %v1201
    %2273 = vmatpush2.bf16.msra.mxu0 %v1200
    %2274 = vmatprep.subr.bf16.mxu0 %v1197
    %2275 = vmatpush2.bf16.msra.mxu0 %v1196
    %2276 = vmatprep.subr.bf16.mxu0 %v1193
    %2277 = vmatpush2.bf16.msra.mxu0 %v1192
    %2278 = vmatprep.subr.bf16.mxu0 %v1189
    %2279 = vmatpush2.bf16.msra.mxu0 %v1188
    %2280 = vmatprep.mubr.bf16.mxu0 %v2247
    %2281 = vmatmul.mubr.bf16.gmra.mxu0 %v2246
    %v2282 = vpop.f32.mrf.mxu0
    %v2283 = vadd.f32 %v947, %v2282
    %v2284 = vpop.f32.mrf.mxu0
    %v2285 = vadd.f32 %v951, %v2284
    %v2286 = vpop.f32.mrf.mxu0
    %v2287 = vpop.f32.mrf.mxu0
    %2288 = vdwg.mxu0
    %2289 = vmatprep.subr.bf16.mxu0 %v1187
    %2290 = vmatpush1.bf16.msra.mxu0 %v1186
    %2291 = vmatprep.subr.bf16.mxu0 %v1183
    %2292 = vmatpush1.bf16.msra.mxu0 %v1182
    %2293 = vmatprep.subr.bf16.mxu0 %v1179
    %2294 = vmatpush1.bf16.msra.mxu0 %v1178
    %2295 = vmatprep.subr.bf16.mxu0 %v1175
    %2296 = vmatpush1.bf16.msra.mxu0 %v1174
    %2297 = vmatprep.subr.bf16.mxu0 %v1171
    %2298 = vmatpush1.bf16.msra.mxu0 %v1170
    %2299 = vmatprep.subr.bf16.mxu0 %v1167
    %2300 = vmatpush1.bf16.msra.mxu0 %v1166
    %2301 = vmatprep.subr.bf16.mxu0 %v1163
    %2302 = vmatpush1.bf16.msra.mxu0 %v1162
    %2303 = vmatprep.subr.bf16.mxu0 %v1159
    %2304 = vmatpush1.bf16.msra.mxu0 %v1158
    %2305 = vmatprep.subr.bf16.mxu0 %v1219
    %2306 = vmatpush2.bf16.msra.mxu0 %v1218
    %2307 = vmatprep.subr.bf16.mxu0 %v1215
    %2308 = vmatpush2.bf16.msra.mxu0 %v1214
    %2309 = vmatprep.subr.bf16.mxu0 %v1211
    %2310 = vmatpush2.bf16.msra.mxu0 %v1210
    %2311 = vmatprep.subr.bf16.mxu0 %v1207
    %2312 = vmatpush2.bf16.msra.mxu0 %v1206
    %2313 = vmatprep.subr.bf16.mxu0 %v1203
    %2314 = vmatpush2.bf16.msra.mxu0 %v1202
    %2315 = vmatprep.subr.bf16.mxu0 %v1199
    %2316 = vmatpush2.bf16.msra.mxu0 %v1198
    %2317 = vmatprep.subr.bf16.mxu0 %v1195
    %2318 = vmatpush2.bf16.msra.mxu0 %v1194
    %2319 = vmatprep.subr.bf16.mxu0 %v1191
    %2320 = vmatpush2.bf16.msra.mxu0 %v1190
    %2321 = vmatprep.mubr.bf16.mxu0 %v2247
    %2322 = vmatmul.mubr.bf16.gmra.mxu0 %v2246
    %v2323 = vpop.f32.mrf.mxu0
    %v2324 = vadd.f32 %v955, %v2323
    %v2325 = vpop.f32.mrf.mxu0
    %v2326 = vadd.f32 %v959, %v2325
    %v2327 = vpop.f32.mrf.mxu0
    %v2328 = vpop.f32.mrf.mxu0
    %2329 = vdwg.mxu0
    %v2330 = vxor.u32 %v2283, 2147483648
    %v2331 = vmul.f32 %v2330, 1.442695
    %v2332 = vpow.pop %v2331
    %v2333 = vadd.f32 %v2332, 1.0
    %v2334 = vrcp.pop %v2333
    %v2335 = vmul.f32 1.0, %v2334
    %v2336 = vxor.u32 %v2285, 2147483648
    %v2337 = vmul.f32 %v2336, 1.442695
    %v2338 = vpow.pop %v2337
    %v2339 = vadd.f32 %v2338, 1.0
    %v2340 = vrcp.pop %v2339
    %v2341 = vmul.f32 1.0, %v2340
    %v2342 = vtanh.pop %v2324
    %v2343 = vxor.u32 %v2326, 2147483648
    %v2344 = vmul.f32 %v2343, 1.442695
    %v2345 = vpow.pop %v2344
    %v2346 = vadd.f32 %v2345, 1.0
    %v2347 = vrcp.pop %v2346
    %v2348 = vmul.f32 1.0, %v2347
    %v2349 = vmul.f32 %v2341, %v2245
    %v2350 = vmul.f32 %v2335, %v2342
    %v2351 = vadd.f32 %v2349, %v2350
    %v2352 = vtanh.pop %v2351
    %v2353 = vmul.f32 %v2348, %v2352
    %v2354 = vsel %vm2119, %v2353, %v2244
    %2355 = vst [vmem:[#allocation5] sm:$0xff] %v2354
    %v2356 = vsel %vm2119, %v2351, %v2245
    %2357 = vst [vmem:[#allocation6] sm:$0xff] %v2356
    %s2358 = sadd.s32 %s652, 5
    %v2359 = vstv %s2358
    %vm2360 = vcmp.lt.s32.totalorder %v2359, %v651
    %v2361 = vld [vmem:[#allocation3] sm:$0xff]
    %v2362 = vld [vmem:[#allocation4] sm:$0xff]
    %s2363 = smul.u32 5, 4
    %s2364 = smul.addr %s2363, 8
    %s2365 = scalar_lea.vmem [#allocation2], %s2364
    %v2366 = vld [vmem:[%s2365] sm:$0xff]
    %v2367 = vld [vmem:[%s2365 + $0x8] sm:$0xff]
    %v2368 = vld [vmem:[%s2365 + $0x10] sm:$0xff]
    %v2369 = vld [vmem:[%s2365 + $0x18] sm:$0xff]
    %v2370 = vpack.c.bf16 %v2361, %v2361
    %2371 = vmatprep.subr.bf16.mxu0 %v790
    %2372 = vmatpush1.bf16.msra.mxu0 %v789
    %2373 = vmatprep.subr.bf16.mxu0 %v786
    %2374 = vmatpush1.bf16.msra.mxu0 %v785
    %2375 = vmatprep.subr.bf16.mxu0 %v782
    %2376 = vmatpush1.bf16.msra.mxu0 %v781
    %2377 = vmatprep.subr.bf16.mxu0 %v778
    %2378 = vmatpush1.bf16.msra.mxu0 %v777
    %2379 = vmatprep.subr.bf16.mxu0 %v774
    %2380 = vmatpush1.bf16.msra.mxu0 %v773
    %2381 = vmatprep.subr.bf16.mxu0 %v770
    %2382 = vmatpush1.bf16.msra.mxu0 %v769
    %2383 = vmatprep.subr.bf16.mxu0 %v766
    %2384 = vmatpush1.bf16.msra.mxu0 %v765
    %2385 = vmatprep.subr.bf16.mxu0 %v762
    %2386 = vmatpush1.bf16.msra.mxu0 %v761
    %2387 = vmatprep.subr.bf16.mxu0 0
    %2388 = vmatpush2.bf16.msra.mxu0 0
    %2389 = vmatprep.subr.bf16.mxu0 0
    %2390 = vmatpush2.bf16.msra.mxu0 0
    %2391 = vmatprep.subr.bf16.mxu0 0
    %2392 = vmatpush2.bf16.msra.mxu0 0
    %2393 = vmatprep.subr.bf16.mxu0 0
    %2394 = vmatpush2.bf16.msra.mxu0 0
    %2395 = vmatprep.subr.bf16.mxu0 0
    %2396 = vmatpush2.bf16.msra.mxu0 0
    %2397 = vmatprep.subr.bf16.mxu0 0
    %2398 = vmatpush2.bf16.msra.mxu0 0
    %2399 = vmatprep.subr.bf16.mxu0 0
    %2400 = vmatpush2.bf16.msra.mxu0 0
    %2401 = vmatprep.subr.bf16.mxu0 0
    %2402 = vmatpush2.bf16.msra.mxu0 0
    %2403 = vmatprep.mubr.bf16.mxu0 0
    %2404 = vmatmul.mubr.bf16.gmra.mxu0 %v2370
    %v2405 = vpop.f32.mrf.mxu0
    %v2406 = vadd.f32 0.0, %v2405
    %v2407 = vpop.f32.mrf.mxu0
    %v2408 = vadd.f32 0.0, %v2407
    %v2409 = vpop.f32.mrf.mxu0
    %v2410 = vpop.f32.mrf.mxu0
    %2411 = vdwg.mxu0
    %2412 = vmatprep.subr.bf16.mxu0 %v792
    %2413 = vmatpush1.bf16.msra.mxu0 %v791
    %2414 = vmatprep.subr.bf16.mxu0 %v788
    %2415 = vmatpush1.bf16.msra.mxu0 %v787
    %2416 = vmatprep.subr.bf16.mxu0 %v784
    %2417 = vmatpush1.bf16.msra.mxu0 %v783
    %2418 = vmatprep.subr.bf16.mxu0 %v780
    %2419 = vmatpush1.bf16.msra.mxu0 %v779
    %2420 = vmatprep.subr.bf16.mxu0 %v776
    %2421 = vmatpush1.bf16.msra.mxu0 %v775
    %2422 = vmatprep.subr.bf16.mxu0 %v772
    %2423 = vmatpush1.bf16.msra.mxu0 %v771
    %2424 = vmatprep.subr.bf16.mxu0 %v768
    %2425 = vmatpush1.bf16.msra.mxu0 %v767
    %2426 = vmatprep.subr.bf16.mxu0 %v764
    %2427 = vmatpush1.bf16.msra.mxu0 %v763
    %2428 = vmatprep.subr.bf16.mxu0 0
    %2429 = vmatpush2.bf16.msra.mxu0 0
    %2430 = vmatprep.subr.bf16.mxu0 0
    %2431 = vmatpush2.bf16.msra.mxu0 0
    %2432 = vmatprep.subr.bf16.mxu0 0
    %2433 = vmatpush2.bf16.msra.mxu0 0
    %2434 = vmatprep.subr.bf16.mxu0 0
    %2435 = vmatpush2.bf16.msra.mxu0 0
    %2436 = vmatprep.subr.bf16.mxu0 0
    %2437 = vmatpush2.bf16.msra.mxu0 0
    %2438 = vmatprep.subr.bf16.mxu0 0
    %2439 = vmatpush2.bf16.msra.mxu0 0
    %2440 = vmatprep.subr.bf16.mxu0 0
    %2441 = vmatpush2.bf16.msra.mxu0 0
    %2442 = vmatprep.subr.bf16.mxu0 0
    %2443 = vmatpush2.bf16.msra.mxu0 0
    %2444 = vmatprep.mubr.bf16.mxu0 0
    %2445 = vmatmul.mubr.bf16.gmra.mxu0 %v2370
    %v2446 = vpop.f32.mrf.mxu0
    %v2447 = vadd.f32 0.0, %v2446
    %v2448 = vpop.f32.mrf.mxu0
    %v2449 = vadd.f32 0.0, %v2448
    %v2450 = vpop.f32.mrf.mxu0
    %v2451 = vpop.f32.mrf.mxu0
    %2452 = vdwg.mxu0
    %v2453 = vadd.f32 %v2366, %v2406
    %v2454 = vadd.f32 %v2367, %v2408
    %v2455 = vadd.f32 %v2368, %v2447
    %v2456 = vadd.f32 %v2369, %v2449
    %v2457 = vxor.u32 %v2453, 2147483648
    %v2458 = vmul.f32 %v2457, 1.442695
    %v2459 = vpow.pop %v2458
    %v2460 = vadd.f32 %v2459, 1.0
    %v2461 = vrcp.pop %v2460
    %v2462 = vmul.f32 1.0, %v2461
    %v2463 = vxor.u32 %v2454, 2147483648
    %v2464 = vmul.f32 %v2463, 1.442695
    %v2465 = vpow.pop %v2464
    %v2466 = vadd.f32 %v2465, 1.0
    %v2467 = vrcp.pop %v2466
    %v2468 = vmul.f32 1.0, %v2467
    %v2469 = vtanh.pop %v2455
    %v2470 = vxor.u32 %v2456, 2147483648
    %v2471 = vmul.f32 %v2470, 1.442695
    %v2472 = vpow.pop %v2471
    %v2473 = vadd.f32 %v2472, 1.0
    %v2474 = vrcp.pop %v2473
    %v2475 = vmul.f32 1.0, %v2474
    %v2476 = vmul.f32 %v2468, %v2362
    %v2477 = vmul.f32 %v2462, %v2469
    %v2478 = vadd.f32 %v2476, %v2477
    %v2479 = vtanh.pop %v2478
    %v2480 = vmul.f32 %v2475, %v2479
    %v2481 = vsel %vm2360, %v2480, %v2361
    %2482 = vst [vmem:[#allocation3] sm:$0xff] %v2481
    %v2483 = vsel %vm2360, %v2478, %v2362
    %2484 = vst [vmem:[#allocation4] sm:$0xff] %v2483
    %v2485 = vld [vmem:[#allocation5] sm:$0xff]
    %v2486 = vld [vmem:[#allocation6] sm:$0xff]
    %v2487 = vpack.c.bf16 %v2481, %v2481
    %v2488 = vpack.c.bf16 %v2485, %v2485
    %2489 = vmatprep.subr.bf16.mxu0 %v1185
    %2490 = vmatpush1.bf16.msra.mxu0 %v1184
    %2491 = vmatprep.subr.bf16.mxu0 %v1181
    %2492 = vmatpush1.bf16.msra.mxu0 %v1180
    %2493 = vmatprep.subr.bf16.mxu0 %v1177
    %2494 = vmatpush1.bf16.msra.mxu0 %v1176
    %2495 = vmatprep.subr.bf16.mxu0 %v1173
    %2496 = vmatpush1.bf16.msra.mxu0 %v1172
    %2497 = vmatprep.subr.bf16.mxu0 %v1169
    %2498 = vmatpush1.bf16.msra.mxu0 %v1168
    %2499 = vmatprep.subr.bf16.mxu0 %v1165
    %2500 = vmatpush1.bf16.msra.mxu0 %v1164
    %2501 = vmatprep.subr.bf16.mxu0 %v1161
    %2502 = vmatpush1.bf16.msra.mxu0 %v1160
    %2503 = vmatprep.subr.bf16.mxu0 %v1157
    %2504 = vmatpush1.bf16.msra.mxu0 %v1156
    %2505 = vmatprep.subr.bf16.mxu0 %v1217
    %2506 = vmatpush2.bf16.msra.mxu0 %v1216
    %2507 = vmatprep.subr.bf16.mxu0 %v1213
    %2508 = vmatpush2.bf16.msra.mxu0 %v1212
    %2509 = vmatprep.subr.bf16.mxu0 %v1209
    %2510 = vmatpush2.bf16.msra.mxu0 %v1208
    %2511 = vmatprep.subr.bf16.mxu0 %v1205
    %2512 = vmatpush2.bf16.msra.mxu0 %v1204
    %2513 = vmatprep.subr.bf16.mxu0 %v1201
    %2514 = vmatpush2.bf16.msra.mxu0 %v1200
    %2515 = vmatprep.subr.bf16.mxu0 %v1197
    %2516 = vmatpush2.bf16.msra.mxu0 %v1196
    %2517 = vmatprep.subr.bf16.mxu0 %v1193
    %2518 = vmatpush2.bf16.msra.mxu0 %v1192
    %2519 = vmatprep.subr.bf16.mxu0 %v1189
    %2520 = vmatpush2.bf16.msra.mxu0 %v1188
    %2521 = vmatprep.mubr.bf16.mxu0 %v2488
    %2522 = vmatmul.mubr.bf16.gmra.mxu0 %v2487
    %v2523 = vpop.f32.mrf.mxu0
    %v2524 = vadd.f32 %v947, %v2523
    %v2525 = vpop.f32.mrf.mxu0
    %v2526 = vadd.f32 %v951, %v2525
    %v2527 = vpop.f32.mrf.mxu0
    %v2528 = vpop.f32.mrf.mxu0
    %2529 = vdwg.mxu0
    %2530 = vmatprep.subr.bf16.mxu0 %v1187
    %2531 = vmatpush1.bf16.msra.mxu0 %v1186
    %2532 = vmatprep.subr.bf16.mxu0 %v1183
    %2533 = vmatpush1.bf16.msra.mxu0 %v1182
    %2534 = vmatprep.subr.bf16.mxu0 %v1179
    %2535 = vmatpush1.bf16.msra.mxu0 %v1178
    %2536 = vmatprep.subr.bf16.mxu0 %v1175
    %2537 = vmatpush1.bf16.msra.mxu0 %v1174
    %2538 = vmatprep.subr.bf16.mxu0 %v1171
    %2539 = vmatpush1.bf16.msra.mxu0 %v1170
    %2540 = vmatprep.subr.bf16.mxu0 %v1167
    %2541 = vmatpush1.bf16.msra.mxu0 %v1166
    %2542 = vmatprep.subr.bf16.mxu0 %v1163
    %2543 = vmatpush1.bf16.msra.mxu0 %v1162
    %2544 = vmatprep.subr.bf16.mxu0 %v1159
    %2545 = vmatpush1.bf16.msra.mxu0 %v1158
    %2546 = vmatprep.subr.bf16.mxu0 %v1219
    %2547 = vmatpush2.bf16.msra.mxu0 %v1218
    %2548 = vmatprep.subr.bf16.mxu0 %v1215
    %2549 = vmatpush2.bf16.msra.mxu0 %v1214
    %2550 = vmatprep.subr.bf16.mxu0 %v1211
    %2551 = vmatpush2.bf16.msra.mxu0 %v1210
    %2552 = vmatprep.subr.bf16.mxu0 %v1207
    %2553 = vmatpush2.bf16.msra.mxu0 %v1206
    %2554 = vmatprep.subr.bf16.mxu0 %v1203
    %2555 = vmatpush2.bf16.msra.mxu0 %v1202
    %2556 = vmatprep.subr.bf16.mxu0 %v1199
    %2557 = vmatpush2.bf16.msra.mxu0 %v1198
    %2558 = vmatprep.subr.bf16.mxu0 %v1195
    %2559 = vmatpush2.bf16.msra.mxu0 %v1194
    %2560 = vmatprep.subr.bf16.mxu0 %v1191
    %2561 = vmatpush2.bf16.msra.mxu0 %v1190
    %2562 = vmatprep.mubr.bf16.mxu0 %v2488
    %2563 = vmatmul.mubr.bf16.gmra.mxu0 %v2487
    %v2564 = vpop.f32.mrf.mxu0
    %v2565 = vadd.f32 %v955, %v2564
    %v2566 = vpop.f32.mrf.mxu0
    %v2567 = vadd.f32 %v959, %v2566
    %v2568 = vpop.f32.mrf.mxu0
    %v2569 = vpop.f32.mrf.mxu0
    %2570 = vdwg.mxu0
    %v2571 = vxor.u32 %v2524, 2147483648
    %v2572 = vmul.f32 %v2571, 1.442695
    %v2573 = vpow.pop %v2572
    %v2574 = vadd.f32 %v2573, 1.0
    %v2575 = vrcp.pop %v2574
    %v2576 = vmul.f32 1.0, %v2575
    %v2577 = vxor.u32 %v2526, 2147483648
    %v2578 = vmul.f32 %v2577, 1.442695
    %v2579 = vpow.pop %v2578
    %v2580 = vadd.f32 %v2579, 1.0
    %v2581 = vrcp.pop %v2580
    %v2582 = vmul.f32 1.0, %v2581
    %v2583 = vtanh.pop %v2565
    %v2584 = vxor.u32 %v2567, 2147483648
    %v2585 = vmul.f32 %v2584, 1.442695
    %v2586 = vpow.pop %v2585
    %v2587 = vadd.f32 %v2586, 1.0
    %v2588 = vrcp.pop %v2587
    %v2589 = vmul.f32 1.0, %v2588
    %v2590 = vmul.f32 %v2582, %v2486
    %v2591 = vmul.f32 %v2576, %v2583
    %v2592 = vadd.f32 %v2590, %v2591
    %v2593 = vtanh.pop %v2592
    %v2594 = vmul.f32 %v2589, %v2593
    %v2595 = vsel %vm2360, %v2594, %v2485
    %2596 = vst [vmem:[#allocation5] sm:$0xff] %v2595
    %v2597 = vsel %vm2360, %v2592, %v2486
    %2598 = vst [vmem:[#allocation6] sm:$0xff] %v2597
    %s2599 = sadd.s32 %s652, 6
    %v2600 = vstv %s2599
    %vm2601 = vcmp.lt.s32.totalorder %v2600, %v651
    %v2602 = vld [vmem:[#allocation3] sm:$0xff]
    %v2603 = vld [vmem:[#allocation4] sm:$0xff]
    %s2604 = smul.u32 6, 4
    %s2605 = smul.addr %s2604, 8
    %s2606 = scalar_lea.vmem [#allocation2], %s2605
    %v2607 = vld [vmem:[%s2606] sm:$0xff]
    %v2608 = vld [vmem:[%s2606 + $0x8] sm:$0xff]
    %v2609 = vld [vmem:[%s2606 + $0x10] sm:$0xff]
    %v2610 = vld [vmem:[%s2606 + $0x18] sm:$0xff]
    %v2611 = vpack.c.bf16 %v2602, %v2602
    %2612 = vmatprep.subr.bf16.mxu0 %v790
    %2613 = vmatpush1.bf16.msra.mxu0 %v789
    %2614 = vmatprep.subr.bf16.mxu0 %v786
    %2615 = vmatpush1.bf16.msra.mxu0 %v785
    %2616 = vmatprep.subr.bf16.mxu0 %v782
    %2617 = vmatpush1.bf16.msra.mxu0 %v781
    %2618 = vmatprep.subr.bf16.mxu0 %v778
    %2619 = vmatpush1.bf16.msra.mxu0 %v777
    %2620 = vmatprep.subr.bf16.mxu0 %v774
    %2621 = vmatpush1.bf16.msra.mxu0 %v773
    %2622 = vmatprep.subr.bf16.mxu0 %v770
    %2623 = vmatpush1.bf16.msra.mxu0 %v769
    %2624 = vmatprep.subr.bf16.mxu0 %v766
    %2625 = vmatpush1.bf16.msra.mxu0 %v765
    %2626 = vmatprep.subr.bf16.mxu0 %v762
    %2627 = vmatpush1.bf16.msra.mxu0 %v761
    %2628 = vmatprep.subr.bf16.mxu0 0
    %2629 = vmatpush2.bf16.msra.mxu0 0
    %2630 = vmatprep.subr.bf16.mxu0 0
    %2631 = vmatpush2.bf16.msra.mxu0 0
    %2632 = vmatprep.subr.bf16.mxu0 0
    %2633 = vmatpush2.bf16.msra.mxu0 0
    %2634 = vmatprep.subr.bf16.mxu0 0
    %2635 = vmatpush2.bf16.msra.mxu0 0
    %2636 = vmatprep.subr.bf16.mxu0 0
    %2637 = vmatpush2.bf16.msra.mxu0 0
    %2638 = vmatprep.subr.bf16.mxu0 0
    %2639 = vmatpush2.bf16.msra.mxu0 0
    %2640 = vmatprep.subr.bf16.mxu0 0
    %2641 = vmatpush2.bf16.msra.mxu0 0
    %2642 = vmatprep.subr.bf16.mxu0 0
    %2643 = vmatpush2.bf16.msra.mxu0 0
    %2644 = vmatprep.mubr.bf16.mxu0 0
    %2645 = vmatmul.mubr.bf16.gmra.mxu0 %v2611
    %v2646 = vpop.f32.mrf.mxu0
    %v2647 = vadd.f32 0.0, %v2646
    %v2648 = vpop.f32.mrf.mxu0
    %v2649 = vadd.f32 0.0, %v2648
    %v2650 = vpop.f32.mrf.mxu0
    %v2651 = vpop.f32.mrf.mxu0
    %2652 = vdwg.mxu0
    %2653 = vmatprep.subr.bf16.mxu0 %v792
    %2654 = vmatpush1.bf16.msra.mxu0 %v791
    %2655 = vmatprep.subr.bf16.mxu0 %v788
    %2656 = vmatpush1.bf16.msra.mxu0 %v787
    %2657 = vmatprep.subr.bf16.mxu0 %v784
    %2658 = vmatpush1.bf16.msra.mxu0 %v783
    %2659 = vmatprep.subr.bf16.mxu0 %v780
    %2660 = vmatpush1.bf16.msra.mxu0 %v779
    %2661 = vmatprep.subr.bf16.mxu0 %v776
    %2662 = vmatpush1.bf16.msra.mxu0 %v775
    %2663 = vmatprep.subr.bf16.mxu0 %v772
    %2664 = vmatpush1.bf16.msra.mxu0 %v771
    %2665 = vmatprep.subr.bf16.mxu0 %v768
    %2666 = vmatpush1.bf16.msra.mxu0 %v767
    %2667 = vmatprep.subr.bf16.mxu0 %v764
    %2668 = vmatpush1.bf16.msra.mxu0 %v763
    %2669 = vmatprep.subr.bf16.mxu0 0
    %2670 = vmatpush2.bf16.msra.mxu0 0
    %2671 = vmatprep.subr.bf16.mxu0 0
    %2672 = vmatpush2.bf16.msra.mxu0 0
    %2673 = vmatprep.subr.bf16.mxu0 0
    %2674 = vmatpush2.bf16.msra.mxu0 0
    %2675 = vmatprep.subr.bf16.mxu0 0
    %2676 = vmatpush2.bf16.msra.mxu0 0
    %2677 = vmatprep.subr.bf16.mxu0 0
    %2678 = vmatpush2.bf16.msra.mxu0 0
    %2679 = vmatprep.subr.bf16.mxu0 0
    %2680 = vmatpush2.bf16.msra.mxu0 0
    %2681 = vmatprep.subr.bf16.mxu0 0
    %2682 = vmatpush2.bf16.msra.mxu0 0
    %2683 = vmatprep.subr.bf16.mxu0 0
    %2684 = vmatpush2.bf16.msra.mxu0 0
    %2685 = vmatprep.mubr.bf16.mxu0 0
    %2686 = vmatmul.mubr.bf16.gmra.mxu0 %v2611
    %v2687 = vpop.f32.mrf.mxu0
    %v2688 = vadd.f32 0.0, %v2687
    %v2689 = vpop.f32.mrf.mxu0
    %v2690 = vadd.f32 0.0, %v2689
    %v2691 = vpop.f32.mrf.mxu0
    %v2692 = vpop.f32.mrf.mxu0
    %2693 = vdwg.mxu0
    %v2694 = vadd.f32 %v2607, %v2647
    %v2695 = vadd.f32 %v2608, %v2649
    %v2696 = vadd.f32 %v2609, %v2688
    %v2697 = vadd.f32 %v2610, %v2690
    %v2698 = vxor.u32 %v2694, 2147483648
    %v2699 = vmul.f32 %v2698, 1.442695
    %v2700 = vpow.pop %v2699
    %v2701 = vadd.f32 %v2700, 1.0
    %v2702 = vrcp.pop %v2701
    %v2703 = vmul.f32 1.0, %v2702
    %v2704 = vxor.u32 %v2695, 2147483648
    %v2705 = vmul.f32 %v2704, 1.442695
    %v2706 = vpow.pop %v2705
    %v2707 = vadd.f32 %v2706, 1.0
    %v2708 = vrcp.pop %v2707
    %v2709 = vmul.f32 1.0, %v2708
    %v2710 = vtanh.pop %v2696
    %v2711 = vxor.u32 %v2697, 2147483648
    %v2712 = vmul.f32 %v2711, 1.442695
    %v2713 = vpow.pop %v2712
    %v2714 = vadd.f32 %v2713, 1.0
    %v2715 = vrcp.pop %v2714
    %v2716 = vmul.f32 1.0, %v2715
    %v2717 = vmul.f32 %v2709, %v2603
    %v2718 = vmul.f32 %v2703, %v2710
    %v2719 = vadd.f32 %v2717, %v2718
    %v2720 = vtanh.pop %v2719
    %v2721 = vmul.f32 %v2716, %v2720
    %v2722 = vsel %vm2601, %v2721, %v2602
    %2723 = vst [vmem:[#allocation3] sm:$0xff] %v2722
    %v2724 = vsel %vm2601, %v2719, %v2603
    %2725 = vst [vmem:[#allocation4] sm:$0xff] %v2724
    %v2726 = vld [vmem:[#allocation5] sm:$0xff]
    %v2727 = vld [vmem:[#allocation6] sm:$0xff]
    %v2728 = vpack.c.bf16 %v2722, %v2722
    %v2729 = vpack.c.bf16 %v2726, %v2726
    %2730 = vmatprep.subr.bf16.mxu0 %v1185
    %2731 = vmatpush1.bf16.msra.mxu0 %v1184
    %2732 = vmatprep.subr.bf16.mxu0 %v1181
    %2733 = vmatpush1.bf16.msra.mxu0 %v1180
    %2734 = vmatprep.subr.bf16.mxu0 %v1177
    %2735 = vmatpush1.bf16.msra.mxu0 %v1176
    %2736 = vmatprep.subr.bf16.mxu0 %v1173
    %2737 = vmatpush1.bf16.msra.mxu0 %v1172
    %2738 = vmatprep.subr.bf16.mxu0 %v1169
    %2739 = vmatpush1.bf16.msra.mxu0 %v1168
    %2740 = vmatprep.subr.bf16.mxu0 %v1165
    %2741 = vmatpush1.bf16.msra.mxu0 %v1164
    %2742 = vmatprep.subr.bf16.mxu0 %v1161
    %2743 = vmatpush1.bf16.msra.mxu0 %v1160
    %2744 = vmatprep.subr.bf16.mxu0 %v1157
    %2745 = vmatpush1.bf16.msra.mxu0 %v1156
    %2746 = vmatprep.subr.bf16.mxu0 %v1217
    %2747 = vmatpush2.bf16.msra.mxu0 %v1216
    %2748 = vmatprep.subr.bf16.mxu0 %v1213
    %2749 = vmatpush2.bf16.msra.mxu0 %v1212
    %2750 = vmatprep.subr.bf16.mxu0 %v1209
    %2751 = vmatpush2.bf16.msra.mxu0 %v1208
    %2752 = vmatprep.subr.bf16.mxu0 %v1205
    %2753 = vmatpush2.bf16.msra.mxu0 %v1204
    %2754 = vmatprep.subr.bf16.mxu0 %v1201
    %2755 = vmatpush2.bf16.msra.mxu0 %v1200
    %2756 = vmatprep.subr.bf16.mxu0 %v1197
    %2757 = vmatpush2.bf16.msra.mxu0 %v1196
    %2758 = vmatprep.subr.bf16.mxu0 %v1193
    %2759 = vmatpush2.bf16.msra.mxu0 %v1192
    %2760 = vmatprep.subr.bf16.mxu0 %v1189
    %2761 = vmatpush2.bf16.msra.mxu0 %v1188
    %2762 = vmatprep.mubr.bf16.mxu0 %v2729
    %2763 = vmatmul.mubr.bf16.gmra.mxu0 %v2728
    %v2764 = vpop.f32.mrf.mxu0
    %v2765 = vadd.f32 %v947, %v2764
    %v2766 = vpop.f32.mrf.mxu0
    %v2767 = vadd.f32 %v951, %v2766
    %v2768 = vpop.f32.mrf.mxu0
    %v2769 = vpop.f32.mrf.mxu0
    %2770 = vdwg.mxu0
    %2771 = vmatprep.subr.bf16.mxu0 %v1187
    %2772 = vmatpush1.bf16.msra.mxu0 %v1186
    %2773 = vmatprep.subr.bf16.mxu0 %v1183
    %2774 = vmatpush1.bf16.msra.mxu0 %v1182
    %2775 = vmatprep.subr.bf16.mxu0 %v1179
    %2776 = vmatpush1.bf16.msra.mxu0 %v1178
    %2777 = vmatprep.subr.bf16.mxu0 %v1175
    %2778 = vmatpush1.bf16.msra.mxu0 %v1174
    %2779 = vmatprep.subr.bf16.mxu0 %v1171
    %2780 = vmatpush1.bf16.msra.mxu0 %v1170
    %2781 = vmatprep.subr.bf16.mxu0 %v1167
    %2782 = vmatpush1.bf16.msra.mxu0 %v1166
    %2783 = vmatprep.subr.bf16.mxu0 %v1163
    %2784 = vmatpush1.bf16.msra.mxu0 %v1162
    %2785 = vmatprep.subr.bf16.mxu0 %v1159
    %2786 = vmatpush1.bf16.msra.mxu0 %v1158
    %2787 = vmatprep.subr.bf16.mxu0 %v1219
    %2788 = vmatpush2.bf16.msra.mxu0 %v1218
    %2789 = vmatprep.subr.bf16.mxu0 %v1215
    %2790 = vmatpush2.bf16.msra.mxu0 %v1214
    %2791 = vmatprep.subr.bf16.mxu0 %v1211
    %2792 = vmatpush2.bf16.msra.mxu0 %v1210
    %2793 = vmatprep.subr.bf16.mxu0 %v1207
    %2794 = vmatpush2.bf16.msra.mxu0 %v1206
    %2795 = vmatprep.subr.bf16.mxu0 %v1203
    %2796 = vmatpush2.bf16.msra.mxu0 %v1202
    %2797 = vmatprep.subr.bf16.mxu0 %v1199
    %2798 = vmatpush2.bf16.msra.mxu0 %v1198
    %2799 = vmatprep.subr.bf16.mxu0 %v1195
    %2800 = vmatpush2.bf16.msra.mxu0 %v1194
    %2801 = vmatprep.subr.bf16.mxu0 %v1191
    %2802 = vmatpush2.bf16.msra.mxu0 %v1190
    %2803 = vmatprep.mubr.bf16.mxu0 %v2729
    %2804 = vmatmul.mubr.bf16.gmra.mxu0 %v2728
    %v2805 = vpop.f32.mrf.mxu0
    %v2806 = vadd.f32 %v955, %v2805
    %v2807 = vpop.f32.mrf.mxu0
    %v2808 = vadd.f32 %v959, %v2807
    %v2809 = vpop.f32.mrf.mxu0
    %v2810 = vpop.f32.mrf.mxu0
    %2811 = vdwg.mxu0
    %v2812 = vxor.u32 %v2765, 2147483648
    %v2813 = vmul.f32 %v2812, 1.442695
    %v2814 = vpow.pop %v2813
    %v2815 = vadd.f32 %v2814, 1.0
    %v2816 = vrcp.pop %v2815
    %v2817 = vmul.f32 1.0, %v2816
    %v2818 = vxor.u32 %v2767, 2147483648
    %v2819 = vmul.f32 %v2818, 1.442695
    %v2820 = vpow.pop %v2819
    %v2821 = vadd.f32 %v2820, 1.0
    %v2822 = vrcp.pop %v2821
    %v2823 = vmul.f32 1.0, %v2822
    %v2824 = vtanh.pop %v2806
    %v2825 = vxor.u32 %v2808, 2147483648
    %v2826 = vmul.f32 %v2825, 1.442695
    %v2827 = vpow.pop %v2826
    %v2828 = vadd.f32 %v2827, 1.0
    %v2829 = vrcp.pop %v2828
    %v2830 = vmul.f32 1.0, %v2829
    %v2831 = vmul.f32 %v2823, %v2727
    %v2832 = vmul.f32 %v2817, %v2824
    %v2833 = vadd.f32 %v2831, %v2832
    %v2834 = vtanh.pop %v2833
    %v2835 = vmul.f32 %v2830, %v2834
    %v2836 = vsel %vm2601, %v2835, %v2726
    %2837 = vst [vmem:[#allocation5] sm:$0xff] %v2836
    %v2838 = vsel %vm2601, %v2833, %v2727
    %2839 = vst [vmem:[#allocation6] sm:$0xff] %v2838
    %s2840 = sadd.s32 %s652, 7
    %v2841 = vstv %s2840
    %vm2842 = vcmp.lt.s32.totalorder %v2841, %v651
    %v2843 = vld [vmem:[#allocation3] sm:$0xff]
    %v2844 = vld [vmem:[#allocation4] sm:$0xff]
    %s2845 = smul.u32 7, 4
    %s2846 = smul.addr %s2845, 8
    %s2847 = scalar_lea.vmem [#allocation2], %s2846
    %v2848 = vld [vmem:[%s2847] sm:$0xff]
    %v2849 = vld [vmem:[%s2847 + $0x8] sm:$0xff]
    %v2850 = vld [vmem:[%s2847 + $0x10] sm:$0xff]
    %v2851 = vld [vmem:[%s2847 + $0x18] sm:$0xff]
    %v2852 = vpack.c.bf16 %v2843, %v2843
    %2853 = vmatprep.subr.bf16.mxu0 %v790
    %2854 = vmatpush1.bf16.msra.mxu0 %v789
    %2855 = vmatprep.subr.bf16.mxu0 %v786
    %2856 = vmatpush1.bf16.msra.mxu0 %v785
    %2857 = vmatprep.subr.bf16.mxu0 %v782
    %2858 = vmatpush1.bf16.msra.mxu0 %v781
    %2859 = vmatprep.subr.bf16.mxu0 %v778
    %2860 = vmatpush1.bf16.msra.mxu0 %v777
    %2861 = vmatprep.subr.bf16.mxu0 %v774
    %2862 = vmatpush1.bf16.msra.mxu0 %v773
    %2863 = vmatprep.subr.bf16.mxu0 %v770
    %2864 = vmatpush1.bf16.msra.mxu0 %v769
    %2865 = vmatprep.subr.bf16.mxu0 %v766
    %2866 = vmatpush1.bf16.msra.mxu0 %v765
    %2867 = vmatprep.subr.bf16.mxu0 %v762
    %2868 = vmatpush1.bf16.msra.mxu0 %v761
    %2869 = vmatprep.subr.bf16.mxu0 0
    %2870 = vmatpush2.bf16.msra.mxu0 0
    %2871 = vmatprep.subr.bf16.mxu0 0
    %2872 = vmatpush2.bf16.msra.mxu0 0
    %2873 = vmatprep.subr.bf16.mxu0 0
    %2874 = vmatpush2.bf16.msra.mxu0 0
    %2875 = vmatprep.subr.bf16.mxu0 0
    %2876 = vmatpush2.bf16.msra.mxu0 0
    %2877 = vmatprep.subr.bf16.mxu0 0
    %2878 = vmatpush2.bf16.msra.mxu0 0
    %2879 = vmatprep.subr.bf16.mxu0 0
    %2880 = vmatpush2.bf16.msra.mxu0 0
    %2881 = vmatprep.subr.bf16.mxu0 0
    %2882 = vmatpush2.bf16.msra.mxu0 0
    %2883 = vmatprep.subr.bf16.mxu0 0
    %2884 = vmatpush2.bf16.msra.mxu0 0
    %2885 = vmatprep.mubr.bf16.mxu0 0
    %2886 = vmatmul.mubr.bf16.gmra.mxu0 %v2852
    %v2887 = vpop.f32.mrf.mxu0
    %v2888 = vadd.f32 0.0, %v2887
    %v2889 = vpop.f32.mrf.mxu0
    %v2890 = vadd.f32 0.0, %v2889
    %v2891 = vpop.f32.mrf.mxu0
    %v2892 = vpop.f32.mrf.mxu0
    %2893 = vdwg.mxu0
    %2894 = vmatprep.subr.bf16.mxu0 %v792
    %2895 = vmatpush1.bf16.msra.mxu0 %v791
    %2896 = vmatprep.subr.bf16.mxu0 %v788
    %2897 = vmatpush1.bf16.msra.mxu0 %v787
    %2898 = vmatprep.subr.bf16.mxu0 %v784
    %2899 = vmatpush1.bf16.msra.mxu0 %v783
    %2900 = vmatprep.subr.bf16.mxu0 %v780
    %2901 = vmatpush1.bf16.msra.mxu0 %v779
    %2902 = vmatprep.subr.bf16.mxu0 %v776
    %2903 = vmatpush1.bf16.msra.mxu0 %v775
    %2904 = vmatprep.subr.bf16.mxu0 %v772
    %2905 = vmatpush1.bf16.msra.mxu0 %v771
    %2906 = vmatprep.subr.bf16.mxu0 %v768
    %2907 = vmatpush1.bf16.msra.mxu0 %v767
    %2908 = vmatprep.subr.bf16.mxu0 %v764
    %2909 = vmatpush1.bf16.msra.mxu0 %v763
    %2910 = vmatprep.subr.bf16.mxu0 0
    %2911 = vmatpush2.bf16.msra.mxu0 0
    %2912 = vmatprep.subr.bf16.mxu0 0
    %2913 = vmatpush2.bf16.msra.mxu0 0
    %2914 = vmatprep.subr.bf16.mxu0 0
    %2915 = vmatpush2.bf16.msra.mxu0 0
    %2916 = vmatprep.subr.bf16.mxu0 0
    %2917 = vmatpush2.bf16.msra.mxu0 0
    %2918 = vmatprep.subr.bf16.mxu0 0
    %2919 = vmatpush2.bf16.msra.mxu0 0
    %2920 = vmatprep.subr.bf16.mxu0 0
    %2921 = vmatpush2.bf16.msra.mxu0 0
    %2922 = vmatprep.subr.bf16.mxu0 0
    %2923 = vmatpush2.bf16.msra.mxu0 0
    %2924 = vmatprep.subr.bf16.mxu0 0
    %2925 = vmatpush2.bf16.msra.mxu0 0
    %2926 = vmatprep.mubr.bf16.mxu0 0
    %2927 = vmatmul.mubr.bf16.gmra.mxu0 %v2852
    %v2928 = vpop.f32.mrf.mxu0
    %v2929 = vadd.f32 0.0, %v2928
    %v2930 = vpop.f32.mrf.mxu0
    %v2931 = vadd.f32 0.0, %v2930
    %v2932 = vpop.f32.mrf.mxu0
    %v2933 = vpop.f32.mrf.mxu0
    %2934 = vdwg.mxu0
    %v2935 = vadd.f32 %v2848, %v2888
    %v2936 = vadd.f32 %v2849, %v2890
    %v2937 = vadd.f32 %v2850, %v2929
    %v2938 = vadd.f32 %v2851, %v2931
    %v2939 = vxor.u32 %v2935, 2147483648
    %v2940 = vmul.f32 %v2939, 1.442695
    %v2941 = vpow.pop %v2940
    %v2942 = vadd.f32 %v2941, 1.0
    %v2943 = vrcp.pop %v2942
    %v2944 = vmul.f32 1.0, %v2943
    %v2945 = vxor.u32 %v2936, 2147483648
    %v2946 = vmul.f32 %v2945, 1.442695
    %v2947 = vpow.pop %v2946
    %v2948 = vadd.f32 %v2947, 1.0
    %v2949 = vrcp.pop %v2948
    %v2950 = vmul.f32 1.0, %v2949
    %v2951 = vtanh.pop %v2937
    %v2952 = vxor.u32 %v2938, 2147483648
    %v2953 = vmul.f32 %v2952, 1.442695
    %v2954 = vpow.pop %v2953
    %v2955 = vadd.f32 %v2954, 1.0
    %v2956 = vrcp.pop %v2955
    %v2957 = vmul.f32 1.0, %v2956
    %v2958 = vmul.f32 %v2950, %v2844
    %v2959 = vmul.f32 %v2944, %v2951
    %v2960 = vadd.f32 %v2958, %v2959
    %v2961 = vtanh.pop %v2960
    %v2962 = vmul.f32 %v2957, %v2961
    %v2963 = vsel %vm2842, %v2962, %v2843
    %2964 = vst [vmem:[#allocation3] sm:$0xff] %v2963
    %v2965 = vsel %vm2842, %v2960, %v2844
    %2966 = vst [vmem:[#allocation4] sm:$0xff] %v2965
    %v2967 = vld [vmem:[#allocation5] sm:$0xff]
    %v2968 = vld [vmem:[#allocation6] sm:$0xff]
    %v2969 = vpack.c.bf16 %v2963, %v2963
    %v2970 = vpack.c.bf16 %v2967, %v2967
    %2971 = vmatprep.subr.bf16.mxu0 %v1185
    %2972 = vmatpush1.bf16.msra.mxu0 %v1184
    %2973 = vmatprep.subr.bf16.mxu0 %v1181
    %2974 = vmatpush1.bf16.msra.mxu0 %v1180
    %2975 = vmatprep.subr.bf16.mxu0 %v1177
    %2976 = vmatpush1.bf16.msra.mxu0 %v1176
    %2977 = vmatprep.subr.bf16.mxu0 %v1173
    %2978 = vmatpush1.bf16.msra.mxu0 %v1172
    %2979 = vmatprep.subr.bf16.mxu0 %v1169
    %2980 = vmatpush1.bf16.msra.mxu0 %v1168
    %2981 = vmatprep.subr.bf16.mxu0 %v1165
    %2982 = vmatpush1.bf16.msra.mxu0 %v1164
    %2983 = vmatprep.subr.bf16.mxu0 %v1161
    %2984 = vmatpush1.bf16.msra.mxu0 %v1160
    %2985 = vmatprep.subr.bf16.mxu0 %v1157
    %2986 = vmatpush1.bf16.msra.mxu0 %v1156
    %2987 = vmatprep.subr.bf16.mxu0 %v1217
    %2988 = vmatpush2.bf16.msra.mxu0 %v1216
    %2989 = vmatprep.subr.bf16.mxu0 %v1213
    %2990 = vmatpush2.bf16.msra.mxu0 %v1212
    %2991 = vmatprep.subr.bf16.mxu0 %v1209
    %2992 = vmatpush2.bf16.msra.mxu0 %v1208
    %2993 = vmatprep.subr.bf16.mxu0 %v1205
    %2994 = vmatpush2.bf16.msra.mxu0 %v1204
    %2995 = vmatprep.subr.bf16.mxu0 %v1201
    %2996 = vmatpush2.bf16.msra.mxu0 %v1200
    %2997 = vmatprep.subr.bf16.mxu0 %v1197
    %2998 = vmatpush2.bf16.msra.mxu0 %v1196
    %2999 = vmatprep.subr.bf16.mxu0 %v1193
    %3000 = vmatpush2.bf16.msra.mxu0 %v1192
    %3001 = vmatprep.subr.bf16.mxu0 %v1189
    %3002 = vmatpush2.bf16.msra.mxu0 %v1188
    %3003 = vmatprep.mubr.bf16.mxu0 %v2970
    %3004 = vmatmul.mubr.bf16.gmra.mxu0 %v2969
    %v3005 = vpop.f32.mrf.mxu0
    %v3006 = vadd.f32 %v947, %v3005
    %v3007 = vpop.f32.mrf.mxu0
    %v3008 = vadd.f32 %v951, %v3007
    %v3009 = vpop.f32.mrf.mxu0
    %v3010 = vpop.f32.mrf.mxu0
    %3011 = vdwg.mxu0
    %3012 = vmatprep.subr.bf16.mxu0 %v1187
    %3013 = vmatpush1.bf16.msra.mxu0 %v1186
    %3014 = vmatprep.subr.bf16.mxu0 %v1183
    %3015 = vmatpush1.bf16.msra.mxu0 %v1182
    %3016 = vmatprep.subr.bf16.mxu0 %v1179
    %3017 = vmatpush1.bf16.msra.mxu0 %v1178
    %3018 = vmatprep.subr.bf16.mxu0 %v1175
    %3019 = vmatpush1.bf16.msra.mxu0 %v1174
    %3020 = vmatprep.subr.bf16.mxu0 %v1171
    %3021 = vmatpush1.bf16.msra.mxu0 %v1170
    %3022 = vmatprep.subr.bf16.mxu0 %v1167
    %3023 = vmatpush1.bf16.msra.mxu0 %v1166
    %3024 = vmatprep.subr.bf16.mxu0 %v1163
    %3025 = vmatpush1.bf16.msra.mxu0 %v1162
    %3026 = vmatprep.subr.bf16.mxu0 %v1159
    %3027 = vmatpush1.bf16.msra.mxu0 %v1158
    %3028 = vmatprep.subr.bf16.mxu0 %v1219
    %3029 = vmatpush2.bf16.msra.mxu0 %v1218
    %3030 = vmatprep.subr.bf16.mxu0 %v1215
    %3031 = vmatpush2.bf16.msra.mxu0 %v1214
    %3032 = vmatprep.subr.bf16.mxu0 %v1211
    %3033 = vmatpush2.bf16.msra.mxu0 %v1210
    %3034 = vmatprep.subr.bf16.mxu0 %v1207
    %3035 = vmatpush2.bf16.msra.mxu0 %v1206
    %3036 = vmatprep.subr.bf16.mxu0 %v1203
    %3037 = vmatpush2.bf16.msra.mxu0 %v1202
    %3038 = vmatprep.subr.bf16.mxu0 %v1199
    %3039 = vmatpush2.bf16.msra.mxu0 %v1198
    %3040 = vmatprep.subr.bf16.mxu0 %v1195
    %3041 = vmatpush2.bf16.msra.mxu0 %v1194
    %3042 = vmatprep.subr.bf16.mxu0 %v1191
    %3043 = vmatpush2.bf16.msra.mxu0 %v1190
    %3044 = vmatprep.mubr.bf16.mxu0 %v2970
    %3045 = vmatmul.mubr.bf16.gmra.mxu0 %v2969
    %v3046 = vpop.f32.mrf.mxu0
    %v3047 = vadd.f32 %v955, %v3046
    %v3048 = vpop.f32.mrf.mxu0
    %v3049 = vadd.f32 %v959, %v3048
    %v3050 = vpop.f32.mrf.mxu0
    %v3051 = vpop.f32.mrf.mxu0
    %3052 = vdwg.mxu0
    %v3053 = vxor.u32 %v3006, 2147483648
    %v3054 = vmul.f32 %v3053, 1.442695
    %v3055 = vpow.pop %v3054
    %v3056 = vadd.f32 %v3055, 1.0
    %v3057 = vrcp.pop %v3056
    %v3058 = vmul.f32 1.0, %v3057
    %v3059 = vxor.u32 %v3008, 2147483648
    %v3060 = vmul.f32 %v3059, 1.442695
    %v3061 = vpow.pop %v3060
    %v3062 = vadd.f32 %v3061, 1.0
    %v3063 = vrcp.pop %v3062
    %v3064 = vmul.f32 1.0, %v3063
    %v3065 = vtanh.pop %v3047
    %v3066 = vxor.u32 %v3049, 2147483648
    %v3067 = vmul.f32 %v3066, 1.442695
    %v3068 = vpow.pop %v3067
    %v3069 = vadd.f32 %v3068, 1.0
    %v3070 = vrcp.pop %v3069
    %v3071 = vmul.f32 1.0, %v3070
    %v3072 = vmul.f32 %v3064, %v2968
    %v3073 = vmul.f32 %v3058, %v3065
    %v3074 = vadd.f32 %v3072, %v3073
    %v3075 = vtanh.pop %v3074
    %v3076 = vmul.f32 %v3071, %v3075
    %v3077 = vsel %vm2842, %v3076, %v2967
    %3078 = vst [vmem:[#allocation5] sm:$0xff] %v3077
    %v3079 = vsel %vm2842, %v3074, %v2968
    %3080 = vst [vmem:[#allocation6] sm:$0xff] %v3079
    // Predicated region
    $region70: #{tpu_custom_call.1} parent=1 // pred_check
      %p3081 = pneg %p119
    $region71: #{tpu_custom_call.1} parent=1 // pred_check_branch
      %3083 = sbr.rel (%p3081) target = $region73
    $region72: #{tpu_custom_call.1} parent=1 // pred_region
      %v3084 = vld [vmem:[#allocation3] sm:$0xff]
      %v3085 = vpack.c.bf16 %v3084, %v3084
      %v3086 = vld [vmem:[#allocation15] sm:$0xf]
      %v3087 = vld [vmem:[#allocation15 + $0x4] sm:$0xf]
      %v3088 = vld [vmem:[#allocation15 + $0x8] sm:$0xf]
      %v3089 = vld [vmem:[#allocation15 + $0xc] sm:$0xf]
      %v3090 = vld [vmem:[#allocation15 + $0x10] sm:$0xf]
      %v3091 = vld [vmem:[#allocation15 + $0x14] sm:$0xf]
      %v3092 = vld [vmem:[#allocation15 + $0x18] sm:$0xf]
      %v3093 = vld [vmem:[#allocation15 + $0x1c] sm:$0xf]
      %v3094 = vld [vmem:[#allocation15 + $0x20] sm:$0xf]
      %v3095 = vld [vmem:[#allocation15 + $0x24] sm:$0xf]
      %v3096 = vld [vmem:[#allocation15 + $0x28] sm:$0xf]
      %v3097 = vld [vmem:[#allocation15 + $0x2c] sm:$0xf]
      %v3098 = vld [vmem:[#allocation15 + $0x30] sm:$0xf]
      %v3099 = vld [vmem:[#allocation15 + $0x34] sm:$0xf]
      %v3100 = vld [vmem:[#allocation15 + $0x38] sm:$0xf]
      %v3101 = vld [vmem:[#allocation15 + $0x3c] sm:$0xf]
      %v3102 = vld [vmem:[#allocation5] sm:$0xff]
      %v3103 = vpack.c.bf16 %v3102, %v3102
      %v3104 = vld [vmem:[#allocation16] sm:$0xf]
      %v3105 = vld [vmem:[#allocation16 + $0x4] sm:$0xf]
      %v3106 = vld [vmem:[#allocation16 + $0x8] sm:$0xf]
      %v3107 = vld [vmem:[#allocation16 + $0xc] sm:$0xf]
      %v3108 = vld [vmem:[#allocation16 + $0x10] sm:$0xf]
      %v3109 = vld [vmem:[#allocation16 + $0x14] sm:$0xf]
      %v3110 = vld [vmem:[#allocation16 + $0x18] sm:$0xf]
      %v3111 = vld [vmem:[#allocation16 + $0x1c] sm:$0xf]
      %v3112 = vld [vmem:[#allocation16 + $0x20] sm:$0xf]
      %v3113 = vld [vmem:[#allocation16 + $0x24] sm:$0xf]
      %v3114 = vld [vmem:[#allocation16 + $0x28] sm:$0xf]
      %v3115 = vld [vmem:[#allocation16 + $0x2c] sm:$0xf]
      %v3116 = vld [vmem:[#allocation16 + $0x30] sm:$0xf]
      %v3117 = vld [vmem:[#allocation16 + $0x34] sm:$0xf]
      %v3118 = vld [vmem:[#allocation16 + $0x38] sm:$0xf]
      %v3119 = vld [vmem:[#allocation16 + $0x3c] sm:$0xf]
      %v3136 = vunpack.c.l.b16 %v3104
      %v3137 = vunpack.c.l.b16 %v3105
      %v3138 = vunpack.c.l.b16 %v3106
      %v3139 = vunpack.c.l.b16 %v3107
      %v3140 = vunpack.c.l.b16 %v3108
      %v3141 = vunpack.c.l.b16 %v3109
      %v3142 = vunpack.c.l.b16 %v3110
      %v3143 = vunpack.c.l.b16 %v3111
      %v3144 = vunpack.c.l.b16 %v3112
      %v3145 = vunpack.c.l.b16 %v3113
      %v3146 = vunpack.c.l.b16 %v3114
      %v3147 = vunpack.c.l.b16 %v3115
      %v3148 = vunpack.c.l.b16 %v3116
      %v3149 = vunpack.c.l.b16 %v3117
      %v3150 = vunpack.c.l.b16 %v3118
      %v3151 = vunpack.c.l.b16 %v3119
      %v3152 = vpack.c.b16 %v3137, %v3136
      %v3153 = vpack.c.b16 %v3139, %v3138
      %v3154 = vpack.c.b16 %v3141, %v3140
      %v3155 = vpack.c.b16 %v3143, %v3142
      %v3156 = vpack.c.b16 %v3145, %v3144
      %v3157 = vpack.c.b16 %v3147, %v3146
      %v3158 = vpack.c.b16 %v3149, %v3148
      %v3159 = vpack.c.b16 %v3151, %v3150
      %3168 = vmatprep.subr.bf16.mxu0 0
      %3169 = vmatpush1.bf16.msra.mxu0 %v3159
      %3170 = vmatprep.subr.bf16.mxu0 0
      %3171 = vmatpush1.bf16.msra.mxu0 %v3158
      %3172 = vmatprep.subr.bf16.mxu0 0
      %3173 = vmatpush1.bf16.msra.mxu0 %v3157
      %3174 = vmatprep.subr.bf16.mxu0 0
      %3175 = vmatpush1.bf16.msra.mxu0 %v3156
      %3176 = vmatprep.subr.bf16.mxu0 0
      %3177 = vmatpush1.bf16.msra.mxu0 %v3155
      %3178 = vmatprep.subr.bf16.mxu0 0
      %3179 = vmatpush1.bf16.msra.mxu0 %v3154
      %3180 = vmatprep.subr.bf16.mxu0 0
      %3181 = vmatpush1.bf16.msra.mxu0 %v3153
      %3182 = vmatprep.subr.bf16.mxu0 0
      %3183 = vmatpush1.bf16.msra.mxu0 %v3152
      %3184 = vmatprep.subr.bf16.mxu0 0
      %3185 = vmatpush2.bf16.msra.mxu0 0
      %3186 = vmatprep.subr.bf16.mxu0 0
      %3187 = vmatpush2.bf16.msra.mxu0 0
      %3188 = vmatprep.subr.bf16.mxu0 0
      %3189 = vmatpush2.bf16.msra.mxu0 0
      %3190 = vmatprep.subr.bf16.mxu0 0
      %3191 = vmatpush2.bf16.msra.mxu0 0
      %3192 = vmatprep.subr.bf16.mxu0 0
      %3193 = vmatpush2.bf16.msra.mxu0 0
      %3194 = vmatprep.subr.bf16.mxu0 0
      %3195 = vmatpush2.bf16.msra.mxu0 0
      %3196 = vmatprep.subr.bf16.mxu0 0
      %3197 = vmatpush2.bf16.msra.mxu0 0
      %3198 = vmatprep.subr.bf16.mxu0 0
      %3199 = vmatpush2.bf16.msra.mxu0 0
      %3200 = vmatprep.mubr.bf16.mxu0 0
      %3201 = vmatmul.mubr.bf16.gmra.mxu0 %v3103
      %v3202 = vpop.f32.mrf.mxu0
      %v3203 = vadd.f32 0.0, %v3202
      %v3204 = vpop.f32.mrf.mxu0
      %v3205 = vpop.f32.mrf.mxu0
      %v3206 = vpop.f32.mrf.mxu0
      %3207 = vdwg.mxu0
      %v3224 = vunpack.c.l.b16 %v3086
      %v3225 = vunpack.c.l.b16 %v3087
      %v3226 = vunpack.c.l.b16 %v3088
      %v3227 = vunpack.c.l.b16 %v3089
      %v3228 = vunpack.c.l.b16 %v3090
      %v3229 = vunpack.c.l.b16 %v3091
      %v3230 = vunpack.c.l.b16 %v3092
      %v3231 = vunpack.c.l.b16 %v3093
      %v3232 = vunpack.c.l.b16 %v3094
      %v3233 = vunpack.c.l.b16 %v3095
      %v3234 = vunpack.c.l.b16 %v3096
      %v3235 = vunpack.c.l.b16 %v3097
      %v3236 = vunpack.c.l.b16 %v3098
      %v3237 = vunpack.c.l.b16 %v3099
      %v3238 = vunpack.c.l.b16 %v3100
      %v3239 = vunpack.c.l.b16 %v3101
      %v3240 = vpack.c.b16 %v3225, %v3224
      %v3241 = vpack.c.b16 %v3227, %v3226
      %v3242 = vpack.c.b16 %v3229, %v3228
      %v3243 = vpack.c.b16 %v3231, %v3230
      %v3244 = vpack.c.b16 %v3233, %v3232
      %v3245 = vpack.c.b16 %v3235, %v3234
      %v3246 = vpack.c.b16 %v3237, %v3236
      %v3247 = vpack.c.b16 %v3239, %v3238
      %3256 = vmatprep.subr.bf16.mxu0 0
      %3257 = vmatpush1.bf16.msra.mxu0 %v3247
      %3258 = vmatprep.subr.bf16.mxu0 0
      %3259 = vmatpush1.bf16.msra.mxu0 %v3246
      %3260 = vmatprep.subr.bf16.mxu0 0
      %3261 = vmatpush1.bf16.msra.mxu0 %v3245
      %3262 = vmatprep.subr.bf16.mxu0 0
      %3263 = vmatpush1.bf16.msra.mxu0 %v3244
      %3264 = vmatprep.subr.bf16.mxu0 0
      %3265 = vmatpush1.bf16.msra.mxu0 %v3243
      %3266 = vmatprep.subr.bf16.mxu0 0
      %3267 = vmatpush1.bf16.msra.mxu0 %v3242
      %3268 = vmatprep.subr.bf16.mxu0 0
      %3269 = vmatpush1.bf16.msra.mxu0 %v3241
      %3270 = vmatprep.subr.bf16.mxu0 0
      %3271 = vmatpush1.bf16.msra.mxu0 %v3240
      %3272 = vmatprep.subr.bf16.mxu0 0
      %3273 = vmatpush2.bf16.msra.mxu0 0
      %3274 = vmatprep.subr.bf16.mxu0 0
      %3275 = vmatpush2.bf16.msra.mxu0 0
      %3276 = vmatprep.subr.bf16.mxu0 0
      %3277 = vmatpush2.bf16.msra.mxu0 0
      %3278 = vmatprep.subr.bf16.mxu0 0
      %3279 = vmatpush2.bf16.msra.mxu0 0
      %3280 = vmatprep.subr.bf16.mxu0 0
      %3281 = vmatpush2.bf16.msra.mxu0 0
      %3282 = vmatprep.subr.bf16.mxu0 0
      %3283 = vmatpush2.bf16.msra.mxu0 0
      %3284 = vmatprep.subr.bf16.mxu0 0
      %3285 = vmatpush2.bf16.msra.mxu0 0
      %3286 = vmatprep.subr.bf16.mxu0 0
      %3287 = vmatpush2.bf16.msra.mxu0 0
      %3288 = vmatprep.mubr.bf16.mxu0 0
      %3289 = vmatmul.mubr.bf16.gmra.mxu0 %v3085
      %v3290 = vpop.f32.mrf.mxu0
      %v3291 = vadd.f32 %v3203, %v3290
      %v3292 = vpop.f32.mrf.mxu0
      %v3293 = vpop.f32.mrf.mxu0
      %v3294 = vpop.f32.mrf.mxu0
      %3295 = vdwg.mxu0
      %v3296 = vld [vmem:[%s9] sm:$0x1]
      %v3298 = vlaneseq
      %v3299 = vshrl.u32 %v3298, 7
      %v3300 = vsub.s32 0, %v3299
      %v3301 = vrot.slane %v3296, %v3300
      %v3303 = vadd.f32 %v3291, %v3301
      %3304 = vst [vmem:[#allocation18] sm:$0xff] %v3303
    $region73: #{tpu_custom_call.1} parent=1 // pred_fallthru
      _
    // Predicated region
    $region74: #{tpu_custom_call.1} parent=1 // pred_check
      _
    $region75: #{tpu_custom_call.1} parent=1 // pred_check_branch
      %3306 = sbr.rel (0) target = $region77
    $region76: #{tpu_custom_call.1} parent=1 // pred_region
      %s3308 = ssub.s32 128, 128
      %3309 = vsyncadd [#allocation9], %s3308
      %s3311 = sshll.u32 [#allocation18], 4
      %s3312 = int_to_ptr.vmem [resolvable:$true] %s3311
      %3314 = dma.vmem_to_hbm [thread:$0]  %s3312, 128, %s10, [#allocation9]
    $region77: #{tpu_custom_call.1} parent=1 // pred_fallthru
      _
    // Predicated region
    $region78: #{tpu_custom_call.1} parent=1 // pred_check
      _
    $region79: #{tpu_custom_call.1} parent=1 // pred_check_branch
      %3316 = sbr.rel (0) target = $region81
    $region80: #{tpu_custom_call.1} parent=1 // pred_region
      %3317 = dma.done [#allocation9], 128
    $region81: #{tpu_custom_call.1} parent=1 // pred_fallthru
      _
    %3318 = vsyncpa [#allocation8], 1
    %3319 = vsyncpa [#allocation11], 1
    %3320 = vsyncpa [#allocation14], 1
    %3321 = vsyncpa [#allocation17], 1
    %3322 = vsyncpa [#allocation9], 1

</llo_original>
